<compile_context>
chip_gen: v5e
topology: v5e:2x2
jax: 0.10.0
libtpu: 0.0.40
codegen_flags: <defaults>
</compile_context>

<pallas_src>
import functools

import jax
import jax.numpy as jnp
from jax.experimental import pallas as pl
from jax.experimental.pallas import tpu as pltpu


def _round_up(x, m):
    return (x + m - 1) // m * m


def _make_conv_relu_kernel(TH, KH, KW):
    n_rows = TH + KH - 1

    def kernel(*refs):
        x_rows = refs[:n_rows]                         # each (1, 1, Wp, Cin) bf16
        w_ref, b_ref, o_ref = refs[n_rows:n_rows + 3]  # (KH,KW,Cin,TCO), (1,TCO), (1,TH,Wp_out,TCO)
        w_out = o_ref.shape[2]
        tco = o_ref.shape[3]
        bias = b_ref[...].astype(jnp.float32)          # (1, TCO) f32

        for r in range(TH):                            # static unroll over strip rows
            acc = jnp.zeros((w_out, tco), jnp.float32)
            for kh in range(KH):
                row_ref = x_rows[r + kh]
                for kw in range(KW):
                    # Slice directly from the VMEM ref (no materialized shifted copy,
                    # no reshape); bf16 operands, f32 MXU accumulation.
                    lhs = row_ref[0, 0, kw:kw + w_out, :]          # (W_out, Cin)
                    acc = acc + jnp.dot(lhs, w_ref[kh, kw],
                                        preferred_element_type=jnp.float32)
            acc = acc + bias                                        # f32 epilogue
            o_ref[0, r] = jnp.maximum(acc, 0.0).astype(o_ref.dtype)  # lane-dense store

    return kernel


@functools.partial(jax.jit, static_argnames=("padding", "row_tile"))
def conv_module_forward(x_nchw, weight_oihw, bias, *, padding=1, row_tile=8):
    """relu(conv2d(x, W, b, stride=1, padding=padding)) — ConvModule default path.

    x_nchw:      (N, Cin, H, W)   float32 (PyTorch NCHW convention)
    weight_oihw: (Cout, Cin, KH, KW)
    bias:        (Cout,)
    returns:     (N, Cout, H_out, W_out) in NCHW, float32
    """
    N, Cin, H, W = x_nchw.shape
    Cout, _, KH, KW = weight_oihw.shape
    # TODO(synk): only stride=1 / dilation=1 / groups=1 implemented (FPN ConvModule case).
    H_out = H + 2 * padding - (KH - 1)
    W_out = W + 2 * padding - (KW - 1)

    TH = max(1, min(row_tile, H_out))           # output rows per grid step
    H_out_p = _round_up(H_out, TH)              # pad so H_out divides into strips
    W_out_p = _round_up(W_out, 8)               # sublane-aligned row width
    Cout_p = _round_up(Cout, 128)               # lane-dense output channels
    TCO = 256 if Cout_p % 256 == 0 else 128     # 256-wide for v6e/v7x MXU, 128 otherwise

    Hp = H_out_p + KH - 1                       # padded input height
    Wp = W_out_p + KW - 1                       # padded input width

    # NCHW -> NHWC, bf16 for the MXU, spatial pad (conv pad + alignment pad).
    # TODO(synk): the transpose/pad are still standalone XLA fusions; keeping the
    # model NHWC end-to-end would remove this extra HBM round trip.
    x_nhwc = jnp.transpose(x_nchw.astype(jnp.bfloat16), (0, 2, 3, 1))
    x_pad = jnp.pad(
        x_nhwc,
        ((0, 0),
         (padding, Hp - H - padding),
         (padding, Wp - W - padding),
         (0, 0)))

    # (Cout, Cin, KH, KW) -> (KH, KW, Cin, Cout_p), bf16; bias padded, f32.
    w_hwio = jnp.transpose(weight_oihw, (2, 3, 1, 0)).astype(jnp.bfloat16)
    w_hwio = jnp.pad(w_hwio, ((0, 0), (0, 0), (0, 0), (0, Cout_p - Cout)))
    b2 = jnp.pad(bias, (0, Cout_p - Cout)).astype(jnp.float32).reshape(1, Cout_p)

    n_rows = TH + KH - 1
    grid = (N, Cout_p // TCO, H_out_p // TH)

    def make_row_map(r):
        def row_map(n, co, i):
            # block size along H is 1, so block index == element row (halo rows).
            return (n, i * TH + r, 0, 0)
        return row_map

    in_specs = [pl.BlockSpec((1, 1, Wp, Cin), make_row_map(r)) for r in range(n_rows)]
    in_specs += [
        pl.BlockSpec((KH, KW, Cin, TCO), lambda n, co, i: (0, 0, 0, co)),
        pl.BlockSpec((1, TCO), lambda n, co, i: (0, co)),
    ]
    out_spec = pl.BlockSpec((1, TH, W_out_p, TCO), lambda n, co, i: (n, i, 0, co))

    flops = 2 * N * H_out_p * W_out_p * Cout_p * Cin * KH * KW
    bytes_accessed = (x_pad.size * x_pad.dtype.itemsize
                      + w_hwio.size * w_hwio.dtype.itemsize
                      + b2.size * b2.dtype.itemsize
                      + N * H_out_p * W_out_p * Cout_p * 4)

    out_nhwc = pl.pallas_call(
        _make_conv_relu_kernel(TH, KH, KW),
        out_shape=jax.ShapeDtypeStruct((N, H_out_p, W_out_p, Cout_p), jnp.float32),
        grid_spec=pltpu.PrefetchScalarGridSpec(
            num_scalar_prefetch=0,
            grid=grid,
            in_specs=in_specs,
            out_specs=out_spec,
        ),
        compiler_params=pltpu.CompilerParams(
            dimension_semantics=("parallel", "parallel", "parallel"),
            vmem_limit_bytes=48 * 1024 * 1024,
        ),
        cost_estimate=pl.CostEstimate(
            flops=flops, transcendentals=0, bytes_accessed=bytes_accessed),
    )(*([x_pad] * n_rows), w_hwio, b2)

    # Strip alignment padding; NHWC -> NCHW to match PyTorch output convention.
    out = out_nhwc[:, :H_out, :W_out, :Cout]
    return jnp.transpose(out, (0, 3, 1, 2)).astype(x_nchw.dtype)


def init_conv_module_params(key, in_channels, out_channels, kernel_size):
    """Deterministic params mirroring ConvModule.init_weights():
    kaiming_normal_(weight, mode='fan_out', nonlinearity='relu'), bias = 0."""
    kh = kw = kernel_size
    fan_out = out_channels * kh * kw
    std = (2.0 / fan_out) ** 0.5
    w = std * jax.random.normal(key, (out_channels, in_channels, kh, kw), jnp.float32)
    b = jnp.zeros((out_channels,), jnp.float32)
    return w, b


if __name__ == "__main__":
    # Small shapes: batch=2, in_channels=4, out_channels=8, spatial 16x16, 3x3 conv, pad 1.
    N, Cin, Cout, H, W, K, P = 2, 4, 8, 16, 16, 3, 1

    key = jax.random.PRNGKey(0)
    kx, kw_ = jax.random.split(key)
    x = jax.random.normal(kx, (N, Cin, H, W), jnp.float32)
    weight, bias = init_conv_module_params(kw_, Cin, Cout, K)

    out = conv_module_forward(x, weight, bias, padding=P)
    out = jax.block_until_ready(out)

    # Reference with the same bf16-operand / f32-accumulate semantics.
    ref = jax.lax.conv_general_dilated(
        x.astype(jnp.bfloat16), weight.astype(jnp.bfloat16),
        window_strides=(1, 1), padding=[(P, P), (P, P)],
        dimension_numbers=("NCHW", "OIHW", "NCHW"),
        preferred_element_type=jnp.float32)
    ref = jnp.maximum(ref + bias[None, :, None, None], 0.0)

    assert out.shape == (N, Cout, H, W)
    assert jnp.allclose(out, ref, atol=1e-3, rtol=1e-3), float(jnp.max(jnp.abs(out - ref)))

    print("KERNEL_OK")
</pallas_src>

<mosaic_0001>
module attributes {stable_mosaic.version = 11 : i64} {
  func.func @kernel(%arg0: i32, %arg1: i32, %arg2: i32, %arg3: memref<1x1x18x4xbf16, #tpu.memory_space<vmem>>, %arg4: memref<1x1x18x4xbf16, #tpu.memory_space<vmem>>, %arg5: memref<1x1x18x4xbf16, #tpu.memory_space<vmem>>, %arg6: memref<1x1x18x4xbf16, #tpu.memory_space<vmem>>, %arg7: memref<1x1x18x4xbf16, #tpu.memory_space<vmem>>, %arg8: memref<1x1x18x4xbf16, #tpu.memory_space<vmem>>, %arg9: memref<1x1x18x4xbf16, #tpu.memory_space<vmem>>, %arg10: memref<1x1x18x4xbf16, #tpu.memory_space<vmem>>, %arg11: memref<1x1x18x4xbf16, #tpu.memory_space<vmem>>, %arg12: memref<1x1x18x4xbf16, #tpu.memory_space<vmem>>, %arg13: memref<3x3x4x128xbf16, #tpu.memory_space<vmem>>, %arg14: memref<1x128xf32, #tpu.memory_space<vmem>>, %arg15: memref<1x8x16x128xf32, #tpu.memory_space<vmem>>) attributes {dimension_semantics = [#tpu.dimension_semantics<parallel>, #tpu.dimension_semantics<parallel>, #tpu.dimension_semantics<parallel>], iteration_bounds = array<i64: 2, 1, 2>, scalar_prefetch = 0 : i64, scratch_operands = 0 : i64, tpu.core_type = #tpu.core_type<tc>, window_params = [{transform_indices = @transform_0, window_bounds = array<i64: 1, 1, 18, 4>}, {transform_indices = @transform_1, window_bounds = array<i64: 1, 1, 18, 4>}, {transform_indices = @transform_2, window_bounds = array<i64: 1, 1, 18, 4>}, {transform_indices = @transform_3, window_bounds = array<i64: 1, 1, 18, 4>}, {transform_indices = @transform_4, window_bounds = array<i64: 1, 1, 18, 4>}, {transform_indices = @transform_5, window_bounds = array<i64: 1, 1, 18, 4>}, {transform_indices = @transform_6, window_bounds = array<i64: 1, 1, 18, 4>}, {transform_indices = @transform_7, window_bounds = array<i64: 1, 1, 18, 4>}, {transform_indices = @transform_8, window_bounds = array<i64: 1, 1, 18, 4>}, {transform_indices = @transform_9, window_bounds = array<i64: 1, 1, 18, 4>}, {transform_indices = @transform_10, window_bounds = array<i64: 3, 3, 4, 128>}, {transform_indices = @transform_11, window_bounds = array<i64: 1, 128>}, {transform_indices = @transform_12, window_bounds = array<i64: 1, 8, 16, 128>}]} {
    %c0 = arith.constant 0 : index
    %c0_0 = arith.constant 0 : index
    %0 = vector.load %arg14[%c0, %c0_0] : memref<1x128xf32, #tpu.memory_space<vmem>>, vector<1x128xf32>
    %cst = arith.constant 0.000000e+00 : f32
    %1 = vector.broadcast %cst : f32 to vector<16x128xf32>
    %c0_1 = arith.constant 0 : index
    %c0_2 = arith.constant 0 : index
    %c0_3 = arith.constant 0 : index
    %c0_4 = arith.constant 0 : index
    %2 = vector.load %arg3[%c0_1, %c0_2, %c0_3, %c0_4] : memref<1x1x18x4xbf16, #tpu.memory_space<vmem>>, vector<1x1x16x4xbf16>
    %3 = vector.shape_cast %2 : vector<1x1x16x4xbf16> to vector<16x4xbf16>
    %c0_5 = arith.constant 0 : index
    %c0_6 = arith.constant 0 : index
    %c0_7 = arith.constant 0 : index
    %c0_8 = arith.constant 0 : index
    %4 = vector.load %arg13[%c0_5, %c0_6, %c0_7, %c0_8] : memref<3x3x4x128xbf16, #tpu.memory_space<vmem>>, vector<1x1x4x128xbf16>
    %5 = vector.shape_cast %4 : vector<1x1x4x128xbf16> to vector<4x128xbf16>
    %cst_9 = arith.constant dense<0.000000e+00> : vector<16x128xf32>
    %6 = tpu.matmul %3, %5, %cst_9 {dimension_numbers = #tpu.dot_dimension_numbers<[1], [0], [0], [1], [0, 0, 1, 1], [], []>} : vector<16x4xbf16>, vector<4x128xbf16>, vector<16x128xf32> -> vector<16x128xf32>
    %7 = arith.addf %1, %6 : vector<16x128xf32>
    %c0_10 = arith.constant 0 : index
    %c0_11 = arith.constant 0 : index
    %c1 = arith.constant 1 : index
    %c0_12 = arith.constant 0 : index
    %8 = vector.load %arg3[%c0_10, %c0_11, %c1, %c0_12] : memref<1x1x18x4xbf16, #tpu.memory_space<vmem>>, vector<1x1x16x4xbf16>
    %9 = vector.shape_cast %8 : vector<1x1x16x4xbf16> to vector<16x4xbf16>
    %c0_13 = arith.constant 0 : index
    %c1_14 = arith.constant 1 : index
    %c0_15 = arith.constant 0 : index
    %c0_16 = arith.constant 0 : index
    %10 = vector.load %arg13[%c0_13, %c1_14, %c0_15, %c0_16] : memref<3x3x4x128xbf16, #tpu.memory_space<vmem>>, vector<1x1x4x128xbf16>
    %11 = vector.shape_cast %10 : vector<1x1x4x128xbf16> to vector<4x128xbf16>
    %cst_17 = arith.constant dense<0.000000e+00> : vector<16x128xf32>
    %12 = tpu.matmul %9, %11, %cst_17 {dimension_numbers = #tpu.dot_dimension_numbers<[1], [0], [0], [1], [0, 0, 1, 1], [], []>} : vector<16x4xbf16>, vector<4x128xbf16>, vector<16x128xf32> -> vector<16x128xf32>
    %13 = arith.addf %7, %12 : vector<16x128xf32>
    %c0_18 = arith.constant 0 : index
    %c0_19 = arith.constant 0 : index
    %c2 = arith.constant 2 : index
    %c0_20 = arith.constant 0 : index
    %14 = vector.load %arg3[%c0_18, %c0_19, %c2, %c0_20] : memref<1x1x18x4xbf16, #tpu.memory_space<vmem>>, vector<1x1x16x4xbf16>
    %15 = vector.shape_cast %14 : vector<1x1x16x4xbf16> to vector<16x4xbf16>
    %c0_21 = arith.constant 0 : index
    %c2_22 = arith.constant 2 : index
    %c0_23 = arith.constant 0 : index
    %c0_24 = arith.constant 0 : index
    %16 = vector.load %arg13[%c0_21, %c2_22, %c0_23, %c0_24] : memref<3x3x4x128xbf16, #tpu.memory_space<vmem>>, vector<1x1x4x128xbf16>
    %17 = vector.shape_cast %16 : vector<1x1x4x128xbf16> to vector<4x128xbf16>
    %cst_25 = arith.constant dense<0.000000e+00> : vector<16x128xf32>
    %18 = tpu.matmul %15, %17, %cst_25 {dimension_numbers = #tpu.dot_dimension_numbers<[1], [0], [0], [1], [0, 0, 1, 1], [], []>} : vector<16x4xbf16>, vector<4x128xbf16>, vector<16x128xf32> -> vector<16x128xf32>
    %19 = arith.addf %13, %18 : vector<16x128xf32>
    %c0_26 = arith.constant 0 : index
    %c0_27 = arith.constant 0 : index
    %c0_28 = arith.constant 0 : index
    %c0_29 = arith.constant 0 : index
    %20 = vector.load %arg4[%c0_26, %c0_27, %c0_28, %c0_29] : memref<1x1x18x4xbf16, #tpu.memory_space<vmem>>, vector<1x1x16x4xbf16>
    %21 = vector.shape_cast %20 : vector<1x1x16x4xbf16> to vector<16x4xbf16>
    %c1_30 = arith.constant 1 : index
    %c0_31 = arith.constant 0 : index
    %c0_32 = arith.constant 0 : index
    %c0_33 = arith.constant 0 : index
    %22 = vector.load %arg13[%c1_30, %c0_31, %c0_32, %c0_33] : memref<3x3x4x128xbf16, #tpu.memory_space<vmem>>, vector<1x1x4x128xbf16>
    %23 = vector.shape_cast %22 : vector<1x1x4x128xbf16> to vector<4x128xbf16>
    %cst_34 = arith.constant dense<0.000000e+00> : vector<16x128xf32>
    %24 = tpu.matmul %21, %23, %cst_34 {dimension_numbers = #tpu.dot_dimension_numbers<[1], [0], [0], [1], [0, 0, 1, 1], [], []>} : vector<16x4xbf16>, vector<4x128xbf16>, vector<16x128xf32> -> vector<16x128xf32>
    %25 = arith.addf %19, %24 : vector<16x128xf32>
    %c0_35 = arith.constant 0 : index
    %c0_36 = arith.constant 0 : index
    %c1_37 = arith.constant 1 : index
    %c0_38 = arith.constant 0 : index
    %26 = vector.load %arg4[%c0_35, %c0_36, %c1_37, %c0_38] : memref<1x1x18x4xbf16, #tpu.memory_space<vmem>>, vector<1x1x16x4xbf16>
    %27 = vector.shape_cast %26 : vector<1x1x16x4xbf16> to vector<16x4xbf16>
    %c1_39 = arith.constant 1 : index
    %c1_40 = arith.constant 1 : index
    %c0_41 = arith.constant 0 : index
    %c0_42 = arith.constant 0 : index
    %28 = vector.load %arg13[%c1_39, %c1_40, %c0_41, %c0_42] : memref<3x3x4x128xbf16, #tpu.memory_space<vmem>>, vector<1x1x4x128xbf16>
    %29 = vector.shape_cast %28 : vector<1x1x4x128xbf16> to vector<4x128xbf16>
    %cst_43 = arith.constant dense<0.000000e+00> : vector<16x128xf32>
    %30 = tpu.matmul %27, %29, %cst_43 {dimension_numbers = #tpu.dot_dimension_numbers<[1], [0], [0], [1], [0, 0, 1, 1], [], []>} : vector<16x4xbf16>, vector<4x128xbf16>, vector<16x128xf32> -> vector<16x128xf32>
    %31 = arith.addf %25, %30 : vector<16x128xf32>
    %c0_44 = arith.constant 0 : index
    %c0_45 = arith.constant 0 : index
    %c2_46 = arith.constant 2 : index
    %c0_47 = arith.constant 0 : index
    %32 = vector.load %arg4[%c0_44, %c0_45, %c2_46, %c0_47] : memref<1x1x18x4xbf16, #tpu.memory_space<vmem>>, vector<1x1x16x4xbf16>
    %33 = vector.shape_cast %32 : vector<1x1x16x4xbf16> to vector<16x4xbf16>
    %c1_48 = arith.constant 1 : index
    %c2_49 = arith.constant 2 : index
    %c0_50 = arith.constant 0 : index
    %c0_51 = arith.constant 0 : index
    %34 = vector.load %arg13[%c1_48, %c2_49, %c0_50, %c0_51] : memref<3x3x4x128xbf16, #tpu.memory_space<vmem>>, vector<1x1x4x128xbf16>
    %35 = vector.shape_cast %34 : vector<1x1x4x128xbf16> to vector<4x128xbf16>
    %cst_52 = arith.constant dense<0.000000e+00> : vector<16x128xf32>
    %36 = tpu.matmul %33, %35, %cst_52 {dimension_numbers = #tpu.dot_dimension_numbers<[1], [0], [0], [1], [0, 0, 1, 1], [], []>} : vector<16x4xbf16>, vector<4x128xbf16>, vector<16x128xf32> -> vector<16x128xf32>
    %37 = arith.addf %31, %36 : vector<16x128xf32>
    %c0_53 = arith.constant 0 : index
    %c0_54 = arith.constant 0 : index
    %c0_55 = arith.constant 0 : index
    %c0_56 = arith.constant 0 : index
    %38 = vector.load %arg5[%c0_53, %c0_54, %c0_55, %c0_56] : memref<1x1x18x4xbf16, #tpu.memory_space<vmem>>, vector<1x1x16x4xbf16>
    %39 = vector.shape_cast %38 : vector<1x1x16x4xbf16> to vector<16x4xbf16>
    %c2_57 = arith.constant 2 : index
    %c0_58 = arith.constant 0 : index
    %c0_59 = arith.constant 0 : index
    %c0_60 = arith.constant 0 : index
    %40 = vector.load %arg13[%c2_57, %c0_58, %c0_59, %c0_60] : memref<3x3x4x128xbf16, #tpu.memory_space<vmem>>, vector<1x1x4x128xbf16>
    %41 = vector.shape_cast %40 : vector<1x1x4x128xbf16> to vector<4x128xbf16>
    %cst_61 = arith.constant dense<0.000000e+00> : vector<16x128xf32>
    %42 = tpu.matmul %39, %41, %cst_61 {dimension_numbers = #tpu.dot_dimension_numbers<[1], [0], [0], [1], [0, 0, 1, 1], [], []>} : vector<16x4xbf16>, vector<4x128xbf16>, vector<16x128xf32> -> vector<16x128xf32>
    %43 = arith.addf %37, %42 : vector<16x128xf32>
    %c0_62 = arith.constant 0 : index
    %c0_63 = arith.constant 0 : index
    %c1_64 = arith.constant 1 : index
    %c0_65 = arith.constant 0 : index
    %44 = vector.load %arg5[%c0_62, %c0_63, %c1_64, %c0_65] : memref<1x1x18x4xbf16, #tpu.memory_space<vmem>>, vector<1x1x16x4xbf16>
    %45 = vector.shape_cast %44 : vector<1x1x16x4xbf16> to vector<16x4xbf16>
    %c2_66 = arith.constant 2 : index
    %c1_67 = arith.constant 1 : index
    %c0_68 = arith.constant 0 : index
    %c0_69 = arith.constant 0 : index
    %46 = vector.load %arg13[%c2_66, %c1_67, %c0_68, %c0_69] : memref<3x3x4x128xbf16, #tpu.memory_space<vmem>>, vector<1x1x4x128xbf16>
    %47 = vector.shape_cast %46 : vector<1x1x4x128xbf16> to vector<4x128xbf16>
    %cst_70 = arith.constant dense<0.000000e+00> : vector<16x128xf32>
    %48 = tpu.matmul %45, %47, %cst_70 {dimension_numbers = #tpu.dot_dimension_numbers<[1], [0], [0], [1], [0, 0, 1, 1], [], []>} : vector<16x4xbf16>, vector<4x128xbf16>, vector<16x128xf32> -> vector<16x128xf32>
    %49 = arith.addf %43, %48 : vector<16x128xf32>
    %c0_71 = arith.constant 0 : index
    %c0_72 = arith.constant 0 : index
    %c2_73 = arith.constant 2 : index
    %c0_74 = arith.constant 0 : index
    %50 = vector.load %arg5[%c0_71, %c0_72, %c2_73, %c0_74] : memref<1x1x18x4xbf16, #tpu.memory_space<vmem>>, vector<1x1x16x4xbf16>
    %51 = vector.shape_cast %50 : vector<1x1x16x4xbf16> to vector<16x4xbf16>
    %c2_75 = arith.constant 2 : index
    %c2_76 = arith.constant 2 : index
    %c0_77 = arith.constant 0 : index
    %c0_78 = arith.constant 0 : index
    %52 = vector.load %arg13[%c2_75, %c2_76, %c0_77, %c0_78] : memref<3x3x4x128xbf16, #tpu.memory_space<vmem>>, vector<1x1x4x128xbf16>
    %53 = vector.shape_cast %52 : vector<1x1x4x128xbf16> to vector<4x128xbf16>
    %cst_79 = arith.constant dense<0.000000e+00> : vector<16x128xf32>
    %54 = tpu.matmul %51, %53, %cst_79 {dimension_numbers = #tpu.dot_dimension_numbers<[1], [0], [0], [1], [0, 0, 1, 1], [], []>} : vector<16x4xbf16>, vector<4x128xbf16>, vector<16x128xf32> -> vector<16x128xf32>
    %55 = arith.addf %49, %54 : vector<16x128xf32>
    %56 = vector.broadcast %0 : vector<1x128xf32> to vector<16x128xf32>
    %57 = arith.addf %55, %56 : vector<16x128xf32>
    %cst_80 = arith.constant 0.000000e+00 : f32
    %58 = vector.broadcast %cst_80 : f32 to vector<16x128xf32>
    %59 = arith.maximumf %57, %58 : vector<16x128xf32>
    %c0_81 = arith.constant 0 : index
    %c0_82 = arith.constant 0 : index
    %c0_83 = arith.constant 0 : index
    %c0_84 = arith.constant 0 : index
    %60 = vector.load %arg15[%c0_81, %c0_82, %c0_83, %c0_84] : memref<1x8x16x128xf32, #tpu.memory_space<vmem>>, vector<1x1x16x128xf32>
    %61 = vector.shape_cast %60 : vector<1x1x16x128xf32> to vector<16x128xf32>
    %62 = vector.shape_cast %59 : vector<16x128xf32> to vector<1x1x16x128xf32>
    tpu.vector_store %arg15[%c0_81, %c0_82, %c0_83, %c0_84], %62 {strides = array<i32>} : memref<1x8x16x128xf32, #tpu.memory_space<vmem>>, vector<1x1x16x128xf32>,
    %cst_85 = arith.constant 0.000000e+00 : f32
    %63 = vector.broadcast %cst_85 : f32 to vector<16x128xf32>
    %c0_86 = arith.constant 0 : index
    %c0_87 = arith.constant 0 : index
    %c0_88 = arith.constant 0 : index
    %c0_89 = arith.constant 0 : index
    %64 = vector.load %arg4[%c0_86, %c0_87, %c0_88, %c0_89] : memref<1x1x18x4xbf16, #tpu.memory_space<vmem>>, vector<1x1x16x4xbf16>
    %65 = vector.shape_cast %64 : vector<1x1x16x4xbf16> to vector<16x4xbf16>
    %c0_90 = arith.constant 0 : index
    %c0_91 = arith.constant 0 : index
    %c0_92 = arith.constant 0 : index
    %c0_93 = arith.constant 0 : index
    %66 = vector.load %arg13[%c0_90, %c0_91, %c0_92, %c0_93] : memref<3x3x4x128xbf16, #tpu.memory_space<vmem>>, vector<1x1x4x128xbf16>
    %67 = vector.shape_cast %66 : vector<1x1x4x128xbf16> to vector<4x128xbf16>
    %cst_94 = arith.constant dense<0.000000e+00> : vector<16x128xf32>
    %68 = tpu.matmul %65, %67, %cst_94 {dimension_numbers = #tpu.dot_dimension_numbers<[1], [0], [0], [1], [0, 0, 1, 1], [], []>} : vector<16x4xbf16>, vector<4x128xbf16>, vector<16x128xf32> -> vector<16x128xf32>
    %69 = arith.addf %63, %68 : vector<16x128xf32>
    %c0_95 = arith.constant 0 : index
    %c0_96 = arith.constant 0 : index
    %c1_97 = arith.constant 1 : index
    %c0_98 = arith.constant 0 : index
    %70 = vector.load %arg4[%c0_95, %c0_96, %c1_97, %c0_98] : memref<1x1x18x4xbf16, #tpu.memory_space<vmem>>, vector<1x1x16x4xbf16>
    %71 = vector.shape_cast %70 : vector<1x1x16x4xbf16> to vector<16x4xbf16>
    %c0_99 = arith.constant 0 : index
    %c1_100 = arith.constant 1 : index
    %c0_101 = arith.constant 0 : index
    %c0_102 = arith.constant 0 : index
    %72 = vector.load %arg13[%c0_99, %c1_100, %c0_101, %c0_102] : memref<3x3x4x128xbf16, #tpu.memory_space<vmem>>, vector<1x1x4x128xbf16>
    %73 = vector.shape_cast %72 : vector<1x1x4x128xbf16> to vector<4x128xbf16>
    %cst_103 = arith.constant dense<0.000000e+00> : vector<16x128xf32>
    %74 = tpu.matmul %71, %73, %cst_103 {dimension_numbers = #tpu.dot_dimension_numbers<[1], [0], [0], [1], [0, 0, 1, 1], [], []>} : vector<16x4xbf16>, vector<4x128xbf16>, vector<16x128xf32> -> vector<16x128xf32>
    %75 = arith.addf %69, %74 : vector<16x128xf32>
    %c0_104 = arith.constant 0 : index
    %c0_105 = arith.constant 0 : index
    %c2_106 = arith.constant 2 : index
    %c0_107 = arith.constant 0 : index
    %76 = vector.load %arg4[%c0_104, %c0_105, %c2_106, %c0_107] : memref<1x1x18x4xbf16, #tpu.memory_space<vmem>>, vector<1x1x16x4xbf16>
    %77 = vector.shape_cast %76 : vector<1x1x16x4xbf16> to vector<16x4xbf16>
    %c0_108 = arith.constant 0 : index
    %c2_109 = arith.constant 2 : index
    %c0_110 = arith.constant 0 : index
    %c0_111 = arith.constant 0 : index
    %78 = vector.load %arg13[%c0_108, %c2_109, %c0_110, %c0_111] : memref<3x3x4x128xbf16, #tpu.memory_space<vmem>>, vector<1x1x4x128xbf16>
    %79 = vector.shape_cast %78 : vector<1x1x4x128xbf16> to vector<4x128xbf16>
    %cst_112 = arith.constant dense<0.000000e+00> : vector<16x128xf32>
    %80 = tpu.matmul %77, %79, %cst_112 {dimension_numbers = #tpu.dot_dimension_numbers<[1], [0], [0], [1], [0, 0, 1, 1], [], []>} : vector<16x4xbf16>, vector<4x128xbf16>, vector<16x128xf32> -> vector<16x128xf32>
    %81 = arith.addf %75, %80 : vector<16x128xf32>
    %c0_113 = arith.constant 0 : index
    %c0_114 = arith.constant 0 : index
    %c0_115 = arith.constant 0 : index
    %c0_116 = arith.constant 0 : index
    %82 = vector.load %arg5[%c0_113, %c0_114, %c0_115, %c0_116] : memref<1x1x18x4xbf16, #tpu.memory_space<vmem>>, vector<1x1x16x4xbf16>
    %83 = vector.shape_cast %82 : vector<1x1x16x4xbf16> to vector<16x4xbf16>
    %c1_117 = arith.constant 1 : index
    %c0_118 = arith.constant 0 : index
    %c0_119 = arith.constant 0 : index
    %c0_120 = arith.constant 0 : index
    %84 = vector.load %arg13[%c1_117, %c0_118, %c0_119, %c0_120] : memref<3x3x4x128xbf16, #tpu.memory_space<vmem>>, vector<1x1x4x128xbf16>
    %85 = vector.shape_cast %84 : vector<1x1x4x128xbf16> to vector<4x128xbf16>
    %cst_121 = arith.constant dense<0.000000e+00> : vector<16x128xf32>
    %86 = tpu.matmul %83, %85, %cst_121 {dimension_numbers = #tpu.dot_dimension_numbers<[1], [0], [0], [1], [0, 0, 1, 1], [], []>} : vector<16x4xbf16>, vector<4x128xbf16>, vector<16x128xf32> -> vector<16x128xf32>
    %87 = arith.addf %81, %86 : vector<16x128xf32>
    %c0_122 = arith.constant 0 : index
    %c0_123 = arith.constant 0 : index
    %c1_124 = arith.constant 1 : index
    %c0_125 = arith.constant 0 : index
    %88 = vector.load %arg5[%c0_122, %c0_123, %c1_124, %c0_125] : memref<1x1x18x4xbf16, #tpu.memory_space<vmem>>, vector<1x1x16x4xbf16>
    %89 = vector.shape_cast %88 : vector<1x1x16x4xbf16> to vector<16x4xbf16>
    %c1_126 = arith.constant 1 : index
    %c1_127 = arith.constant 1 : index
    %c0_128 = arith.constant 0 : index
    %c0_129 = arith.constant 0 : index
    %90 = vector.load %arg13[%c1_126, %c1_127, %c0_128, %c0_129] : memref<3x3x4x128xbf16, #tpu.memory_space<vmem>>, vector<1x1x4x128xbf16>
    %91 = vector.shape_cast %90 : vector<1x1x4x128xbf16> to vector<4x128xbf16>
    %cst_130 = arith.constant dense<0.000000e+00> : vector<16x128xf32>
    %92 = tpu.matmul %89, %91, %cst_130 {dimension_numbers = #tpu.dot_dimension_numbers<[1], [0], [0], [1], [0, 0, 1, 1], [], []>} : vector<16x4xbf16>, vector<4x128xbf16>, vector<16x128xf32> -> vector<16x128xf32>
    %93 = arith.addf %87, %92 : vector<16x128xf32>
    %c0_131 = arith.constant 0 : index
    %c0_132 = arith.constant 0 : index
    %c2_133 = arith.constant 2 : index
    %c0_134 = arith.constant 0 : index
    %94 = vector.load %arg5[%c0_131, %c0_132, %c2_133, %c0_134] : memref<1x1x18x4xbf16, #tpu.memory_space<vmem>>, vector<1x1x16x4xbf16>
    %95 = vector.shape_cast %94 : vector<1x1x16x4xbf16> to vector<16x4xbf16>
    %c1_135 = arith.constant 1 : index
    %c2_136 = arith.constant 2 : index
    %c0_137 = arith.constant 0 : index
    %c0_138 = arith.constant 0 : index
    %96 = vector.load %arg13[%c1_135, %c2_136, %c0_137, %c0_138] : memref<3x3x4x128xbf16, #tpu.memory_space<vmem>>, vector<1x1x4x128xbf16>
    %97 = vector.shape_cast %96 : vector<1x1x4x128xbf16> to vector<4x128xbf16>
    %cst_139 = arith.constant dense<0.000000e+00> : vector<16x128xf32>
    %98 = tpu.matmul %95, %97, %cst_139 {dimension_numbers = #tpu.dot_dimension_numbers<[1], [0], [0], [1], [0, 0, 1, 1], [], []>} : vector<16x4xbf16>, vector<4x128xbf16>, vector<16x128xf32> -> vector<16x128xf32>
    %99 = arith.addf %93, %98 : vector<16x128xf32>
    %c0_140 = arith.constant 0 : index
    %c0_141 = arith.constant 0 : index
    %c0_142 = arith.constant 0 : index
    %c0_143 = arith.constant 0 : index
    %100 = vector.load %arg6[%c0_140, %c0_141, %c0_142, %c0_143] : memref<1x1x18x4xbf16, #tpu.memory_space<vmem>>, vector<1x1x16x4xbf16>
    %101 = vector.shape_cast %100 : vector<1x1x16x4xbf16> to vector<16x4xbf16>
    %c2_144 = arith.constant 2 : index
    %c0_145 = arith.constant 0 : index
    %c0_146 = arith.constant 0 : index
    %c0_147 = arith.constant 0 : index
    %102 = vector.load %arg13[%c2_144, %c0_145, %c0_146, %c0_147] : memref<3x3x4x128xbf16, #tpu.memory_space<vmem>>, vector<1x1x4x128xbf16>
    %103 = vector.shape_cast %102 : vector<1x1x4x128xbf16> to vector<4x128xbf16>
    %cst_148 = arith.constant dense<0.000000e+00> : vector<16x128xf32>
    %104 = tpu.matmul %101, %103, %cst_148 {dimension_numbers = #tpu.dot_dimension_numbers<[1], [0], [0], [1], [0, 0, 1, 1], [], []>} : vector<16x4xbf16>, vector<4x128xbf16>, vector<16x128xf32> -> vector<16x128xf32>
    %105 = arith.addf %99, %104 : vector<16x128xf32>
    %c0_149 = arith.constant 0 : index
    %c0_150 = arith.constant 0 : index
    %c1_151 = arith.constant 1 : index
    %c0_152 = arith.constant 0 : index
    %106 = vector.load %arg6[%c0_149, %c0_150, %c1_151, %c0_152] : memref<1x1x18x4xbf16, #tpu.memory_space<vmem>>, vector<1x1x16x4xbf16>
    %107 = vector.shape_cast %106 : vector<1x1x16x4xbf16> to vector<16x4xbf16>
    %c2_153 = arith.constant 2 : index
    %c1_154 = arith.constant 1 : index
    %c0_155 = arith.constant 0 : index
    %c0_156 = arith.constant 0 : index
    %108 = vector.load %arg13[%c2_153, %c1_154, %c0_155, %c0_156] : memref<3x3x4x128xbf16, #tpu.memory_space<vmem>>, vector<1x1x4x128xbf16>
    %109 = vector.shape_cast %108 : vector<1x1x4x128xbf16> to vector<4x128xbf16>
    %cst_157 = arith.constant dense<0.000000e+00> : vector<16x128xf32>
    %110 = tpu.matmul %107, %109, %cst_157 {dimension_numbers = #tpu.dot_dimension_numbers<[1], [0], [0], [1], [0, 0, 1, 1], [], []>} : vector<16x4xbf16>, vector<4x128xbf16>, vector<16x128xf32> -> vector<16x128xf32>
    %111 = arith.addf %105, %110 : vector<16x128xf32>
    %c0_158 = arith.constant 0 : index
    %c0_159 = arith.constant 0 : index
    %c2_160 = arith.constant 2 : index
    %c0_161 = arith.constant 0 : index
    %112 = vector.load %arg6[%c0_158, %c0_159, %c2_160, %c0_161] : memref<1x1x18x4xbf16, #tpu.memory_space<vmem>>, vector<1x1x16x4xbf16>
    %113 = vector.shape_cast %112 : vector<1x1x16x4xbf16> to vector<16x4xbf16>
    %c2_162 = arith.constant 2 : index
    %c2_163 = arith.constant 2 : index
    %c0_164 = arith.constant 0 : index
    %c0_165 = arith.constant 0 : index
    %114 = vector.load %arg13[%c2_162, %c2_163, %c0_164, %c0_165] : memref<3x3x4x128xbf16, #tpu.memory_space<vmem>>, vector<1x1x4x128xbf16>
    %115 = vector.shape_cast %114 : vector<1x1x4x128xbf16> to vector<4x128xbf16>
    %cst_166 = arith.constant dense<0.000000e+00> : vector<16x128xf32>
    %116 = tpu.matmul %113, %115, %cst_166 {dimension_numbers = #tpu.dot_dimension_numbers<[1], [0], [0], [1], [0, 0, 1, 1], [], []>} : vector<16x4xbf16>, vector<4x128xbf16>, vector<16x128xf32> -> vector<16x128xf32>
    %117 = arith.addf %111, %116 : vector<16x128xf32>
    %118 = vector.broadcast %0 : vector<1x128xf32> to vector<16x128xf32>
    %119 = arith.addf %117, %118 : vector<16x128xf32>
    %cst_167 = arith.constant 0.000000e+00 : f32
    %120 = vector.broadcast %cst_167 : f32 to vector<16x128xf32>
    %121 = arith.maximumf %119, %120 : vector<16x128xf32>
    %c0_168 = arith.constant 0 : index
    %c1_169 = arith.constant 1 : index
    %c0_170 = arith.constant 0 : index
    %c0_171 = arith.constant 0 : index
    %122 = vector.load %arg15[%c0_168, %c1_169, %c0_170, %c0_171] : memref<1x8x16x128xf32, #tpu.memory_space<vmem>>, vector<1x1x16x128xf32>
    %123 = vector.shape_cast %122 : vector<1x1x16x128xf32> to vector<16x128xf32>
    %124 = vector.shape_cast %121 : vector<16x128xf32> to vector<1x1x16x128xf32>
    tpu.vector_store %arg15[%c0_168, %c1_169, %c0_170, %c0_171], %124 {strides = array<i32>} : memref<1x8x16x128xf32, #tpu.memory_space<vmem>>, vector<1x1x16x128xf32>,
    %cst_172 = arith.constant 0.000000e+00 : f32
    %125 = vector.broadcast %cst_172 : f32 to vector<16x128xf32>
    %c0_173 = arith.constant 0 : index
    %c0_174 = arith.constant 0 : index
    %c0_175 = arith.constant 0 : index
    %c0_176 = arith.constant 0 : index
    %126 = vector.load %arg5[%c0_173, %c0_174, %c0_175, %c0_176] : memref<1x1x18x4xbf16, #tpu.memory_space<vmem>>, vector<1x1x16x4xbf16>
    %127 = vector.shape_cast %126 : vector<1x1x16x4xbf16> to vector<16x4xbf16>
    %c0_177 = arith.constant 0 : index
    %c0_178 = arith.constant 0 : index
    %c0_179 = arith.constant 0 : index
    %c0_180 = arith.constant 0 : index
    %128 = vector.load %arg13[%c0_177, %c0_178, %c0_179, %c0_180] : memref<3x3x4x128xbf16, #tpu.memory_space<vmem>>, vector<1x1x4x128xbf16>
    %129 = vector.shape_cast %128 : vector<1x1x4x128xbf16> to vector<4x128xbf16>
    %cst_181 = arith.constant dense<0.000000e+00> : vector<16x128xf32>
    %130 = tpu.matmul %127, %129, %cst_181 {dimension_numbers = #tpu.dot_dimension_numbers<[1], [0], [0], [1], [0, 0, 1, 1], [], []>} : vector<16x4xbf16>, vector<4x128xbf16>, vector<16x128xf32> -> vector<16x128xf32>
    %131 = arith.addf %125, %130 : vector<16x128xf32>
    %c0_182 = arith.constant 0 : index
    %c0_183 = arith.constant 0 : index
    %c1_184 = arith.constant 1 : index
    %c0_185 = arith.constant 0 : index
    %132 = vector.load %arg5[%c0_182, %c0_183, %c1_184, %c0_185] : memref<1x1x18x4xbf16, #tpu.memory_space<vmem>>, vector<1x1x16x4xbf16>
    %133 = vector.shape_cast %132 : vector<1x1x16x4xbf16> to vector<16x4xbf16>
    %c0_186 = arith.constant 0 : index
    %c1_187 = arith.constant 1 : index
    %c0_188 = arith.constant 0 : index
    %c0_189 = arith.constant 0 : index
    %134 = vector.load %arg13[%c0_186, %c1_187, %c0_188, %c0_189] : memref<3x3x4x128xbf16, #tpu.memory_space<vmem>>, vector<1x1x4x128xbf16>
    %135 = vector.shape_cast %134 : vector<1x1x4x128xbf16> to vector<4x128xbf16>
    %cst_190 = arith.constant dense<0.000000e+00> : vector<16x128xf32>
    %136 = tpu.matmul %133, %135, %cst_190 {dimension_numbers = #tpu.dot_dimension_numbers<[1], [0], [0], [1], [0, 0, 1, 1], [], []>} : vector<16x4xbf16>, vector<4x128xbf16>, vector<16x128xf32> -> vector<16x128xf32>
    %137 = arith.addf %131, %136 : vector<16x128xf32>
    %c0_191 = arith.constant 0 : index
    %c0_192 = arith.constant 0 : index
    %c2_193 = arith.constant 2 : index
    %c0_194 = arith.constant 0 : index
    %138 = vector.load %arg5[%c0_191, %c0_192, %c2_193, %c0_194] : memref<1x1x18x4xbf16, #tpu.memory_space<vmem>>, vector<1x1x16x4xbf16>
    %139 = vector.shape_cast %138 : vector<1x1x16x4xbf16> to vector<16x4xbf16>
    %c0_195 = arith.constant 0 : index
    %c2_196 = arith.constant 2 : index
    %c0_197 = arith.constant 0 : index
    %c0_198 = arith.constant 0 : index
    %140 = vector.load %arg13[%c0_195, %c2_196, %c0_197, %c0_198] : memref<3x3x4x128xbf16, #tpu.memory_space<vmem>>, vector<1x1x4x128xbf16>
    %141 = vector.shape_cast %140 : vector<1x1x4x128xbf16> to vector<4x128xbf16>
    %cst_199 = arith.constant dense<0.000000e+00> : vector<16x128xf32>
    %142 = tpu.matmul %139, %141, %cst_199 {dimension_numbers = #tpu.dot_dimension_numbers<[1], [0], [0], [1], [0, 0, 1, 1], [], []>} : vector<16x4xbf16>, vector<4x128xbf16>, vector<16x128xf32> -> vector<16x128xf32>
    %143 = arith.addf %137, %142 : vector<16x128xf32>
    %c0_200 = arith.constant 0 : index
    %c0_201 = arith.constant 0 : index
    %c0_202 = arith.constant 0 : index
    %c0_203 = arith.constant 0 : index
    %144 = vector.load %arg6[%c0_200, %c0_201, %c0_202, %c0_203] : memref<1x1x18x4xbf16, #tpu.memory_space<vmem>>, vector<1x1x16x4xbf16>
    %145 = vector.shape_cast %144 : vector<1x1x16x4xbf16> to vector<16x4xbf16>
    %c1_204 = arith.constant 1 : index
    %c0_205 = arith.constant 0 : index
    %c0_206 = arith.constant 0 : index
    %c0_207 = arith.constant 0 : index
    %146 = vector.load %arg13[%c1_204, %c0_205, %c0_206, %c0_207] : memref<3x3x4x128xbf16, #tpu.memory_space<vmem>>, vector<1x1x4x128xbf16>
    %147 = vector.shape_cast %146 : vector<1x1x4x128xbf16> to vector<4x128xbf16>
    %cst_208 = arith.constant dense<0.000000e+00> : vector<16x128xf32>
    %148 = tpu.matmul %145, %147, %cst_208 {dimension_numbers = #tpu.dot_dimension_numbers<[1], [0], [0], [1], [0, 0, 1, 1], [], []>} : vector<16x4xbf16>, vector<4x128xbf16>, vector<16x128xf32> -> vector<16x128xf32>
    %149 = arith.addf %143, %148 : vector<16x128xf32>
    %c0_209 = arith.constant 0 : index
    %c0_210 = arith.constant 0 : index
    %c1_211 = arith.constant 1 : index
    %c0_212 = arith.constant 0 : index
    %150 = vector.load %arg6[%c0_209, %c0_210, %c1_211, %c0_212] : memref<1x1x18x4xbf16, #tpu.memory_space<vmem>>, vector<1x1x16x4xbf16>
    %151 = vector.shape_cast %150 : vector<1x1x16x4xbf16> to vector<16x4xbf16>
    %c1_213 = arith.constant 1 : index
    %c1_214 = arith.constant 1 : index
    %c0_215 = arith.constant 0 : index
    %c0_216 = arith.constant 0 : index
    %152 = vector.load %arg13[%c1_213, %c1_214, %c0_215, %c0_216] : memref<3x3x4x128xbf16, #tpu.memory_space<vmem>>, vector<1x1x4x128xbf16>
    %153 = vector.shape_cast %152 : vector<1x1x4x128xbf16> to vector<4x128xbf16>
    %cst_217 = arith.constant dense<0.000000e+00> : vector<16x128xf32>
    %154 = tpu.matmul %151, %153, %cst_217 {dimension_numbers = #tpu.dot_dimension_numbers<[1], [0], [0], [1], [0, 0, 1, 1], [], []>} : vector<16x4xbf16>, vector<4x128xbf16>, vector<16x128xf32> -> vector<16x128xf32>
    %155 = arith.addf %149, %154 : vector<16x128xf32>
    %c0_218 = arith.constant 0 : index
    %c0_219 = arith.constant 0 : index
    %c2_220 = arith.constant 2 : index
    %c0_221 = arith.constant 0 : index
    %156 = vector.load %arg6[%c0_218, %c0_219, %c2_220, %c0_221] : memref<1x1x18x4xbf16, #tpu.memory_space<vmem>>, vector<1x1x16x4xbf16>
    %157 = vector.shape_cast %156 : vector<1x1x16x4xbf16> to vector<16x4xbf16>
    %c1_222 = arith.constant 1 : index
    %c2_223 = arith.constant 2 : index
    %c0_224 = arith.constant 0 : index
    %c0_225 = arith.constant 0 : index
    %158 = vector.load %arg13[%c1_222, %c2_223, %c0_224, %c0_225] : memref<3x3x4x128xbf16, #tpu.memory_space<vmem>>, vector<1x1x4x128xbf16>
    %159 = vector.shape_cast %158 : vector<1x1x4x128xbf16> to vector<4x128xbf16>
    %cst_226 = arith.constant dense<0.000000e+00> : vector<16x128xf32>
    %160 = tpu.matmul %157, %159, %cst_226 {dimension_numbers = #tpu.dot_dimension_numbers<[1], [0], [0], [1], [0, 0, 1, 1], [], []>} : vector<16x4xbf16>, vector<4x128xbf16>, vector<16x128xf32> -> vector<16x128xf32>
    %161 = arith.addf %155, %160 : vector<16x128xf32>
    %c0_227 = arith.constant 0 : index
    %c0_228 = arith.constant 0 : index
    %c0_229 = arith.constant 0 : index
    %c0_230 = arith.constant 0 : index
    %162 = vector.load %arg7[%c0_227, %c0_228, %c0_229, %c0_230] : memref<1x1x18x4xbf16, #tpu.memory_space<vmem>>, vector<1x1x16x4xbf16>
    %163 = vector.shape_cast %162 : vector<1x1x16x4xbf16> to vector<16x4xbf16>
    %c2_231 = arith.constant 2 : index
    %c0_232 = arith.constant 0 : index
    %c0_233 = arith.constant 0 : index
    %c0_234 = arith.constant 0 : index
    %164 = vector.load %arg13[%c2_231, %c0_232, %c0_233, %c0_234] : memref<3x3x4x128xbf16, #tpu.memory_space<vmem>>, vector<1x1x4x128xbf16>
    %165 = vector.shape_cast %164 : vector<1x1x4x128xbf16> to vector<4x128xbf16>
    %cst_235 = arith.constant dense<0.000000e+00> : vector<16x128xf32>
    %166 = tpu.matmul %163, %165, %cst_235 {dimension_numbers = #tpu.dot_dimension_numbers<[1], [0], [0], [1], [0, 0, 1, 1], [], []>} : vector<16x4xbf16>, vector<4x128xbf16>, vector<16x128xf32> -> vector<16x128xf32>
    %167 = arith.addf %161, %166 : vector<16x128xf32>
    %c0_236 = arith.constant 0 : index
    %c0_237 = arith.constant 0 : index
    %c1_238 = arith.constant 1 : index
    %c0_239 = arith.constant 0 : index
    %168 = vector.load %arg7[%c0_236, %c0_237, %c1_238, %c0_239] : memref<1x1x18x4xbf16, #tpu.memory_space<vmem>>, vector<1x1x16x4xbf16>
    %169 = vector.shape_cast %168 : vector<1x1x16x4xbf16> to vector<16x4xbf16>
    %c2_240 = arith.constant 2 : index
    %c1_241 = arith.constant 1 : index
    %c0_242 = arith.constant 0 : index
    %c0_243 = arith.constant 0 : index
    %170 = vector.load %arg13[%c2_240, %c1_241, %c0_242, %c0_243] : memref<3x3x4x128xbf16, #tpu.memory_space<vmem>>, vector<1x1x4x128xbf16>
    %171 = vector.shape_cast %170 : vector<1x1x4x128xbf16> to vector<4x128xbf16>
    %cst_244 = arith.constant dense<0.000000e+00> : vector<16x128xf32>
    %172 = tpu.matmul %169, %171, %cst_244 {dimension_numbers = #tpu.dot_dimension_numbers<[1], [0], [0], [1], [0, 0, 1, 1], [], []>} : vector<16x4xbf16>, vector<4x128xbf16>, vector<16x128xf32> -> vector<16x128xf32>
    %173 = arith.addf %167, %172 : vector<16x128xf32>
    %c0_245 = arith.constant 0 : index
    %c0_246 = arith.constant 0 : index
    %c2_247 = arith.constant 2 : index
    %c0_248 = arith.constant 0 : index
    %174 = vector.load %arg7[%c0_245, %c0_246, %c2_247, %c0_248] : memref<1x1x18x4xbf16, #tpu.memory_space<vmem>>, vector<1x1x16x4xbf16>
    %175 = vector.shape_cast %174 : vector<1x1x16x4xbf16> to vector<16x4xbf16>
    %c2_249 = arith.constant 2 : index
    %c2_250 = arith.constant 2 : index
    %c0_251 = arith.constant 0 : index
    %c0_252 = arith.constant 0 : index
    %176 = vector.load %arg13[%c2_249, %c2_250, %c0_251, %c0_252] : memref<3x3x4x128xbf16, #tpu.memory_space<vmem>>, vector<1x1x4x128xbf16>
    %177 = vector.shape_cast %176 : vector<1x1x4x128xbf16> to vector<4x128xbf16>
    %cst_253 = arith.constant dense<0.000000e+00> : vector<16x128xf32>
    %178 = tpu.matmul %175, %177, %cst_253 {dimension_numbers = #tpu.dot_dimension_numbers<[1], [0], [0], [1], [0, 0, 1, 1], [], []>} : vector<16x4xbf16>, vector<4x128xbf16>, vector<16x128xf32> -> vector<16x128xf32>
    %179 = arith.addf %173, %178 : vector<16x128xf32>
    %180 = vector.broadcast %0 : vector<1x128xf32> to vector<16x128xf32>
    %181 = arith.addf %179, %180 : vector<16x128xf32>
    %cst_254 = arith.constant 0.000000e+00 : f32
    %182 = vector.broadcast %cst_254 : f32 to vector<16x128xf32>
    %183 = arith.maximumf %181, %182 : vector<16x128xf32>
    %c0_255 = arith.constant 0 : index
    %c2_256 = arith.constant 2 : index
    %c0_257 = arith.constant 0 : index
    %c0_258 = arith.constant 0 : index
    %184 = vector.load %arg15[%c0_255, %c2_256, %c0_257, %c0_258] : memref<1x8x16x128xf32, #tpu.memory_space<vmem>>, vector<1x1x16x128xf32>
    %185 = vector.shape_cast %184 : vector<1x1x16x128xf32> to vector<16x128xf32>
    %186 = vector.shape_cast %183 : vector<16x128xf32> to vector<1x1x16x128xf32>
    tpu.vector_store %arg15[%c0_255, %c2_256, %c0_257, %c0_258], %186 {strides = array<i32>} : memref<1x8x16x128xf32, #tpu.memory_space<vmem>>, vector<1x1x16x128xf32>,
    %cst_259 = arith.constant 0.000000e+00 : f32
    %187 = vector.broadcast %cst_259 : f32 to vector<16x128xf32>
    %c0_260 = arith.constant 0 : index
    %c0_261 = arith.constant 0 : index
    %c0_262 = arith.constant 0 : index
    %c0_263 = arith.constant 0 : index
    %188 = vector.load %arg6[%c0_260, %c0_261, %c0_262, %c0_263] : memref<1x1x18x4xbf16, #tpu.memory_space<vmem>>, vector<1x1x16x4xbf16>
    %189 = vector.shape_cast %188 : vector<1x1x16x4xbf16> to vector<16x4xbf16>
    %c0_264 = arith.constant 0 : index
    %c0_265 = arith.constant 0 : index
    %c0_266 = arith.constant 0 : index
    %c0_267 = arith.constant 0 : index
    %190 = vector.load %arg13[%c0_264, %c0_265, %c0_266, %c0_267] : memref<3x3x4x128xbf16, #tpu.memory_space<vmem>>, vector<1x1x4x128xbf16>
    %191 = vector.shape_cast %190 : vector<1x1x4x128xbf16> to vector<4x128xbf16>
    %cst_268 = arith.constant dense<0.000000e+00> : vector<16x128xf32>
    %192 = tpu.matmul %189, %191, %cst_268 {dimension_numbers = #tpu.dot_dimension_numbers<[1], [0], [0], [1], [0, 0, 1, 1], [], []>} : vector<16x4xbf16>, vector<4x128xbf16>, vector<16x128xf32> -> vector<16x128xf32>
    %193 = arith.addf %187, %192 : vector<16x128xf32>
    %c0_269 = arith.constant 0 : index
    %c0_270 = arith.constant 0 : index
    %c1_271 = arith.constant 1 : index
    %c0_272 = arith.constant 0 : index
    %194 = vector.load %arg6[%c0_269, %c0_270, %c1_271, %c0_272] : memref<1x1x18x4xbf16, #tpu.memory_space<vmem>>, vector<1x1x16x4xbf16>
    %195 = vector.shape_cast %194 : vector<1x1x16x4xbf16> to vector<16x4xbf16>
    %c0_273 = arith.constant 0 : index
    %c1_274 = arith.constant 1 : index
    %c0_275 = arith.constant 0 : index
    %c0_276 = arith.constant 0 : index
    %196 = vector.load %arg13[%c0_273, %c1_274, %c0_275, %c0_276] : memref<3x3x4x128xbf16, #tpu.memory_space<vmem>>, vector<1x1x4x128xbf16>
    %197 = vector.shape_cast %196 : vector<1x1x4x128xbf16> to vector<4x128xbf16>
    %cst_277 = arith.constant dense<0.000000e+00> : vector<16x128xf32>
    %198 = tpu.matmul %195, %197, %cst_277 {dimension_numbers = #tpu.dot_dimension_numbers<[1], [0], [0], [1], [0, 0, 1, 1], [], []>} : vector<16x4xbf16>, vector<4x128xbf16>, vector<16x128xf32> -> vector<16x128xf32>
    %199 = arith.addf %193, %198 : vector<16x128xf32>
    %c0_278 = arith.constant 0 : index
    %c0_279 = arith.constant 0 : index
    %c2_280 = arith.constant 2 : index
    %c0_281 = arith.constant 0 : index
    %200 = vector.load %arg6[%c0_278, %c0_279, %c2_280, %c0_281] : memref<1x1x18x4xbf16, #tpu.memory_space<vmem>>, vector<1x1x16x4xbf16>
    %201 = vector.shape_cast %200 : vector<1x1x16x4xbf16> to vector<16x4xbf16>
    %c0_282 = arith.constant 0 : index
    %c2_283 = arith.constant 2 : index
    %c0_284 = arith.constant 0 : index
    %c0_285 = arith.constant 0 : index
    %202 = vector.load %arg13[%c0_282, %c2_283, %c0_284, %c0_285] : memref<3x3x4x128xbf16, #tpu.memory_space<vmem>>, vector<1x1x4x128xbf16>
    %203 = vector.shape_cast %202 : vector<1x1x4x128xbf16> to vector<4x128xbf16>
    %cst_286 = arith.constant dense<0.000000e+00> : vector<16x128xf32>
    %204 = tpu.matmul %201, %203, %cst_286 {dimension_numbers = #tpu.dot_dimension_numbers<[1], [0], [0], [1], [0, 0, 1, 1], [], []>} : vector<16x4xbf16>, vector<4x128xbf16>, vector<16x128xf32> -> vector<16x128xf32>
    %205 = arith.addf %199, %204 : vector<16x128xf32>
    %c0_287 = arith.constant 0 : index
    %c0_288 = arith.constant 0 : index
    %c0_289 = arith.constant 0 : index
    %c0_290 = arith.constant 0 : index
    %206 = vector.load %arg7[%c0_287, %c0_288, %c0_289, %c0_290] : memref<1x1x18x4xbf16, #tpu.memory_space<vmem>>, vector<1x1x16x4xbf16>
    %207 = vector.shape_cast %206 : vector<1x1x16x4xbf16> to vector<16x4xbf16>
    %c1_291 = arith.constant 1 : index
    %c0_292 = arith.constant 0 : index
    %c0_293 = arith.constant 0 : index
    %c0_294 = arith.constant 0 : index
    %208 = vector.load %arg13[%c1_291, %c0_292, %c0_293, %c0_294] : memref<3x3x4x128xbf16, #tpu.memory_space<vmem>>, vector<1x1x4x128xbf16>
    %209 = vector.shape_cast %208 : vector<1x1x4x128xbf16> to vector<4x128xbf16>
    %cst_295 = arith.constant dense<0.000000e+00> : vector<16x128xf32>
    %210 = tpu.matmul %207, %209, %cst_295 {dimension_numbers = #tpu.dot_dimension_numbers<[1], [0], [0], [1], [0, 0, 1, 1], [], []>} : vector<16x4xbf16>, vector<4x128xbf16>, vector<16x128xf32> -> vector<16x128xf32>
    %211 = arith.addf %205, %210 : vector<16x128xf32>
    %c0_296 = arith.constant 0 : index
    %c0_297 = arith.constant 0 : index
    %c1_298 = arith.constant 1 : index
    %c0_299 = arith.constant 0 : index
    %212 = vector.load %arg7[%c0_296, %c0_297, %c1_298, %c0_299] : memref<1x1x18x4xbf16, #tpu.memory_space<vmem>>, vector<1x1x16x4xbf16>
    %213 = vector.shape_cast %212 : vector<1x1x16x4xbf16> to vector<16x4xbf16>
    %c1_300 = arith.constant 1 : index
    %c1_301 = arith.constant 1 : index
    %c0_302 = arith.constant 0 : index
    %c0_303 = arith.constant 0 : index
    %214 = vector.load %arg13[%c1_300, %c1_301, %c0_302, %c0_303] : memref<3x3x4x128xbf16, #tpu.memory_space<vmem>>, vector<1x1x4x128xbf16>
    %215 = vector.shape_cast %214 : vector<1x1x4x128xbf16> to vector<4x128xbf16>
    %cst_304 = arith.constant dense<0.000000e+00> : vector<16x128xf32>
    %216 = tpu.matmul %213, %215, %cst_304 {dimension_numbers = #tpu.dot_dimension_numbers<[1], [0], [0], [1], [0, 0, 1, 1], [], []>} : vector<16x4xbf16>, vector<4x128xbf16>, vector<16x128xf32> -> vector<16x128xf32>
    %217 = arith.addf %211, %216 : vector<16x128xf32>
    %c0_305 = arith.constant 0 : index
    %c0_306 = arith.constant 0 : index
    %c2_307 = arith.constant 2 : index
    %c0_308 = arith.constant 0 : index
    %218 = vector.load %arg7[%c0_305, %c0_306, %c2_307, %c0_308] : memref<1x1x18x4xbf16, #tpu.memory_space<vmem>>, vector<1x1x16x4xbf16>
    %219 = vector.shape_cast %218 : vector<1x1x16x4xbf16> to vector<16x4xbf16>
    %c1_309 = arith.constant 1 : index
    %c2_310 = arith.constant 2 : index
    %c0_311 = arith.constant 0 : index
    %c0_312 = arith.constant 0 : index
    %220 = vector.load %arg13[%c1_309, %c2_310, %c0_311, %c0_312] : memref<3x3x4x128xbf16, #tpu.memory_space<vmem>>, vector<1x1x4x128xbf16>
    %221 = vector.shape_cast %220 : vector<1x1x4x128xbf16> to vector<4x128xbf16>
    %cst_313 = arith.constant dense<0.000000e+00> : vector<16x128xf32>
    %222 = tpu.matmul %219, %221, %cst_313 {dimension_numbers = #tpu.dot_dimension_numbers<[1], [0], [0], [1], [0, 0, 1, 1], [], []>} : vector<16x4xbf16>, vector<4x128xbf16>, vector<16x128xf32> -> vector<16x128xf32>
    %223 = arith.addf %217, %222 : vector<16x128xf32>
    %c0_314 = arith.constant 0 : index
    %c0_315 = arith.constant 0 : index
    %c0_316 = arith.constant 0 : index
    %c0_317 = arith.constant 0 : index
    %224 = vector.load %arg8[%c0_314, %c0_315, %c0_316, %c0_317] : memref<1x1x18x4xbf16, #tpu.memory_space<vmem>>, vector<1x1x16x4xbf16>
    %225 = vector.shape_cast %224 : vector<1x1x16x4xbf16> to vector<16x4xbf16>
    %c2_318 = arith.constant 2 : index
    %c0_319 = arith.constant 0 : index
    %c0_320 = arith.constant 0 : index
    %c0_321 = arith.constant 0 : index
    %226 = vector.load %arg13[%c2_318, %c0_319, %c0_320, %c0_321] : memref<3x3x4x128xbf16, #tpu.memory_space<vmem>>, vector<1x1x4x128xbf16>
    %227 = vector.shape_cast %226 : vector<1x1x4x128xbf16> to vector<4x128xbf16>
    %cst_322 = arith.constant dense<0.000000e+00> : vector<16x128xf32>
    %228 = tpu.matmul %225, %227, %cst_322 {dimension_numbers = #tpu.dot_dimension_numbers<[1], [0], [0], [1], [0, 0, 1, 1], [], []>} : vector<16x4xbf16>, vector<4x128xbf16>, vector<16x128xf32> -> vector<16x128xf32>
    %229 = arith.addf %223, %228 : vector<16x128xf32>
    %c0_323 = arith.constant 0 : index
    %c0_324 = arith.constant 0 : index
    %c1_325 = arith.constant 1 : index
    %c0_326 = arith.constant 0 : index
    %230 = vector.load %arg8[%c0_323, %c0_324, %c1_325, %c0_326] : memref<1x1x18x4xbf16, #tpu.memory_space<vmem>>, vector<1x1x16x4xbf16>
    %231 = vector.shape_cast %230 : vector<1x1x16x4xbf16> to vector<16x4xbf16>
    %c2_327 = arith.constant 2 : index
    %c1_328 = arith.constant 1 : index
    %c0_329 = arith.constant 0 : index
    %c0_330 = arith.constant 0 : index
    %232 = vector.load %arg13[%c2_327, %c1_328, %c0_329, %c0_330] : memref<3x3x4x128xbf16, #tpu.memory_space<vmem>>, vector<1x1x4x128xbf16>
    %233 = vector.shape_cast %232 : vector<1x1x4x128xbf16> to vector<4x128xbf16>
    %cst_331 = arith.constant dense<0.000000e+00> : vector<16x128xf32>
    %234 = tpu.matmul %231, %233, %cst_331 {dimension_numbers = #tpu.dot_dimension_numbers<[1], [0], [0], [1], [0, 0, 1, 1], [], []>} : vector<16x4xbf16>, vector<4x128xbf16>, vector<16x128xf32> -> vector<16x128xf32>
    %235 = arith.addf %229, %234 : vector<16x128xf32>
    %c0_332 = arith.constant 0 : index
    %c0_333 = arith.constant 0 : index
    %c2_334 = arith.constant 2 : index
    %c0_335 = arith.constant 0 : index
    %236 = vector.load %arg8[%c0_332, %c0_333, %c2_334, %c0_335] : memref<1x1x18x4xbf16, #tpu.memory_space<vmem>>, vector<1x1x16x4xbf16>
    %237 = vector.shape_cast %236 : vector<1x1x16x4xbf16> to vector<16x4xbf16>
    %c2_336 = arith.constant 2 : index
    %c2_337 = arith.constant 2 : index
    %c0_338 = arith.constant 0 : index
    %c0_339 = arith.constant 0 : index
    %238 = vector.load %arg13[%c2_336, %c2_337, %c0_338, %c0_339] : memref<3x3x4x128xbf16, #tpu.memory_space<vmem>>, vector<1x1x4x128xbf16>
    %239 = vector.shape_cast %238 : vector<1x1x4x128xbf16> to vector<4x128xbf16>
    %cst_340 = arith.constant dense<0.000000e+00> : vector<16x128xf32>
    %240 = tpu.matmul %237, %239, %cst_340 {dimension_numbers = #tpu.dot_dimension_numbers<[1], [0], [0], [1], [0, 0, 1, 1], [], []>} : vector<16x4xbf16>, vector<4x128xbf16>, vector<16x128xf32> -> vector<16x128xf32>
    %241 = arith.addf %235, %240 : vector<16x128xf32>
    %242 = vector.broadcast %0 : vector<1x128xf32> to vector<16x128xf32>
    %243 = arith.addf %241, %242 : vector<16x128xf32>
    %cst_341 = arith.constant 0.000000e+00 : f32
    %244 = vector.broadcast %cst_341 : f32 to vector<16x128xf32>
    %245 = arith.maximumf %243, %244 : vector<16x128xf32>
    %c0_342 = arith.constant 0 : index
    %c3 = arith.constant 3 : index
    %c0_343 = arith.constant 0 : index
    %c0_344 = arith.constant 0 : index
    %246 = vector.load %arg15[%c0_342, %c3, %c0_343, %c0_344] : memref<1x8x16x128xf32, #tpu.memory_space<vmem>>, vector<1x1x16x128xf32>
    %247 = vector.shape_cast %246 : vector<1x1x16x128xf32> to vector<16x128xf32>
    %248 = vector.shape_cast %245 : vector<16x128xf32> to vector<1x1x16x128xf32>
    tpu.vector_store %arg15[%c0_342, %c3, %c0_343, %c0_344], %248 {strides = array<i32>} : memref<1x8x16x128xf32, #tpu.memory_space<vmem>>, vector<1x1x16x128xf32>,
    %cst_345 = arith.constant 0.000000e+00 : f32
    %249 = vector.broadcast %cst_345 : f32 to vector<16x128xf32>
    %c0_346 = arith.constant 0 : index
    %c0_347 = arith.constant 0 : index
    %c0_348 = arith.constant 0 : index
    %c0_349 = arith.constant 0 : index
    %250 = vector.load %arg7[%c0_346, %c0_347, %c0_348, %c0_349] : memref<1x1x18x4xbf16, #tpu.memory_space<vmem>>, vector<1x1x16x4xbf16>
    %251 = vector.shape_cast %250 : vector<1x1x16x4xbf16> to vector<16x4xbf16>
    %c0_350 = arith.constant 0 : index
    %c0_351 = arith.constant 0 : index
    %c0_352 = arith.constant 0 : index
    %c0_353 = arith.constant 0 : index
    %252 = vector.load %arg13[%c0_350, %c0_351, %c0_352, %c0_353] : memref<3x3x4x128xbf16, #tpu.memory_space<vmem>>, vector<1x1x4x128xbf16>
    %253 = vector.shape_cast %252 : vector<1x1x4x128xbf16> to vector<4x128xbf16>
    %cst_354 = arith.constant dense<0.000000e+00> : vector<16x128xf32>
    %254 = tpu.matmul %251, %253, %cst_354 {dimension_numbers = #tpu.dot_dimension_numbers<[1], [0], [0], [1], [0, 0, 1, 1], [], []>} : vector<16x4xbf16>, vector<4x128xbf16>, vector<16x128xf32> -> vector<16x128xf32>
    %255 = arith.addf %249, %254 : vector<16x128xf32>
    %c0_355 = arith.constant 0 : index
    %c0_356 = arith.constant 0 : index
    %c1_357 = arith.constant 1 : index
    %c0_358 = arith.constant 0 : index
    %256 = vector.load %arg7[%c0_355, %c0_356, %c1_357, %c0_358] : memref<1x1x18x4xbf16, #tpu.memory_space<vmem>>, vector<1x1x16x4xbf16>
    %257 = vector.shape_cast %256 : vector<1x1x16x4xbf16> to vector<16x4xbf16>
    %c0_359 = arith.constant 0 : index
    %c1_360 = arith.constant 1 : index
    %c0_361 = arith.constant 0 : index
    %c0_362 = arith.constant 0 : index
    %258 = vector.load %arg13[%c0_359, %c1_360, %c0_361, %c0_362] : memref<3x3x4x128xbf16, #tpu.memory_space<vmem>>, vector<1x1x4x128xbf16>
    %259 = vector.shape_cast %258 : vector<1x1x4x128xbf16> to vector<4x128xbf16>
    %cst_363 = arith.constant dense<0.000000e+00> : vector<16x128xf32>
    %260 = tpu.matmul %257, %259, %cst_363 {dimension_numbers = #tpu.dot_dimension_numbers<[1], [0], [0], [1], [0, 0, 1, 1], [], []>} : vector<16x4xbf16>, vector<4x128xbf16>, vector<16x128xf32> -> vector<16x128xf32>
    %261 = arith.addf %255, %260 : vector<16x128xf32>
    %c0_364 = arith.constant 0 : index
    %c0_365 = arith.constant 0 : index
    %c2_366 = arith.constant 2 : index
    %c0_367 = arith.constant 0 : index
    %262 = vector.load %arg7[%c0_364, %c0_365, %c2_366, %c0_367] : memref<1x1x18x4xbf16, #tpu.memory_space<vmem>>, vector<1x1x16x4xbf16>
    %263 = vector.shape_cast %262 : vector<1x1x16x4xbf16> to vector<16x4xbf16>
    %c0_368 = arith.constant 0 : index
    %c2_369 = arith.constant 2 : index
    %c0_370 = arith.constant 0 : index
    %c0_371 = arith.constant 0 : index
    %264 = vector.load %arg13[%c0_368, %c2_369, %c0_370, %c0_371] : memref<3x3x4x128xbf16, #tpu.memory_space<vmem>>, vector<1x1x4x128xbf16>
    %265 = vector.shape_cast %264 : vector<1x1x4x128xbf16> to vector<4x128xbf16>
    %cst_372 = arith.constant dense<0.000000e+00> : vector<16x128xf32>
    %266 = tpu.matmul %263, %265, %cst_372 {dimension_numbers = #tpu.dot_dimension_numbers<[1], [0], [0], [1], [0, 0, 1, 1], [], []>} : vector<16x4xbf16>, vector<4x128xbf16>, vector<16x128xf32> -> vector<16x128xf32>
    %267 = arith.addf %261, %266 : vector<16x128xf32>
    %c0_373 = arith.constant 0 : index
    %c0_374 = arith.constant 0 : index
    %c0_375 = arith.constant 0 : index
    %c0_376 = arith.constant 0 : index
    %268 = vector.load %arg8[%c0_373, %c0_374, %c0_375, %c0_376] : memref<1x1x18x4xbf16, #tpu.memory_space<vmem>>, vector<1x1x16x4xbf16>
    %269 = vector.shape_cast %268 : vector<1x1x16x4xbf16> to vector<16x4xbf16>
    %c1_377 = arith.constant 1 : index
    %c0_378 = arith.constant 0 : index
    %c0_379 = arith.constant 0 : index
    %c0_380 = arith.constant 0 : index
    %270 = vector.load %arg13[%c1_377, %c0_378, %c0_379, %c0_380] : memref<3x3x4x128xbf16, #tpu.memory_space<vmem>>, vector<1x1x4x128xbf16>
    %271 = vector.shape_cast %270 : vector<1x1x4x128xbf16> to vector<4x128xbf16>
    %cst_381 = arith.constant dense<0.000000e+00> : vector<16x128xf32>
    %272 = tpu.matmul %269, %271, %cst_381 {dimension_numbers = #tpu.dot_dimension_numbers<[1], [0], [0], [1], [0, 0, 1, 1], [], []>} : vector<16x4xbf16>, vector<4x128xbf16>, vector<16x128xf32> -> vector<16x128xf32>
    %273 = arith.addf %267, %272 : vector<16x128xf32>
    %c0_382 = arith.constant 0 : index
    %c0_383 = arith.constant 0 : index
    %c1_384 = arith.constant 1 : index
    %c0_385 = arith.constant 0 : index
    %274 = vector.load %arg8[%c0_382, %c0_383, %c1_384, %c0_385] : memref<1x1x18x4xbf16, #tpu.memory_space<vmem>>, vector<1x1x16x4xbf16>
    %275 = vector.shape_cast %274 : vector<1x1x16x4xbf16> to vector<16x4xbf16>
    %c1_386 = arith.constant 1 : index
    %c1_387 = arith.constant 1 : index
    %c0_388 = arith.constant 0 : index
    %c0_389 = arith.constant 0 : index
    %276 = vector.load %arg13[%c1_386, %c1_387, %c0_388, %c0_389] : memref<3x3x4x128xbf16, #tpu.memory_space<vmem>>, vector<1x1x4x128xbf16>
    %277 = vector.shape_cast %276 : vector<1x1x4x128xbf16> to vector<4x128xbf16>
    %cst_390 = arith.constant dense<0.000000e+00> : vector<16x128xf32>
    %278 = tpu.matmul %275, %277, %cst_390 {dimension_numbers = #tpu.dot_dimension_numbers<[1], [0], [0], [1], [0, 0, 1, 1], [], []>} : vector<16x4xbf16>, vector<4x128xbf16>, vector<16x128xf32> -> vector<16x128xf32>
    %279 = arith.addf %273, %278 : vector<16x128xf32>
    %c0_391 = arith.constant 0 : index
    %c0_392 = arith.constant 0 : index
    %c2_393 = arith.constant 2 : index
    %c0_394 = arith.constant 0 : index
    %280 = vector.load %arg8[%c0_391, %c0_392, %c2_393, %c0_394] : memref<1x1x18x4xbf16, #tpu.memory_space<vmem>>, vector<1x1x16x4xbf16>
    %281 = vector.shape_cast %280 : vector<1x1x16x4xbf16> to vector<16x4xbf16>
    %c1_395 = arith.constant 1 : index
    %c2_396 = arith.constant 2 : index
    %c0_397 = arith.constant 0 : index
    %c0_398 = arith.constant 0 : index
    %282 = vector.load %arg13[%c1_395, %c2_396, %c0_397, %c0_398] : memref<3x3x4x128xbf16, #tpu.memory_space<vmem>>, vector<1x1x4x128xbf16>
    %283 = vector.shape_cast %282 : vector<1x1x4x128xbf16> to vector<4x128xbf16>
    %cst_399 = arith.constant dense<0.000000e+00> : vector<16x128xf32>
    %284 = tpu.matmul %281, %283, %cst_399 {dimension_numbers = #tpu.dot_dimension_numbers<[1], [0], [0], [1], [0, 0, 1, 1], [], []>} : vector<16x4xbf16>, vector<4x128xbf16>, vector<16x128xf32> -> vector<16x128xf32>
    %285 = arith.addf %279, %284 : vector<16x128xf32>
    %c0_400 = arith.constant 0 : index
    %c0_401 = arith.constant 0 : index
    %c0_402 = arith.constant 0 : index
    %c0_403 = arith.constant 0 : index
    %286 = vector.load %arg9[%c0_400, %c0_401, %c0_402, %c0_403] : memref<1x1x18x4xbf16, #tpu.memory_space<vmem>>, vector<1x1x16x4xbf16>
    %287 = vector.shape_cast %286 : vector<1x1x16x4xbf16> to vector<16x4xbf16>
    %c2_404 = arith.constant 2 : index
    %c0_405 = arith.constant 0 : index
    %c0_406 = arith.constant 0 : index
    %c0_407 = arith.constant 0 : index
    %288 = vector.load %arg13[%c2_404, %c0_405, %c0_406, %c0_407] : memref<3x3x4x128xbf16, #tpu.memory_space<vmem>>, vector<1x1x4x128xbf16>
    %289 = vector.shape_cast %288 : vector<1x1x4x128xbf16> to vector<4x128xbf16>
    %cst_408 = arith.constant dense<0.000000e+00> : vector<16x128xf32>
    %290 = tpu.matmul %287, %289, %cst_408 {dimension_numbers = #tpu.dot_dimension_numbers<[1], [0], [0], [1], [0, 0, 1, 1], [], []>} : vector<16x4xbf16>, vector<4x128xbf16>, vector<16x128xf32> -> vector<16x128xf32>
    %291 = arith.addf %285, %290 : vector<16x128xf32>
    %c0_409 = arith.constant 0 : index
    %c0_410 = arith.constant 0 : index
    %c1_411 = arith.constant 1 : index
    %c0_412 = arith.constant 0 : index
    %292 = vector.load %arg9[%c0_409, %c0_410, %c1_411, %c0_412] : memref<1x1x18x4xbf16, #tpu.memory_space<vmem>>, vector<1x1x16x4xbf16>
    %293 = vector.shape_cast %292 : vector<1x1x16x4xbf16> to vector<16x4xbf16>
    %c2_413 = arith.constant 2 : index
    %c1_414 = arith.constant 1 : index
    %c0_415 = arith.constant 0 : index
    %c0_416 = arith.constant 0 : index
    %294 = vector.load %arg13[%c2_413, %c1_414, %c0_415, %c0_416] : memref<3x3x4x128xbf16, #tpu.memory_space<vmem>>, vector<1x1x4x128xbf16>
    %295 = vector.shape_cast %294 : vector<1x1x4x128xbf16> to vector<4x128xbf16>
    %cst_417 = arith.constant dense<0.000000e+00> : vector<16x128xf32>
    %296 = tpu.matmul %293, %295, %cst_417 {dimension_numbers = #tpu.dot_dimension_numbers<[1], [0], [0], [1], [0, 0, 1, 1], [], []>} : vector<16x4xbf16>, vector<4x128xbf16>, vector<16x128xf32> -> vector<16x128xf32>
    %297 = arith.addf %291, %296 : vector<16x128xf32>
    %c0_418 = arith.constant 0 : index
    %c0_419 = arith.constant 0 : index
    %c2_420 = arith.constant 2 : index
    %c0_421 = arith.constant 0 : index
    %298 = vector.load %arg9[%c0_418, %c0_419, %c2_420, %c0_421] : memref<1x1x18x4xbf16, #tpu.memory_space<vmem>>, vector<1x1x16x4xbf16>
    %299 = vector.shape_cast %298 : vector<1x1x16x4xbf16> to vector<16x4xbf16>
    %c2_422 = arith.constant 2 : index
    %c2_423 = arith.constant 2 : index
    %c0_424 = arith.constant 0 : index
    %c0_425 = arith.constant 0 : index
    %300 = vector.load %arg13[%c2_422, %c2_423, %c0_424, %c0_425] : memref<3x3x4x128xbf16, #tpu.memory_space<vmem>>, vector<1x1x4x128xbf16>
    %301 = vector.shape_cast %300 : vector<1x1x4x128xbf16> to vector<4x128xbf16>
    %cst_426 = arith.constant dense<0.000000e+00> : vector<16x128xf32>
    %302 = tpu.matmul %299, %301, %cst_426 {dimension_numbers = #tpu.dot_dimension_numbers<[1], [0], [0], [1], [0, 0, 1, 1], [], []>} : vector<16x4xbf16>, vector<4x128xbf16>, vector<16x128xf32> -> vector<16x128xf32>
    %303 = arith.addf %297, %302 : vector<16x128xf32>
    %304 = vector.broadcast %0 : vector<1x128xf32> to vector<16x128xf32>
    %305 = arith.addf %303, %304 : vector<16x128xf32>
    %cst_427 = arith.constant 0.000000e+00 : f32
    %306 = vector.broadcast %cst_427 : f32 to vector<16x128xf32>
    %307 = arith.maximumf %305, %306 : vector<16x128xf32>
    %c0_428 = arith.constant 0 : index
    %c4 = arith.constant 4 : index
    %c0_429 = arith.constant 0 : index
    %c0_430 = arith.constant 0 : index
    %308 = vector.load %arg15[%c0_428, %c4, %c0_429, %c0_430] : memref<1x8x16x128xf32, #tpu.memory_space<vmem>>, vector<1x1x16x128xf32>
    %309 = vector.shape_cast %308 : vector<1x1x16x128xf32> to vector<16x128xf32>
    %310 = vector.shape_cast %307 : vector<16x128xf32> to vector<1x1x16x128xf32>
    tpu.vector_store %arg15[%c0_428, %c4, %c0_429, %c0_430], %310 {strides = array<i32>} : memref<1x8x16x128xf32, #tpu.memory_space<vmem>>, vector<1x1x16x128xf32>,
    %cst_431 = arith.constant 0.000000e+00 : f32
    %311 = vector.broadcast %cst_431 : f32 to vector<16x128xf32>
    %c0_432 = arith.constant 0 : index
    %c0_433 = arith.constant 0 : index
    %c0_434 = arith.constant 0 : index
    %c0_435 = arith.constant 0 : index
    %312 = vector.load %arg8[%c0_432, %c0_433, %c0_434, %c0_435] : memref<1x1x18x4xbf16, #tpu.memory_space<vmem>>, vector<1x1x16x4xbf16>
    %313 = vector.shape_cast %312 : vector<1x1x16x4xbf16> to vector<16x4xbf16>
    %c0_436 = arith.constant 0 : index
    %c0_437 = arith.constant 0 : index
    %c0_438 = arith.constant 0 : index
    %c0_439 = arith.constant 0 : index
    %314 = vector.load %arg13[%c0_436, %c0_437, %c0_438, %c0_439] : memref<3x3x4x128xbf16, #tpu.memory_space<vmem>>, vector<1x1x4x128xbf16>
    %315 = vector.shape_cast %314 : vector<1x1x4x128xbf16> to vector<4x128xbf16>
    %cst_440 = arith.constant dense<0.000000e+00> : vector<16x128xf32>
    %316 = tpu.matmul %313, %315, %cst_440 {dimension_numbers = #tpu.dot_dimension_numbers<[1], [0], [0], [1], [0, 0, 1, 1], [], []>} : vector<16x4xbf16>, vector<4x128xbf16>, vector<16x128xf32> -> vector<16x128xf32>
    %317 = arith.addf %311, %316 : vector<16x128xf32>
    %c0_441 = arith.constant 0 : index
    %c0_442 = arith.constant 0 : index
    %c1_443 = arith.constant 1 : index
    %c0_444 = arith.constant 0 : index
    %318 = vector.load %arg8[%c0_441, %c0_442, %c1_443, %c0_444] : memref<1x1x18x4xbf16, #tpu.memory_space<vmem>>, vector<1x1x16x4xbf16>
    %319 = vector.shape_cast %318 : vector<1x1x16x4xbf16> to vector<16x4xbf16>
    %c0_445 = arith.constant 0 : index
    %c1_446 = arith.constant 1 : index
    %c0_447 = arith.constant 0 : index
    %c0_448 = arith.constant 0 : index
    %320 = vector.load %arg13[%c0_445, %c1_446, %c0_447, %c0_448] : memref<3x3x4x128xbf16, #tpu.memory_space<vmem>>, vector<1x1x4x128xbf16>
    %321 = vector.shape_cast %320 : vector<1x1x4x128xbf16> to vector<4x128xbf16>
    %cst_449 = arith.constant dense<0.000000e+00> : vector<16x128xf32>
    %322 = tpu.matmul %319, %321, %cst_449 {dimension_numbers = #tpu.dot_dimension_numbers<[1], [0], [0], [1], [0, 0, 1, 1], [], []>} : vector<16x4xbf16>, vector<4x128xbf16>, vector<16x128xf32> -> vector<16x128xf32>
    %323 = arith.addf %317, %322 : vector<16x128xf32>
    %c0_450 = arith.constant 0 : index
    %c0_451 = arith.constant 0 : index
    %c2_452 = arith.constant 2 : index
    %c0_453 = arith.constant 0 : index
    %324 = vector.load %arg8[%c0_450, %c0_451, %c2_452, %c0_453] : memref<1x1x18x4xbf16, #tpu.memory_space<vmem>>, vector<1x1x16x4xbf16>
    %325 = vector.shape_cast %324 : vector<1x1x16x4xbf16> to vector<16x4xbf16>
    %c0_454 = arith.constant 0 : index
    %c2_455 = arith.constant 2 : index
    %c0_456 = arith.constant 0 : index
    %c0_457 = arith.constant 0 : index
    %326 = vector.load %arg13[%c0_454, %c2_455, %c0_456, %c0_457] : memref<3x3x4x128xbf16, #tpu.memory_space<vmem>>, vector<1x1x4x128xbf16>
    %327 = vector.shape_cast %326 : vector<1x1x4x128xbf16> to vector<4x128xbf16>
    %cst_458 = arith.constant dense<0.000000e+00> : vector<16x128xf32>
    %328 = tpu.matmul %325, %327, %cst_458 {dimension_numbers = #tpu.dot_dimension_numbers<[1], [0], [0], [1], [0, 0, 1, 1], [], []>} : vector<16x4xbf16>, vector<4x128xbf16>, vector<16x128xf32> -> vector<16x128xf32>
    %329 = arith.addf %323, %328 : vector<16x128xf32>
    %c0_459 = arith.constant 0 : index
    %c0_460 = arith.constant 0 : index
    %c0_461 = arith.constant 0 : index
    %c0_462 = arith.constant 0 : index
    %330 = vector.load %arg9[%c0_459, %c0_460, %c0_461, %c0_462] : memref<1x1x18x4xbf16, #tpu.memory_space<vmem>>, vector<1x1x16x4xbf16>
    %331 = vector.shape_cast %330 : vector<1x1x16x4xbf16> to vector<16x4xbf16>
    %c1_463 = arith.constant 1 : index
    %c0_464 = arith.constant 0 : index
    %c0_465 = arith.constant 0 : index
    %c0_466 = arith.constant 0 : index
    %332 = vector.load %arg13[%c1_463, %c0_464, %c0_465, %c0_466] : memref<3x3x4x128xbf16, #tpu.memory_space<vmem>>, vector<1x1x4x128xbf16>
    %333 = vector.shape_cast %332 : vector<1x1x4x128xbf16> to vector<4x128xbf16>
    %cst_467 = arith.constant dense<0.000000e+00> : vector<16x128xf32>
    %334 = tpu.matmul %331, %333, %cst_467 {dimension_numbers = #tpu.dot_dimension_numbers<[1], [0], [0], [1], [0, 0, 1, 1], [], []>} : vector<16x4xbf16>, vector<4x128xbf16>, vector<16x128xf32> -> vector<16x128xf32>
    %335 = arith.addf %329, %334 : vector<16x128xf32>
    %c0_468 = arith.constant 0 : index
    %c0_469 = arith.constant 0 : index
    %c1_470 = arith.constant 1 : index
    %c0_471 = arith.constant 0 : index
    %336 = vector.load %arg9[%c0_468, %c0_469, %c1_470, %c0_471] : memref<1x1x18x4xbf16, #tpu.memory_space<vmem>>, vector<1x1x16x4xbf16>
    %337 = vector.shape_cast %336 : vector<1x1x16x4xbf16> to vector<16x4xbf16>
    %c1_472 = arith.constant 1 : index
    %c1_473 = arith.constant 1 : index
    %c0_474 = arith.constant 0 : index
    %c0_475 = arith.constant 0 : index
    %338 = vector.load %arg13[%c1_472, %c1_473, %c0_474, %c0_475] : memref<3x3x4x128xbf16, #tpu.memory_space<vmem>>, vector<1x1x4x128xbf16>
    %339 = vector.shape_cast %338 : vector<1x1x4x128xbf16> to vector<4x128xbf16>
    %cst_476 = arith.constant dense<0.000000e+00> : vector<16x128xf32>
    %340 = tpu.matmul %337, %339, %cst_476 {dimension_numbers = #tpu.dot_dimension_numbers<[1], [0], [0], [1], [0, 0, 1, 1], [], []>} : vector<16x4xbf16>, vector<4x128xbf16>, vector<16x128xf32> -> vector<16x128xf32>
    %341 = arith.addf %335, %340 : vector<16x128xf32>
    %c0_477 = arith.constant 0 : index
    %c0_478 = arith.constant 0 : index
    %c2_479 = arith.constant 2 : index
    %c0_480 = arith.constant 0 : index
    %342 = vector.load %arg9[%c0_477, %c0_478, %c2_479, %c0_480] : memref<1x1x18x4xbf16, #tpu.memory_space<vmem>>, vector<1x1x16x4xbf16>
    %343 = vector.shape_cast %342 : vector<1x1x16x4xbf16> to vector<16x4xbf16>
    %c1_481 = arith.constant 1 : index
    %c2_482 = arith.constant 2 : index
    %c0_483 = arith.constant 0 : index
    %c0_484 = arith.constant 0 : index
    %344 = vector.load %arg13[%c1_481, %c2_482, %c0_483, %c0_484] : memref<3x3x4x128xbf16, #tpu.memory_space<vmem>>, vector<1x1x4x128xbf16>
    %345 = vector.shape_cast %344 : vector<1x1x4x128xbf16> to vector<4x128xbf16>
    %cst_485 = arith.constant dense<0.000000e+00> : vector<16x128xf32>
    %346 = tpu.matmul %343, %345, %cst_485 {dimension_numbers = #tpu.dot_dimension_numbers<[1], [0], [0], [1], [0, 0, 1, 1], [], []>} : vector<16x4xbf16>, vector<4x128xbf16>, vector<16x128xf32> -> vector<16x128xf32>
    %347 = arith.addf %341, %346 : vector<16x128xf32>
    %c0_486 = arith.constant 0 : index
    %c0_487 = arith.constant 0 : index
    %c0_488 = arith.constant 0 : index
    %c0_489 = arith.constant 0 : index
    %348 = vector.load %arg10[%c0_486, %c0_487, %c0_488, %c0_489] : memref<1x1x18x4xbf16, #tpu.memory_space<vmem>>, vector<1x1x16x4xbf16>
    %349 = vector.shape_cast %348 : vector<1x1x16x4xbf16> to vector<16x4xbf16>
    %c2_490 = arith.constant 2 : index
    %c0_491 = arith.constant 0 : index
    %c0_492 = arith.constant 0 : index
    %c0_493 = arith.constant 0 : index
    %350 = vector.load %arg13[%c2_490, %c0_491, %c0_492, %c0_493] : memref<3x3x4x128xbf16, #tpu.memory_space<vmem>>, vector<1x1x4x128xbf16>
    %351 = vector.shape_cast %350 : vector<1x1x4x128xbf16> to vector<4x128xbf16>
    %cst_494 = arith.constant dense<0.000000e+00> : vector<16x128xf32>
    %352 = tpu.matmul %349, %351, %cst_494 {dimension_numbers = #tpu.dot_dimension_numbers<[1], [0], [0], [1], [0, 0, 1, 1], [], []>} : vector<16x4xbf16>, vector<4x128xbf16>, vector<16x128xf32> -> vector<16x128xf32>
    %353 = arith.addf %347, %352 : vector<16x128xf32>
    %c0_495 = arith.constant 0 : index
    %c0_496 = arith.constant 0 : index
    %c1_497 = arith.constant 1 : index
    %c0_498 = arith.constant 0 : index
    %354 = vector.load %arg10[%c0_495, %c0_496, %c1_497, %c0_498] : memref<1x1x18x4xbf16, #tpu.memory_space<vmem>>, vector<1x1x16x4xbf16>
    %355 = vector.shape_cast %354 : vector<1x1x16x4xbf16> to vector<16x4xbf16>
    %c2_499 = arith.constant 2 : index
    %c1_500 = arith.constant 1 : index
    %c0_501 = arith.constant 0 : index
    %c0_502 = arith.constant 0 : index
    %356 = vector.load %arg13[%c2_499, %c1_500, %c0_501, %c0_502] : memref<3x3x4x128xbf16, #tpu.memory_space<vmem>>, vector<1x1x4x128xbf16>
    %357 = vector.shape_cast %356 : vector<1x1x4x128xbf16> to vector<4x128xbf16>
    %cst_503 = arith.constant dense<0.000000e+00> : vector<16x128xf32>
    %358 = tpu.matmul %355, %357, %cst_503 {dimension_numbers = #tpu.dot_dimension_numbers<[1], [0], [0], [1], [0, 0, 1, 1], [], []>} : vector<16x4xbf16>, vector<4x128xbf16>, vector<16x128xf32> -> vector<16x128xf32>
    %359 = arith.addf %353, %358 : vector<16x128xf32>
    %c0_504 = arith.constant 0 : index
    %c0_505 = arith.constant 0 : index
    %c2_506 = arith.constant 2 : index
    %c0_507 = arith.constant 0 : index
    %360 = vector.load %arg10[%c0_504, %c0_505, %c2_506, %c0_507] : memref<1x1x18x4xbf16, #tpu.memory_space<vmem>>, vector<1x1x16x4xbf16>
    %361 = vector.shape_cast %360 : vector<1x1x16x4xbf16> to vector<16x4xbf16>
    %c2_508 = arith.constant 2 : index
    %c2_509 = arith.constant 2 : index
    %c0_510 = arith.constant 0 : index
    %c0_511 = arith.constant 0 : index
    %362 = vector.load %arg13[%c2_508, %c2_509, %c0_510, %c0_511] : memref<3x3x4x128xbf16, #tpu.memory_space<vmem>>, vector<1x1x4x128xbf16>
    %363 = vector.shape_cast %362 : vector<1x1x4x128xbf16> to vector<4x128xbf16>
    %cst_512 = arith.constant dense<0.000000e+00> : vector<16x128xf32>
    %364 = tpu.matmul %361, %363, %cst_512 {dimension_numbers = #tpu.dot_dimension_numbers<[1], [0], [0], [1], [0, 0, 1, 1], [], []>} : vector<16x4xbf16>, vector<4x128xbf16>, vector<16x128xf32> -> vector<16x128xf32>
    %365 = arith.addf %359, %364 : vector<16x128xf32>
    %366 = vector.broadcast %0 : vector<1x128xf32> to vector<16x128xf32>
    %367 = arith.addf %365, %366 : vector<16x128xf32>
    %cst_513 = arith.constant 0.000000e+00 : f32
    %368 = vector.broadcast %cst_513 : f32 to vector<16x128xf32>
    %369 = arith.maximumf %367, %368 : vector<16x128xf32>
    %c0_514 = arith.constant 0 : index
    %c5 = arith.constant 5 : index
    %c0_515 = arith.constant 0 : index
    %c0_516 = arith.constant 0 : index
    %370 = vector.load %arg15[%c0_514, %c5, %c0_515, %c0_516] : memref<1x8x16x128xf32, #tpu.memory_space<vmem>>, vector<1x1x16x128xf32>
    %371 = vector.shape_cast %370 : vector<1x1x16x128xf32> to vector<16x128xf32>
    %372 = vector.shape_cast %369 : vector<16x128xf32> to vector<1x1x16x128xf32>
    tpu.vector_store %arg15[%c0_514, %c5, %c0_515, %c0_516], %372 {strides = array<i32>} : memref<1x8x16x128xf32, #tpu.memory_space<vmem>>, vector<1x1x16x128xf32>,
    %cst_517 = arith.constant 0.000000e+00 : f32
    %373 = vector.broadcast %cst_517 : f32 to vector<16x128xf32>
    %c0_518 = arith.constant 0 : index
    %c0_519 = arith.constant 0 : index
    %c0_520 = arith.constant 0 : index
    %c0_521 = arith.constant 0 : index
    %374 = vector.load %arg9[%c0_518, %c0_519, %c0_520, %c0_521] : memref<1x1x18x4xbf16, #tpu.memory_space<vmem>>, vector<1x1x16x4xbf16>
    %375 = vector.shape_cast %374 : vector<1x1x16x4xbf16> to vector<16x4xbf16>
    %c0_522 = arith.constant 0 : index
    %c0_523 = arith.constant 0 : index
    %c0_524 = arith.constant 0 : index
    %c0_525 = arith.constant 0 : index
    %376 = vector.load %arg13[%c0_522, %c0_523, %c0_524, %c0_525] : memref<3x3x4x128xbf16, #tpu.memory_space<vmem>>, vector<1x1x4x128xbf16>
    %377 = vector.shape_cast %376 : vector<1x1x4x128xbf16> to vector<4x128xbf16>
    %cst_526 = arith.constant dense<0.000000e+00> : vector<16x128xf32>
    %378 = tpu.matmul %375, %377, %cst_526 {dimension_numbers = #tpu.dot_dimension_numbers<[1], [0], [0], [1], [0, 0, 1, 1], [], []>} : vector<16x4xbf16>, vector<4x128xbf16>, vector<16x128xf32> -> vector<16x128xf32>
    %379 = arith.addf %373, %378 : vector<16x128xf32>
    %c0_527 = arith.constant 0 : index
    %c0_528 = arith.constant 0 : index
    %c1_529 = arith.constant 1 : index
    %c0_530 = arith.constant 0 : index
    %380 = vector.load %arg9[%c0_527, %c0_528, %c1_529, %c0_530] : memref<1x1x18x4xbf16, #tpu.memory_space<vmem>>, vector<1x1x16x4xbf16>
    %381 = vector.shape_cast %380 : vector<1x1x16x4xbf16> to vector<16x4xbf16>
    %c0_531 = arith.constant 0 : index
    %c1_532 = arith.constant 1 : index
    %c0_533 = arith.constant 0 : index
    %c0_534 = arith.constant 0 : index
    %382 = vector.load %arg13[%c0_531, %c1_532, %c0_533, %c0_534] : memref<3x3x4x128xbf16, #tpu.memory_space<vmem>>, vector<1x1x4x128xbf16>
    %383 = vector.shape_cast %382 : vector<1x1x4x128xbf16> to vector<4x128xbf16>
    %cst_535 = arith.constant dense<0.000000e+00> : vector<16x128xf32>
    %384 = tpu.matmul %381, %383, %cst_535 {dimension_numbers = #tpu.dot_dimension_numbers<[1], [0], [0], [1], [0, 0, 1, 1], [], []>} : vector<16x4xbf16>, vector<4x128xbf16>, vector<16x128xf32> -> vector<16x128xf32>
    %385 = arith.addf %379, %384 : vector<16x128xf32>
    %c0_536 = arith.constant 0 : index
    %c0_537 = arith.constant 0 : index
    %c2_538 = arith.constant 2 : index
    %c0_539 = arith.constant 0 : index
    %386 = vector.load %arg9[%c0_536, %c0_537, %c2_538, %c0_539] : memref<1x1x18x4xbf16, #tpu.memory_space<vmem>>, vector<1x1x16x4xbf16>
    %387 = vector.shape_cast %386 : vector<1x1x16x4xbf16> to vector<16x4xbf16>
    %c0_540 = arith.constant 0 : index
    %c2_541 = arith.constant 2 : index
    %c0_542 = arith.constant 0 : index
    %c0_543 = arith.constant 0 : index
    %388 = vector.load %arg13[%c0_540, %c2_541, %c0_542, %c0_543] : memref<3x3x4x128xbf16, #tpu.memory_space<vmem>>, vector<1x1x4x128xbf16>
    %389 = vector.shape_cast %388 : vector<1x1x4x128xbf16> to vector<4x128xbf16>
    %cst_544 = arith.constant dense<0.000000e+00> : vector<16x128xf32>
    %390 = tpu.matmul %387, %389, %cst_544 {dimension_numbers = #tpu.dot_dimension_numbers<[1], [0], [0], [1], [0, 0, 1, 1], [], []>} : vector<16x4xbf16>, vector<4x128xbf16>, vector<16x128xf32> -> vector<16x128xf32>
    %391 = arith.addf %385, %390 : vector<16x128xf32>
    %c0_545 = arith.constant 0 : index
    %c0_546 = arith.constant 0 : index
    %c0_547 = arith.constant 0 : index
    %c0_548 = arith.constant 0 : index
    %392 = vector.load %arg10[%c0_545, %c0_546, %c0_547, %c0_548] : memref<1x1x18x4xbf16, #tpu.memory_space<vmem>>, vector<1x1x16x4xbf16>
    %393 = vector.shape_cast %392 : vector<1x1x16x4xbf16> to vector<16x4xbf16>
    %c1_549 = arith.constant 1 : index
    %c0_550 = arith.constant 0 : index
    %c0_551 = arith.constant 0 : index
    %c0_552 = arith.constant 0 : index
    %394 = vector.load %arg13[%c1_549, %c0_550, %c0_551, %c0_552] : memref<3x3x4x128xbf16, #tpu.memory_space<vmem>>, vector<1x1x4x128xbf16>
    %395 = vector.shape_cast %394 : vector<1x1x4x128xbf16> to vector<4x128xbf16>
    %cst_553 = arith.constant dense<0.000000e+00> : vector<16x128xf32>
    %396 = tpu.matmul %393, %395, %cst_553 {dimension_numbers = #tpu.dot_dimension_numbers<[1], [0], [0], [1], [0, 0, 1, 1], [], []>} : vector<16x4xbf16>, vector<4x128xbf16>, vector<16x128xf32> -> vector<16x128xf32>
    %397 = arith.addf %391, %396 : vector<16x128xf32>
    %c0_554 = arith.constant 0 : index
    %c0_555 = arith.constant 0 : index
    %c1_556 = arith.constant 1 : index
    %c0_557 = arith.constant 0 : index
    %398 = vector.load %arg10[%c0_554, %c0_555, %c1_556, %c0_557] : memref<1x1x18x4xbf16, #tpu.memory_space<vmem>>, vector<1x1x16x4xbf16>
    %399 = vector.shape_cast %398 : vector<1x1x16x4xbf16> to vector<16x4xbf16>
    %c1_558 = arith.constant 1 : index
    %c1_559 = arith.constant 1 : index
    %c0_560 = arith.constant 0 : index
    %c0_561 = arith.constant 0 : index
    %400 = vector.load %arg13[%c1_558, %c1_559, %c0_560, %c0_561] : memref<3x3x4x128xbf16, #tpu.memory_space<vmem>>, vector<1x1x4x128xbf16>
    %401 = vector.shape_cast %400 : vector<1x1x4x128xbf16> to vector<4x128xbf16>
    %cst_562 = arith.constant dense<0.000000e+00> : vector<16x128xf32>
    %402 = tpu.matmul %399, %401, %cst_562 {dimension_numbers = #tpu.dot_dimension_numbers<[1], [0], [0], [1], [0, 0, 1, 1], [], []>} : vector<16x4xbf16>, vector<4x128xbf16>, vector<16x128xf32> -> vector<16x128xf32>
    %403 = arith.addf %397, %402 : vector<16x128xf32>
    %c0_563 = arith.constant 0 : index
    %c0_564 = arith.constant 0 : index
    %c2_565 = arith.constant 2 : index
    %c0_566 = arith.constant 0 : index
    %404 = vector.load %arg10[%c0_563, %c0_564, %c2_565, %c0_566] : memref<1x1x18x4xbf16, #tpu.memory_space<vmem>>, vector<1x1x16x4xbf16>
    %405 = vector.shape_cast %404 : vector<1x1x16x4xbf16> to vector<16x4xbf16>
    %c1_567 = arith.constant 1 : index
    %c2_568 = arith.constant 2 : index
    %c0_569 = arith.constant 0 : index
    %c0_570 = arith.constant 0 : index
    %406 = vector.load %arg13[%c1_567, %c2_568, %c0_569, %c0_570] : memref<3x3x4x128xbf16, #tpu.memory_space<vmem>>, vector<1x1x4x128xbf16>
    %407 = vector.shape_cast %406 : vector<1x1x4x128xbf16> to vector<4x128xbf16>
    %cst_571 = arith.constant dense<0.000000e+00> : vector<16x128xf32>
    %408 = tpu.matmul %405, %407, %cst_571 {dimension_numbers = #tpu.dot_dimension_numbers<[1], [0], [0], [1], [0, 0, 1, 1], [], []>} : vector<16x4xbf16>, vector<4x128xbf16>, vector<16x128xf32> -> vector<16x128xf32>
    %409 = arith.addf %403, %408 : vector<16x128xf32>
    %c0_572 = arith.constant 0 : index
    %c0_573 = arith.constant 0 : index
    %c0_574 = arith.constant 0 : index
    %c0_575 = arith.constant 0 : index
    %410 = vector.load %arg11[%c0_572, %c0_573, %c0_574, %c0_575] : memref<1x1x18x4xbf16, #tpu.memory_space<vmem>>, vector<1x1x16x4xbf16>
    %411 = vector.shape_cast %410 : vector<1x1x16x4xbf16> to vector<16x4xbf16>
    %c2_576 = arith.constant 2 : index
    %c0_577 = arith.constant 0 : index
    %c0_578 = arith.constant 0 : index
    %c0_579 = arith.constant 0 : index
    %412 = vector.load %arg13[%c2_576, %c0_577, %c0_578, %c0_579] : memref<3x3x4x128xbf16, #tpu.memory_space<vmem>>, vector<1x1x4x128xbf16>
    %413 = vector.shape_cast %412 : vector<1x1x4x128xbf16> to vector<4x128xbf16>
    %cst_580 = arith.constant dense<0.000000e+00> : vector<16x128xf32>
    %414 = tpu.matmul %411, %413, %cst_580 {dimension_numbers = #tpu.dot_dimension_numbers<[1], [0], [0], [1], [0, 0, 1, 1], [], []>} : vector<16x4xbf16>, vector<4x128xbf16>, vector<16x128xf32> -> vector<16x128xf32>
    %415 = arith.addf %409, %414 : vector<16x128xf32>
    %c0_581 = arith.constant 0 : index
    %c0_582 = arith.constant 0 : index
    %c1_583 = arith.constant 1 : index
    %c0_584 = arith.constant 0 : index
    %416 = vector.load %arg11[%c0_581, %c0_582, %c1_583, %c0_584] : memref<1x1x18x4xbf16, #tpu.memory_space<vmem>>, vector<1x1x16x4xbf16>
    %417 = vector.shape_cast %416 : vector<1x1x16x4xbf16> to vector<16x4xbf16>
    %c2_585 = arith.constant 2 : index
    %c1_586 = arith.constant 1 : index
    %c0_587 = arith.constant 0 : index
    %c0_588 = arith.constant 0 : index
    %418 = vector.load %arg13[%c2_585, %c1_586, %c0_587, %c0_588] : memref<3x3x4x128xbf16, #tpu.memory_space<vmem>>, vector<1x1x4x128xbf16>
    %419 = vector.shape_cast %418 : vector<1x1x4x128xbf16> to vector<4x128xbf16>
    %cst_589 = arith.constant dense<0.000000e+00> : vector<16x128xf32>
    %420 = tpu.matmul %417, %419, %cst_589 {dimension_numbers = #tpu.dot_dimension_numbers<[1], [0], [0], [1], [0, 0, 1, 1], [], []>} : vector<16x4xbf16>, vector<4x128xbf16>, vector<16x128xf32> -> vector<16x128xf32>
    %421 = arith.addf %415, %420 : vector<16x128xf32>
    %c0_590 = arith.constant 0 : index
    %c0_591 = arith.constant 0 : index
    %c2_592 = arith.constant 2 : index
    %c0_593 = arith.constant 0 : index
    %422 = vector.load %arg11[%c0_590, %c0_591, %c2_592, %c0_593] : memref<1x1x18x4xbf16, #tpu.memory_space<vmem>>, vector<1x1x16x4xbf16>
    %423 = vector.shape_cast %422 : vector<1x1x16x4xbf16> to vector<16x4xbf16>
    %c2_594 = arith.constant 2 : index
    %c2_595 = arith.constant 2 : index
    %c0_596 = arith.constant 0 : index
    %c0_597 = arith.constant 0 : index
    %424 = vector.load %arg13[%c2_594, %c2_595, %c0_596, %c0_597] : memref<3x3x4x128xbf16, #tpu.memory_space<vmem>>, vector<1x1x4x128xbf16>
    %425 = vector.shape_cast %424 : vector<1x1x4x128xbf16> to vector<4x128xbf16>
    %cst_598 = arith.constant dense<0.000000e+00> : vector<16x128xf32>
    %426 = tpu.matmul %423, %425, %cst_598 {dimension_numbers = #tpu.dot_dimension_numbers<[1], [0], [0], [1], [0, 0, 1, 1], [], []>} : vector<16x4xbf16>, vector<4x128xbf16>, vector<16x128xf32> -> vector<16x128xf32>
    %427 = arith.addf %421, %426 : vector<16x128xf32>
    %428 = vector.broadcast %0 : vector<1x128xf32> to vector<16x128xf32>
    %429 = arith.addf %427, %428 : vector<16x128xf32>
    %cst_599 = arith.constant 0.000000e+00 : f32
    %430 = vector.broadcast %cst_599 : f32 to vector<16x128xf32>
    %431 = arith.maximumf %429, %430 : vector<16x128xf32>
    %c0_600 = arith.constant 0 : index
    %c6 = arith.constant 6 : index
    %c0_601 = arith.constant 0 : index
    %c0_602 = arith.constant 0 : index
    %432 = vector.load %arg15[%c0_600, %c6, %c0_601, %c0_602] : memref<1x8x16x128xf32, #tpu.memory_space<vmem>>, vector<1x1x16x128xf32>
    %433 = vector.shape_cast %432 : vector<1x1x16x128xf32> to vector<16x128xf32>
    %434 = vector.shape_cast %431 : vector<16x128xf32> to vector<1x1x16x128xf32>
    tpu.vector_store %arg15[%c0_600, %c6, %c0_601, %c0_602], %434 {strides = array<i32>} : memref<1x8x16x128xf32, #tpu.memory_space<vmem>>, vector<1x1x16x128xf32>,
    %cst_603 = arith.constant 0.000000e+00 : f32
    %435 = vector.broadcast %cst_603 : f32 to vector<16x128xf32>
    %c0_604 = arith.constant 0 : index
    %c0_605 = arith.constant 0 : index
    %c0_606 = arith.constant 0 : index
    %c0_607 = arith.constant 0 : index
    %436 = vector.load %arg10[%c0_604, %c0_605, %c0_606, %c0_607] : memref<1x1x18x4xbf16, #tpu.memory_space<vmem>>, vector<1x1x16x4xbf16>
    %437 = vector.shape_cast %436 : vector<1x1x16x4xbf16> to vector<16x4xbf16>
    %c0_608 = arith.constant 0 : index
    %c0_609 = arith.constant 0 : index
    %c0_610 = arith.constant 0 : index
    %c0_611 = arith.constant 0 : index
    %438 = vector.load %arg13[%c0_608, %c0_609, %c0_610, %c0_611] : memref<3x3x4x128xbf16, #tpu.memory_space<vmem>>, vector<1x1x4x128xbf16>
    %439 = vector.shape_cast %438 : vector<1x1x4x128xbf16> to vector<4x128xbf16>
    %cst_612 = arith.constant dense<0.000000e+00> : vector<16x128xf32>
    %440 = tpu.matmul %437, %439, %cst_612 {dimension_numbers = #tpu.dot_dimension_numbers<[1], [0], [0], [1], [0, 0, 1, 1], [], []>} : vector<16x4xbf16>, vector<4x128xbf16>, vector<16x128xf32> -> vector<16x128xf32>
    %441 = arith.addf %435, %440 : vector<16x128xf32>
    %c0_613 = arith.constant 0 : index
    %c0_614 = arith.constant 0 : index
    %c1_615 = arith.constant 1 : index
    %c0_616 = arith.constant 0 : index
    %442 = vector.load %arg10[%c0_613, %c0_614, %c1_615, %c0_616] : memref<1x1x18x4xbf16, #tpu.memory_space<vmem>>, vector<1x1x16x4xbf16>
    %443 = vector.shape_cast %442 : vector<1x1x16x4xbf16> to vector<16x4xbf16>
    %c0_617 = arith.constant 0 : index
    %c1_618 = arith.constant 1 : index
    %c0_619 = arith.constant 0 : index
    %c0_620 = arith.constant 0 : index
    %444 = vector.load %arg13[%c0_617, %c1_618, %c0_619, %c0_620] : memref<3x3x4x128xbf16, #tpu.memory_space<vmem>>, vector<1x1x4x128xbf16>
    %445 = vector.shape_cast %444 : vector<1x1x4x128xbf16> to vector<4x128xbf16>
    %cst_621 = arith.constant dense<0.000000e+00> : vector<16x128xf32>
    %446 = tpu.matmul %443, %445, %cst_621 {dimension_numbers = #tpu.dot_dimension_numbers<[1], [0], [0], [1], [0, 0, 1, 1], [], []>} : vector<16x4xbf16>, vector<4x128xbf16>, vector<16x128xf32> -> vector<16x128xf32>
    %447 = arith.addf %441, %446 : vector<16x128xf32>
    %c0_622 = arith.constant 0 : index
    %c0_623 = arith.constant 0 : index
    %c2_624 = arith.constant 2 : index
    %c0_625 = arith.constant 0 : index
    %448 = vector.load %arg10[%c0_622, %c0_623, %c2_624, %c0_625] : memref<1x1x18x4xbf16, #tpu.memory_space<vmem>>, vector<1x1x16x4xbf16>
    %449 = vector.shape_cast %448 : vector<1x1x16x4xbf16> to vector<16x4xbf16>
    %c0_626 = arith.constant 0 : index
    %c2_627 = arith.constant 2 : index
    %c0_628 = arith.constant 0 : index
    %c0_629 = arith.constant 0 : index
    %450 = vector.load %arg13[%c0_626, %c2_627, %c0_628, %c0_629] : memref<3x3x4x128xbf16, #tpu.memory_space<vmem>>, vector<1x1x4x128xbf16>
    %451 = vector.shape_cast %450 : vector<1x1x4x128xbf16> to vector<4x128xbf16>
    %cst_630 = arith.constant dense<0.000000e+00> : vector<16x128xf32>
    %452 = tpu.matmul %449, %451, %cst_630 {dimension_numbers = #tpu.dot_dimension_numbers<[1], [0], [0], [1], [0, 0, 1, 1], [], []>} : vector<16x4xbf16>, vector<4x128xbf16>, vector<16x128xf32> -> vector<16x128xf32>
    %453 = arith.addf %447, %452 : vector<16x128xf32>
    %c0_631 = arith.constant 0 : index
    %c0_632 = arith.constant 0 : index
    %c0_633 = arith.constant 0 : index
    %c0_634 = arith.constant 0 : index
    %454 = vector.load %arg11[%c0_631, %c0_632, %c0_633, %c0_634] : memref<1x1x18x4xbf16, #tpu.memory_space<vmem>>, vector<1x1x16x4xbf16>
    %455 = vector.shape_cast %454 : vector<1x1x16x4xbf16> to vector<16x4xbf16>
    %c1_635 = arith.constant 1 : index
    %c0_636 = arith.constant 0 : index
    %c0_637 = arith.constant 0 : index
    %c0_638 = arith.constant 0 : index
    %456 = vector.load %arg13[%c1_635, %c0_636, %c0_637, %c0_638] : memref<3x3x4x128xbf16, #tpu.memory_space<vmem>>, vector<1x1x4x128xbf16>
    %457 = vector.shape_cast %456 : vector<1x1x4x128xbf16> to vector<4x128xbf16>
    %cst_639 = arith.constant dense<0.000000e+00> : vector<16x128xf32>
    %458 = tpu.matmul %455, %457, %cst_639 {dimension_numbers = #tpu.dot_dimension_numbers<[1], [0], [0], [1], [0, 0, 1, 1], [], []>} : vector<16x4xbf16>, vector<4x128xbf16>, vector<16x128xf32> -> vector<16x128xf32>
    %459 = arith.addf %453, %458 : vector<16x128xf32>
    %c0_640 = arith.constant 0 : index
    %c0_641 = arith.constant 0 : index
    %c1_642 = arith.constant 1 : index
    %c0_643 = arith.constant 0 : index
    %460 = vector.load %arg11[%c0_640, %c0_641, %c1_642, %c0_643] : memref<1x1x18x4xbf16, #tpu.memory_space<vmem>>, vector<1x1x16x4xbf16>
    %461 = vector.shape_cast %460 : vector<1x1x16x4xbf16> to vector<16x4xbf16>
    %c1_644 = arith.constant 1 : index
    %c1_645 = arith.constant 1 : index
    %c0_646 = arith.constant 0 : index
    %c0_647 = arith.constant 0 : index
    %462 = vector.load %arg13[%c1_644, %c1_645, %c0_646, %c0_647] : memref<3x3x4x128xbf16, #tpu.memory_space<vmem>>, vector<1x1x4x128xbf16>
    %463 = vector.shape_cast %462 : vector<1x1x4x128xbf16> to vector<4x128xbf16>
    %cst_648 = arith.constant dense<0.000000e+00> : vector<16x128xf32>
    %464 = tpu.matmul %461, %463, %cst_648 {dimension_numbers = #tpu.dot_dimension_numbers<[1], [0], [0], [1], [0, 0, 1, 1], [], []>} : vector<16x4xbf16>, vector<4x128xbf16>, vector<16x128xf32> -> vector<16x128xf32>
    %465 = arith.addf %459, %464 : vector<16x128xf32>
    %c0_649 = arith.constant 0 : index
    %c0_650 = arith.constant 0 : index
    %c2_651 = arith.constant 2 : index
    %c0_652 = arith.constant 0 : index
    %466 = vector.load %arg11[%c0_649, %c0_650, %c2_651, %c0_652] : memref<1x1x18x4xbf16, #tpu.memory_space<vmem>>, vector<1x1x16x4xbf16>
    %467 = vector.shape_cast %466 : vector<1x1x16x4xbf16> to vector<16x4xbf16>
    %c1_653 = arith.constant 1 : index
    %c2_654 = arith.constant 2 : index
    %c0_655 = arith.constant 0 : index
    %c0_656 = arith.constant 0 : index
    %468 = vector.load %arg13[%c1_653, %c2_654, %c0_655, %c0_656] : memref<3x3x4x128xbf16, #tpu.memory_space<vmem>>, vector<1x1x4x128xbf16>
    %469 = vector.shape_cast %468 : vector<1x1x4x128xbf16> to vector<4x128xbf16>
    %cst_657 = arith.constant dense<0.000000e+00> : vector<16x128xf32>
    %470 = tpu.matmul %467, %469, %cst_657 {dimension_numbers = #tpu.dot_dimension_numbers<[1], [0], [0], [1], [0, 0, 1, 1], [], []>} : vector<16x4xbf16>, vector<4x128xbf16>, vector<16x128xf32> -> vector<16x128xf32>
    %471 = arith.addf %465, %470 : vector<16x128xf32>
    %c0_658 = arith.constant 0 : index
    %c0_659 = arith.constant 0 : index
    %c0_660 = arith.constant 0 : index
    %c0_661 = arith.constant 0 : index
    %472 = vector.load %arg12[%c0_658, %c0_659, %c0_660, %c0_661] : memref<1x1x18x4xbf16, #tpu.memory_space<vmem>>, vector<1x1x16x4xbf16>
    %473 = vector.shape_cast %472 : vector<1x1x16x4xbf16> to vector<16x4xbf16>
    %c2_662 = arith.constant 2 : index
    %c0_663 = arith.constant 0 : index
    %c0_664 = arith.constant 0 : index
    %c0_665 = arith.constant 0 : index
    %474 = vector.load %arg13[%c2_662, %c0_663, %c0_664, %c0_665] : memref<3x3x4x128xbf16, #tpu.memory_space<vmem>>, vector<1x1x4x128xbf16>
    %475 = vector.shape_cast %474 : vector<1x1x4x128xbf16> to vector<4x128xbf16>
    %cst_666 = arith.constant dense<0.000000e+00> : vector<16x128xf32>
    %476 = tpu.matmul %473, %475, %cst_666 {dimension_numbers = #tpu.dot_dimension_numbers<[1], [0], [0], [1], [0, 0, 1, 1], [], []>} : vector<16x4xbf16>, vector<4x128xbf16>, vector<16x128xf32> -> vector<16x128xf32>
    %477 = arith.addf %471, %476 : vector<16x128xf32>
    %c0_667 = arith.constant 0 : index
    %c0_668 = arith.constant 0 : index
    %c1_669 = arith.constant 1 : index
    %c0_670 = arith.constant 0 : index
    %478 = vector.load %arg12[%c0_667, %c0_668, %c1_669, %c0_670] : memref<1x1x18x4xbf16, #tpu.memory_space<vmem>>, vector<1x1x16x4xbf16>
    %479 = vector.shape_cast %478 : vector<1x1x16x4xbf16> to vector<16x4xbf16>
    %c2_671 = arith.constant 2 : index
    %c1_672 = arith.constant 1 : index
    %c0_673 = arith.constant 0 : index
    %c0_674 = arith.constant 0 : index
    %480 = vector.load %arg13[%c2_671, %c1_672, %c0_673, %c0_674] : memref<3x3x4x128xbf16, #tpu.memory_space<vmem>>, vector<1x1x4x128xbf16>
    %481 = vector.shape_cast %480 : vector<1x1x4x128xbf16> to vector<4x128xbf16>
    %cst_675 = arith.constant dense<0.000000e+00> : vector<16x128xf32>
    %482 = tpu.matmul %479, %481, %cst_675 {dimension_numbers = #tpu.dot_dimension_numbers<[1], [0], [0], [1], [0, 0, 1, 1], [], []>} : vector<16x4xbf16>, vector<4x128xbf16>, vector<16x128xf32> -> vector<16x128xf32>
    %483 = arith.addf %477, %482 : vector<16x128xf32>
    %c0_676 = arith.constant 0 : index
    %c0_677 = arith.constant 0 : index
    %c2_678 = arith.constant 2 : index
    %c0_679 = arith.constant 0 : index
    %484 = vector.load %arg12[%c0_676, %c0_677, %c2_678, %c0_679] : memref<1x1x18x4xbf16, #tpu.memory_space<vmem>>, vector<1x1x16x4xbf16>
    %485 = vector.shape_cast %484 : vector<1x1x16x4xbf16> to vector<16x4xbf16>
    %c2_680 = arith.constant 2 : index
    %c2_681 = arith.constant 2 : index
    %c0_682 = arith.constant 0 : index
    %c0_683 = arith.constant 0 : index
    %486 = vector.load %arg13[%c2_680, %c2_681, %c0_682, %c0_683] : memref<3x3x4x128xbf16, #tpu.memory_space<vmem>>, vector<1x1x4x128xbf16>
    %487 = vector.shape_cast %486 : vector<1x1x4x128xbf16> to vector<4x128xbf16>
    %cst_684 = arith.constant dense<0.000000e+00> : vector<16x128xf32>
    %488 = tpu.matmul %485, %487, %cst_684 {dimension_numbers = #tpu.dot_dimension_numbers<[1], [0], [0], [1], [0, 0, 1, 1], [], []>} : vector<16x4xbf16>, vector<4x128xbf16>, vector<16x128xf32> -> vector<16x128xf32>
    %489 = arith.addf %483, %488 : vector<16x128xf32>
    %490 = vector.broadcast %0 : vector<1x128xf32> to vector<16x128xf32>
    %491 = arith.addf %489, %490 : vector<16x128xf32>
    %cst_685 = arith.constant 0.000000e+00 : f32
    %492 = vector.broadcast %cst_685 : f32 to vector<16x128xf32>
    %493 = arith.maximumf %491, %492 : vector<16x128xf32>
    %c0_686 = arith.constant 0 : index
    %c7 = arith.constant 7 : index
    %c0_687 = arith.constant 0 : index
    %c0_688 = arith.constant 0 : index
    %494 = vector.load %arg15[%c0_686, %c7, %c0_687, %c0_688] : memref<1x8x16x128xf32, #tpu.memory_space<vmem>>, vector<1x1x16x128xf32>
    %495 = vector.shape_cast %494 : vector<1x1x16x128xf32> to vector<16x128xf32>
    %496 = vector.shape_cast %493 : vector<16x128xf32> to vector<1x1x16x128xf32>
    tpu.vector_store %arg15[%c0_686, %c7, %c0_687, %c0_688], %496 {strides = array<i32>} : memref<1x8x16x128xf32, #tpu.memory_space<vmem>>, vector<1x1x16x128xf32>,
    return
  }
  func.func @transform_0(%arg0: i32, %arg1: i32, %arg2: i32) -> (i32, i32, i32, i32) {
    %c8_i32 = arith.constant 8 : i32
    %0 = arith.muli %arg2, %c8_i32 : i32
    %c0_i32 = arith.constant 0 : i32
    %1 = arith.addi %0, %c0_i32 : i32
    %c0_i32_0 = arith.constant 0 : i32
    %c0_i32_1 = arith.constant 0 : i32
    %c0_i32_2 = arith.constant 0 : i32
    return %arg0, %1, %c0_i32_0, %c0_i32_1 : i32, i32, i32, i32
  }
  func.func @transform_1(%arg0: i32, %arg1: i32, %arg2: i32) -> (i32, i32, i32, i32) {
    %c8_i32 = arith.constant 8 : i32
    %0 = arith.muli %arg2, %c8_i32 : i32
    %c1_i32 = arith.constant 1 : i32
    %1 = arith.addi %0, %c1_i32 : i32
    %c0_i32 = arith.constant 0 : i32
    %c0_i32_0 = arith.constant 0 : i32
    %c0_i32_1 = arith.constant 0 : i32
    return %arg0, %1, %c0_i32, %c0_i32_0 : i32, i32, i32, i32
  }
  func.func @transform_2(%arg0: i32, %arg1: i32, %arg2: i32) -> (i32, i32, i32, i32) {
    %c8_i32 = arith.constant 8 : i32
    %0 = arith.muli %arg2, %c8_i32 : i32
    %c2_i32 = arith.constant 2 : i32
    %1 = arith.addi %0, %c2_i32 : i32
    %c0_i32 = arith.constant 0 : i32
    %c0_i32_0 = arith.constant 0 : i32
    %c0_i32_1 = arith.constant 0 : i32
    return %arg0, %1, %c0_i32, %c0_i32_0 : i32, i32, i32, i32
  }
  func.func @transform_3(%arg0: i32, %arg1: i32, %arg2: i32) -> (i32, i32, i32, i32) {
    %c8_i32 = arith.constant 8 : i32
    %0 = arith.muli %arg2, %c8_i32 : i32
    %c3_i32 = arith.constant 3 : i32
    %1 = arith.addi %0, %c3_i32 : i32
    %c0_i32 = arith.constant 0 : i32
    %c0_i32_0 = arith.constant 0 : i32
    %c0_i32_1 = arith.constant 0 : i32
    return %arg0, %1, %c0_i32, %c0_i32_0 : i32, i32, i32, i32
  }
  func.func @transform_4(%arg0: i32, %arg1: i32, %arg2: i32) -> (i32, i32, i32, i32) {
    %c8_i32 = arith.constant 8 : i32
    %0 = arith.muli %arg2, %c8_i32 : i32
    %c4_i32 = arith.constant 4 : i32
    %1 = arith.addi %0, %c4_i32 : i32
    %c0_i32 = arith.constant 0 : i32
    %c0_i32_0 = arith.constant 0 : i32
    %c0_i32_1 = arith.constant 0 : i32
    return %arg0, %1, %c0_i32, %c0_i32_0 : i32, i32, i32, i32
  }
  func.func @transform_5(%arg0: i32, %arg1: i32, %arg2: i32) -> (i32, i32, i32, i32) {
    %c8_i32 = arith.constant 8 : i32
    %0 = arith.muli %arg2, %c8_i32 : i32
    %c5_i32 = arith.constant 5 : i32
    %1 = arith.addi %0, %c5_i32 : i32
    %c0_i32 = arith.constant 0 : i32
    %c0_i32_0 = arith.constant 0 : i32
    %c0_i32_1 = arith.constant 0 : i32
    return %arg0, %1, %c0_i32, %c0_i32_0 : i32, i32, i32, i32
  }
  func.func @transform_6(%arg0: i32, %arg1: i32, %arg2: i32) -> (i32, i32, i32, i32) {
    %c8_i32 = arith.constant 8 : i32
    %0 = arith.muli %arg2, %c8_i32 : i32
    %c6_i32 = arith.constant 6 : i32
    %1 = arith.addi %0, %c6_i32 : i32
    %c0_i32 = arith.constant 0 : i32
    %c0_i32_0 = arith.constant 0 : i32
    %c0_i32_1 = arith.constant 0 : i32
    return %arg0, %1, %c0_i32, %c0_i32_0 : i32, i32, i32, i32
  }
  func.func @transform_7(%arg0: i32, %arg1: i32, %arg2: i32) -> (i32, i32, i32, i32) {
    %c8_i32 = arith.constant 8 : i32
    %0 = arith.muli %arg2, %c8_i32 : i32
    %c7_i32 = arith.constant 7 : i32
    %1 = arith.addi %0, %c7_i32 : i32
    %c0_i32 = arith.constant 0 : i32
    %c0_i32_0 = arith.constant 0 : i32
    %c0_i32_1 = arith.constant 0 : i32
    return %arg0, %1, %c0_i32, %c0_i32_0 : i32, i32, i32, i32
  }
  func.func @transform_8(%arg0: i32, %arg1: i32, %arg2: i32) -> (i32, i32, i32, i32) {
    %c8_i32 = arith.constant 8 : i32
    %0 = arith.muli %arg2, %c8_i32 : i32
    %c8_i32_0 = arith.constant 8 : i32
    %1 = arith.addi %0, %c8_i32_0 : i32
    %c0_i32 = arith.constant 0 : i32
    %c0_i32_1 = arith.constant 0 : i32
    %c0_i32_2 = arith.constant 0 : i32
    return %arg0, %1, %c0_i32, %c0_i32_1 : i32, i32, i32, i32
  }
  func.func @transform_9(%arg0: i32, %arg1: i32, %arg2: i32) -> (i32, i32, i32, i32) {
    %c8_i32 = arith.constant 8 : i32
    %0 = arith.muli %arg2, %c8_i32 : i32
    %c9_i32 = arith.constant 9 : i32
    %1 = arith.addi %0, %c9_i32 : i32
    %c0_i32 = arith.constant 0 : i32
    %c0_i32_0 = arith.constant 0 : i32
    %c0_i32_1 = arith.constant 0 : i32
    return %arg0, %1, %c0_i32, %c0_i32_0 : i32, i32, i32, i32
  }
  func.func @transform_10(%arg0: i32, %arg1: i32, %arg2: i32) -> (i32, i32, i32, i32) {
    %c0_i32 = arith.constant 0 : i32
    %c0_i32_0 = arith.constant 0 : i32
    %c0_i32_1 = arith.constant 0 : i32
    %c0_i32_2 = arith.constant 0 : i32
    return %c0_i32, %c0_i32_0, %c0_i32_1, %arg1 : i32, i32, i32, i32
  }
  func.func @transform_11(%arg0: i32, %arg1: i32, %arg2: i32) -> (i32, i32) {
    %c0_i32 = arith.constant 0 : i32
    %c0_i32_0 = arith.constant 0 : i32
    return %c0_i32, %arg1 : i32, i32
  }
  func.func @transform_12(%arg0: i32, %arg1: i32, %arg2: i32) -> (i32, i32, i32, i32) {
    %c0_i32 = arith.constant 0 : i32
    %c0_i32_0 = arith.constant 0 : i32
    return %arg0, %arg2, %c0_i32, %arg1 : i32, i32, i32, i32
  }
}

</mosaic_0001>

<llo_original>
// kernel: conv_module_forward.1
$region0: #{conv_module_forward.1}
  #allocation0 [shape = 'u32[]', space=smem, size = 0x4, offset = 0x4, fixed_abs, tag = 'smem constant byte address 0x4 - core index']
  #allocation1 [shape = 'u32[72,128]{1,0:T(1,128)}', space=vmem, size = 0x9000, scoped, tag = 'internal scratch']
  %s0 = inlined_call_operand.vmem [shape: bf16[2,18,18,4], index: 0, kind: input, shape index: {}, may-alias: {0,1,2,3,4,5,6,7,8,9}]
  %s1 = inlined_call_operand.vmem [shape: bf16[2,18,18,4], index: 1, kind: input, shape index: {}, may-alias: {0,1,2,3,4,5,6,7,8,9}]
  %s2 = inlined_call_operand.vmem [shape: bf16[2,18,18,4], index: 2, kind: input, shape index: {}, may-alias: {0,1,2,3,4,5,6,7,8,9}]
  %s3 = inlined_call_operand.vmem [shape: bf16[2,18,18,4], index: 3, kind: input, shape index: {}, may-alias: {0,1,2,3,4,5,6,7,8,9}]
  %s4 = inlined_call_operand.vmem [shape: bf16[2,18,18,4], index: 4, kind: input, shape index: {}, may-alias: {0,1,2,3,4,5,6,7,8,9}]
  %s5 = inlined_call_operand.vmem [shape: bf16[2,18,18,4], index: 5, kind: input, shape index: {}, may-alias: {0,1,2,3,4,5,6,7,8,9}]
  %s6 = inlined_call_operand.vmem [shape: bf16[2,18,18,4], index: 6, kind: input, shape index: {}, may-alias: {0,1,2,3,4,5,6,7,8,9}]
  %s7 = inlined_call_operand.vmem [shape: bf16[2,18,18,4], index: 7, kind: input, shape index: {}, may-alias: {0,1,2,3,4,5,6,7,8,9}]
  %s8 = inlined_call_operand.vmem [shape: bf16[2,18,18,4], index: 8, kind: input, shape index: {}, may-alias: {0,1,2,3,4,5,6,7,8,9}]
  %s9 = inlined_call_operand.vmem [shape: bf16[2,18,18,4], index: 9, kind: input, shape index: {}, may-alias: {0,1,2,3,4,5,6,7,8,9}]
  %s10 = inlined_call_operand.vmem [shape: bf16[3,3,4,128], index: 10, kind: input, shape index: {}]
  %s11 = inlined_call_operand.vmem [shape: f32[1,128], index: 11, kind: input, shape index: {}]
  %s12 = inlined_call_operand.vmem [shape: f32[2,16,16,128], index: 12, kind: output, shape index: {}]
  %s13 = sld [smem:[#allocation0]]
  $region81: #{conv_module_forward.1} parent=0
    _
  %s15 = ssub.s32 1, %s13
  %s16 = scalar_select 0, %s15, %s13
  loop: start=0, step=1, limit=6
  $region2: #{conv_module_forward.1} parent=0 // loop_pre_header
    _
  $region3: #{conv_module_forward.1} parent=0 // loop_header
    %s18 = sphi 0, %s22
    %p19 = scmp.ge.s32.totalorder %s18, 6
    %s25 = sphi 0, %s44
    %s26 = sphi 0, %s40
    %s27 = sphi 0, %s36
    %s28 = sphi 0, %s25
    %s29 = sphi 0, %s26
    %s30 = sphi 0, %s27
    %s31 = sphi 0, %s28
    %s32 = sphi 0, %s29
    %s33 = sphi 0, %s30
    %s51 = sphi 0, %s53
    %s54 = sphi 0, %s51
    %s55 = sphi 0, %s54
    %s71 = sphi 0, %s55
    %s83 = sphi 0, %s85
    %s86 = sphi 0, %s83
    %s87 = sphi 0, %s86
    %s103 = sphi 0, %s87
    %s115 = sphi 0, %s117
    %s118 = sphi 0, %s115
    %s119 = sphi 0, %s118
    %s135 = sphi 0, %s119
    %s147 = sphi 0, %s149
    %s150 = sphi 0, %s147
    %s151 = sphi 0, %s150
    %s167 = sphi 0, %s151
    %s179 = sphi 0, %s181
    %s182 = sphi 0, %s179
    %s183 = sphi 0, %s182
    %s199 = sphi 0, %s183
    %s211 = sphi 0, %s213
    %s214 = sphi 0, %s211
    %s215 = sphi 0, %s214
    %s231 = sphi 0, %s215
    %s243 = sphi 0, %s245
    %s246 = sphi 0, %s243
    %s247 = sphi 0, %s246
    %s263 = sphi 0, %s247
    %s275 = sphi 0, %s277
    %s278 = sphi 0, %s275
    %s279 = sphi 0, %s278
    %s295 = sphi 0, %s279
    %s307 = sphi 0, %s309
    %s310 = sphi 0, %s307
    %s311 = sphi 0, %s310
    %s327 = sphi 0, %s311
    %s339 = sphi 0, %s341
    %s342 = sphi 0, %s339
    %s343 = sphi 0, %s342
    %s359 = sphi 0, %s343
    %s365 = sphi 0, %s367
    %s368 = sphi 0, %s365
    %s369 = sphi 0, %s368
    %s385 = sphi 0, %s369
    %s391 = sphi 0, %s393
    %s394 = sphi 0, %s391
    %s395 = sphi 0, %s394
    %s411 = sphi 0, %s395
    %s421 = sphi 0, %s423
    %s424 = sphi 0, %s421
    %s425 = sphi 0, %s424
    %s441 = sphi 0, %s425
  $region4: #{conv_module_forward.1} parent=0 // loop_header_branch
    %21 = sbr.rel (%p19) target = $region8
  $region5: #{conv_module_forward.1} parent=0 // loop_body
    %s23 = ssub.s32 %s18, 1
    %s24 = ssub.s32 %s18, 2
    %s34 = sadd.s32 1, %s27
    %p35 = scmp.ge.s32.totalorder %s34, 2
    %s36 = scalar_select %p35, 0, %s34
    %s37 = sadd.s32 1, %s26
    %s38 = scalar_select %p35, %s37, %s26
    %p39 = scmp.ge.s32.totalorder %s38, 1
    %s40 = scalar_select %p39, 0, %s38
    %s41 = sadd.s32 1, %s25
    %s42 = scalar_select %p39, %s41, %s25
    %p43 = scmp.ge.s32.totalorder %s42, 2
    %s44 = scalar_select %p43, 0, %s42
    %s45 = smul.u32 %s27, 8
    %s46 = smul.u32 %s36, 8
    %s47 = ssub.s32 %s25, %s44
    %s48 = ssub.s32 %s45, %s46
    %s49 = sor.u32 %s47, %s48
    %p50 = scmp.eq.s32.totalorder %s49, 0
    %s52 = sadd.s32 %s51, 1
    %s53 = scalar_select %p50, %s51, %s52
    %p56 = pneg %p50
    %p57 = scmp.eq.s32.totalorder %s18, 3
    %p58 = por %p56, %p57
    %p59 = scmp.ne.s32.totalorder %s51, %s54
    %p60 = scmp.eq.s32.totalorder %s18, 0
    %p61 = por %p59, %p60
    %p62 = scmp.ne.s32.totalorder %s51, %s54
    %p63 = scmp.eq.s32.totalorder %s23, 3
    %p64 = por %p62, %p63
    %p65 = scmp.ne.s32.totalorder %s54, %s55
    %p66 = scmp.eq.s32.totalorder %s23, 0
    %p67 = por %p65, %p66
    %p68 = scmp.ne.s32.totalorder %s54, %s55
    %p69 = scmp.eq.s32.totalorder %s24, 3
    %p70 = por %p68, %p69
    %p72 = scmp.ne.s32.totalorder %s55, %s71
    %p73 = scmp.eq.s32.totalorder %s24, 0
    %p74 = por %p72, %p73
    %s75 = smul.u32 %s27, 8
    %s76 = sadd.s32 %s75, 1
    %s77 = smul.u32 %s36, 8
    %s78 = sadd.s32 %s77, 1
    %s79 = ssub.s32 %s25, %s44
    %s80 = ssub.s32 %s76, %s78
    %s81 = sor.u32 %s79, %s80
    %p82 = scmp.eq.s32.totalorder %s81, 0
    %s84 = sadd.s32 %s83, 1
    %s85 = scalar_select %p82, %s83, %s84
    %p88 = pneg %p82
    %p89 = scmp.eq.s32.totalorder %s18, 3
    %p90 = por %p88, %p89
    %p91 = scmp.ne.s32.totalorder %s83, %s86
    %p92 = scmp.eq.s32.totalorder %s18, 0
    %p93 = por %p91, %p92
    %p94 = scmp.ne.s32.totalorder %s83, %s86
    %p95 = scmp.eq.s32.totalorder %s23, 3
    %p96 = por %p94, %p95
    %p97 = scmp.ne.s32.totalorder %s86, %s87
    %p98 = scmp.eq.s32.totalorder %s23, 0
    %p99 = por %p97, %p98
    %p100 = scmp.ne.s32.totalorder %s86, %s87
    %p101 = scmp.eq.s32.totalorder %s24, 3
    %p102 = por %p100, %p101
    %p104 = scmp.ne.s32.totalorder %s87, %s103
    %p105 = scmp.eq.s32.totalorder %s24, 0
    %p106 = por %p104, %p105
    %s107 = smul.u32 %s27, 8
    %s108 = sadd.s32 %s107, 2
    %s109 = smul.u32 %s36, 8
    %s110 = sadd.s32 %s109, 2
    %s111 = ssub.s32 %s25, %s44
    %s112 = ssub.s32 %s108, %s110
    %s113 = sor.u32 %s111, %s112
    %p114 = scmp.eq.s32.totalorder %s113, 0
    %s116 = sadd.s32 %s115, 1
    %s117 = scalar_select %p114, %s115, %s116
    %p120 = pneg %p114
    %p121 = scmp.eq.s32.totalorder %s18, 3
    %p122 = por %p120, %p121
    %p123 = scmp.ne.s32.totalorder %s115, %s118
    %p124 = scmp.eq.s32.totalorder %s18, 0
    %p125 = por %p123, %p124
    %p126 = scmp.ne.s32.totalorder %s115, %s118
    %p127 = scmp.eq.s32.totalorder %s23, 3
    %p128 = por %p126, %p127
    %p129 = scmp.ne.s32.totalorder %s118, %s119
    %p130 = scmp.eq.s32.totalorder %s23, 0
    %p131 = por %p129, %p130
    %p132 = scmp.ne.s32.totalorder %s118, %s119
    %p133 = scmp.eq.s32.totalorder %s24, 3
    %p134 = por %p132, %p133
    %p136 = scmp.ne.s32.totalorder %s119, %s135
    %p137 = scmp.eq.s32.totalorder %s24, 0
    %p138 = por %p136, %p137
    %s139 = smul.u32 %s27, 8
    %s140 = sadd.s32 %s139, 3
    %s141 = smul.u32 %s36, 8
    %s142 = sadd.s32 %s141, 3
    %s143 = ssub.s32 %s25, %s44
    %s144 = ssub.s32 %s140, %s142
    %s145 = sor.u32 %s143, %s144
    %p146 = scmp.eq.s32.totalorder %s145, 0
    %s148 = sadd.s32 %s147, 1
    %s149 = scalar_select %p146, %s147, %s148
    %p152 = pneg %p146
    %p153 = scmp.eq.s32.totalorder %s18, 3
    %p154 = por %p152, %p153
    %p155 = scmp.ne.s32.totalorder %s147, %s150
    %p156 = scmp.eq.s32.totalorder %s18, 0
    %p157 = por %p155, %p156
    %p158 = scmp.ne.s32.totalorder %s147, %s150
    %p159 = scmp.eq.s32.totalorder %s23, 3
    %p160 = por %p158, %p159
    %p161 = scmp.ne.s32.totalorder %s150, %s151
    %p162 = scmp.eq.s32.totalorder %s23, 0
    %p163 = por %p161, %p162
    %p164 = scmp.ne.s32.totalorder %s150, %s151
    %p165 = scmp.eq.s32.totalorder %s24, 3
    %p166 = por %p164, %p165
    %p168 = scmp.ne.s32.totalorder %s151, %s167
    %p169 = scmp.eq.s32.totalorder %s24, 0
    %p170 = por %p168, %p169
    %s171 = smul.u32 %s27, 8
    %s172 = sadd.s32 %s171, 4
    %s173 = smul.u32 %s36, 8
    %s174 = sadd.s32 %s173, 4
    %s175 = ssub.s32 %s25, %s44
    %s176 = ssub.s32 %s172, %s174
    %s177 = sor.u32 %s175, %s176
    %p178 = scmp.eq.s32.totalorder %s177, 0
    %s180 = sadd.s32 %s179, 1
    %s181 = scalar_select %p178, %s179, %s180
    %p184 = pneg %p178
    %p185 = scmp.eq.s32.totalorder %s18, 3
    %p186 = por %p184, %p185
    %p187 = scmp.ne.s32.totalorder %s179, %s182
    %p188 = scmp.eq.s32.totalorder %s18, 0
    %p189 = por %p187, %p188
    %p190 = scmp.ne.s32.totalorder %s179, %s182
    %p191 = scmp.eq.s32.totalorder %s23, 3
    %p192 = por %p190, %p191
    %p193 = scmp.ne.s32.totalorder %s182, %s183
    %p194 = scmp.eq.s32.totalorder %s23, 0
    %p195 = por %p193, %p194
    %p196 = scmp.ne.s32.totalorder %s182, %s183
    %p197 = scmp.eq.s32.totalorder %s24, 3
    %p198 = por %p196, %p197
    %p200 = scmp.ne.s32.totalorder %s183, %s199
    %p201 = scmp.eq.s32.totalorder %s24, 0
    %p202 = por %p200, %p201
    %s203 = smul.u32 %s27, 8
    %s204 = sadd.s32 %s203, 5
    %s205 = smul.u32 %s36, 8
    %s206 = sadd.s32 %s205, 5
    %s207 = ssub.s32 %s25, %s44
    %s208 = ssub.s32 %s204, %s206
    %s209 = sor.u32 %s207, %s208
    %p210 = scmp.eq.s32.totalorder %s209, 0
    %s212 = sadd.s32 %s211, 1
    %s213 = scalar_select %p210, %s211, %s212
    %p216 = pneg %p210
    %p217 = scmp.eq.s32.totalorder %s18, 3
    %p218 = por %p216, %p217
    %p219 = scmp.ne.s32.totalorder %s211, %s214
    %p220 = scmp.eq.s32.totalorder %s18, 0
    %p221 = por %p219, %p220
    %p222 = scmp.ne.s32.totalorder %s211, %s214
    %p223 = scmp.eq.s32.totalorder %s23, 3
    %p224 = por %p222, %p223
    %p225 = scmp.ne.s32.totalorder %s214, %s215
    %p226 = scmp.eq.s32.totalorder %s23, 0
    %p227 = por %p225, %p226
    %p228 = scmp.ne.s32.totalorder %s214, %s215
    %p229 = scmp.eq.s32.totalorder %s24, 3
    %p230 = por %p228, %p229
    %p232 = scmp.ne.s32.totalorder %s215, %s231
    %p233 = scmp.eq.s32.totalorder %s24, 0
    %p234 = por %p232, %p233
    %s235 = smul.u32 %s27, 8
    %s236 = sadd.s32 %s235, 6
    %s237 = smul.u32 %s36, 8
    %s238 = sadd.s32 %s237, 6
    %s239 = ssub.s32 %s25, %s44
    %s240 = ssub.s32 %s236, %s238
    %s241 = sor.u32 %s239, %s240
    %p242 = scmp.eq.s32.totalorder %s241, 0
    %s244 = sadd.s32 %s243, 1
    %s245 = scalar_select %p242, %s243, %s244
    %p248 = pneg %p242
    %p249 = scmp.eq.s32.totalorder %s18, 3
    %p250 = por %p248, %p249
    %p251 = scmp.ne.s32.totalorder %s243, %s246
    %p252 = scmp.eq.s32.totalorder %s18, 0
    %p253 = por %p251, %p252
    %p254 = scmp.ne.s32.totalorder %s243, %s246
    %p255 = scmp.eq.s32.totalorder %s23, 3
    %p256 = por %p254, %p255
    %p257 = scmp.ne.s32.totalorder %s246, %s247
    %p258 = scmp.eq.s32.totalorder %s23, 0
    %p259 = por %p257, %p258
    %p260 = scmp.ne.s32.totalorder %s246, %s247
    %p261 = scmp.eq.s32.totalorder %s24, 3
    %p262 = por %p260, %p261
    %p264 = scmp.ne.s32.totalorder %s247, %s263
    %p265 = scmp.eq.s32.totalorder %s24, 0
    %p266 = por %p264, %p265
    %s267 = smul.u32 %s27, 8
    %s268 = sadd.s32 %s267, 7
    %s269 = smul.u32 %s36, 8
    %s270 = sadd.s32 %s269, 7
    %s271 = ssub.s32 %s25, %s44
    %s272 = ssub.s32 %s268, %s270
    %s273 = sor.u32 %s271, %s272
    %p274 = scmp.eq.s32.totalorder %s273, 0
    %s276 = sadd.s32 %s275, 1
    %s277 = scalar_select %p274, %s275, %s276
    %p280 = pneg %p274
    %p281 = scmp.eq.s32.totalorder %s18, 3
    %p282 = por %p280, %p281
    %p283 = scmp.ne.s32.totalorder %s275, %s278
    %p284 = scmp.eq.s32.totalorder %s18, 0
    %p285 = por %p283, %p284
    %p286 = scmp.ne.s32.totalorder %s275, %s278
    %p287 = scmp.eq.s32.totalorder %s23, 3
    %p288 = por %p286, %p287
    %p289 = scmp.ne.s32.totalorder %s278, %s279
    %p290 = scmp.eq.s32.totalorder %s23, 0
    %p291 = por %p289, %p290
    %p292 = scmp.ne.s32.totalorder %s278, %s279
    %p293 = scmp.eq.s32.totalorder %s24, 3
    %p294 = por %p292, %p293
    %p296 = scmp.ne.s32.totalorder %s279, %s295
    %p297 = scmp.eq.s32.totalorder %s24, 0
    %p298 = por %p296, %p297
    %s299 = smul.u32 %s27, 8
    %s300 = sadd.s32 %s299, 8
    %s301 = smul.u32 %s36, 8
    %s302 = sadd.s32 %s301, 8
    %s303 = ssub.s32 %s25, %s44
    %s304 = ssub.s32 %s300, %s302
    %s305 = sor.u32 %s303, %s304
    %p306 = scmp.eq.s32.totalorder %s305, 0
    %s308 = sadd.s32 %s307, 1
    %s309 = scalar_select %p306, %s307, %s308
    %p312 = pneg %p306
    %p313 = scmp.eq.s32.totalorder %s18, 3
    %p314 = por %p312, %p313
    %p315 = scmp.ne.s32.totalorder %s307, %s310
    %p316 = scmp.eq.s32.totalorder %s18, 0
    %p317 = por %p315, %p316
    %p318 = scmp.ne.s32.totalorder %s307, %s310
    %p319 = scmp.eq.s32.totalorder %s23, 3
    %p320 = por %p318, %p319
    %p321 = scmp.ne.s32.totalorder %s310, %s311
    %p322 = scmp.eq.s32.totalorder %s23, 0
    %p323 = por %p321, %p322
    %p324 = scmp.ne.s32.totalorder %s310, %s311
    %p325 = scmp.eq.s32.totalorder %s24, 3
    %p326 = por %p324, %p325
    %p328 = scmp.ne.s32.totalorder %s311, %s327
    %p329 = scmp.eq.s32.totalorder %s24, 0
    %p330 = por %p328, %p329
    %s331 = smul.u32 %s27, 8
    %s332 = sadd.s32 %s331, 9
    %s333 = smul.u32 %s36, 8
    %s334 = sadd.s32 %s333, 9
    %s335 = ssub.s32 %s25, %s44
    %s336 = ssub.s32 %s332, %s334
    %s337 = sor.u32 %s335, %s336
    %p338 = scmp.eq.s32.totalorder %s337, 0
    %s340 = sadd.s32 %s339, 1
    %s341 = scalar_select %p338, %s339, %s340
    %p344 = pneg %p338
    %p345 = scmp.eq.s32.totalorder %s18, 3
    %p346 = por %p344, %p345
    %p347 = scmp.ne.s32.totalorder %s339, %s342
    %p348 = scmp.eq.s32.totalorder %s18, 0
    %p349 = por %p347, %p348
    %p350 = scmp.ne.s32.totalorder %s339, %s342
    %p351 = scmp.eq.s32.totalorder %s23, 3
    %p352 = por %p350, %p351
    %p353 = scmp.ne.s32.totalorder %s342, %s343
    %p354 = scmp.eq.s32.totalorder %s23, 0
    %p355 = por %p353, %p354
    %p356 = scmp.ne.s32.totalorder %s342, %s343
    %p357 = scmp.eq.s32.totalorder %s24, 3
    %p358 = por %p356, %p357
    %p360 = scmp.ne.s32.totalorder %s343, %s359
    %p361 = scmp.eq.s32.totalorder %s24, 0
    %p362 = por %p360, %p361
    %s363 = ssub.s32 %s26, %s40
    %p364 = scmp.eq.s32.totalorder %s363, 0
    %s366 = sadd.s32 %s365, 1
    %s367 = scalar_select %p364, %s365, %s366
    %p370 = pneg %p364
    %p371 = scmp.eq.s32.totalorder %s18, 3
    %p372 = por %p370, %p371
    %p373 = scmp.ne.s32.totalorder %s365, %s368
    %p374 = scmp.eq.s32.totalorder %s18, 0
    %p375 = por %p373, %p374
    %p376 = scmp.ne.s32.totalorder %s365, %s368
    %p377 = scmp.eq.s32.totalorder %s23, 3
    %p378 = por %p376, %p377
    %p379 = scmp.ne.s32.totalorder %s368, %s369
    %p380 = scmp.eq.s32.totalorder %s23, 0
    %p381 = por %p379, %p380
    %p382 = scmp.ne.s32.totalorder %s368, %s369
    %p383 = scmp.eq.s32.totalorder %s24, 3
    %p384 = por %p382, %p383
    %p386 = scmp.ne.s32.totalorder %s369, %s385
    %p387 = scmp.eq.s32.totalorder %s24, 0
    %p388 = por %p386, %p387
    %s389 = ssub.s32 %s26, %s40
    %p390 = scmp.eq.s32.totalorder %s389, 0
    %s392 = sadd.s32 %s391, 1
    %s393 = scalar_select %p390, %s391, %s392
    %p396 = pneg %p390
    %p397 = scmp.eq.s32.totalorder %s18, 3
    %p398 = por %p396, %p397
    %p399 = scmp.ne.s32.totalorder %s391, %s394
    %p400 = scmp.eq.s32.totalorder %s18, 0
    %p401 = por %p399, %p400
    %p402 = scmp.ne.s32.totalorder %s391, %s394
    %p403 = scmp.eq.s32.totalorder %s23, 3
    %p404 = por %p402, %p403
    %p405 = scmp.ne.s32.totalorder %s394, %s395
    %p406 = scmp.eq.s32.totalorder %s23, 0
    %p407 = por %p405, %p406
    %p408 = scmp.ne.s32.totalorder %s394, %s395
    %p409 = scmp.eq.s32.totalorder %s24, 3
    %p410 = por %p408, %p409
    %p412 = scmp.ne.s32.totalorder %s395, %s411
    %p413 = scmp.eq.s32.totalorder %s24, 0
    %p414 = por %p412, %p413
    %s415 = ssub.s32 %s25, %s44
    %s416 = ssub.s32 %s27, %s36
    %s417 = sor.u32 %s415, %s416
    %s418 = ssub.s32 %s26, %s40
    %s419 = sor.u32 %s417, %s418
    %p420 = scmp.eq.s32.totalorder %s419, 0
    %s422 = sadd.s32 %s421, 1
    %s423 = scalar_select %p420, %s421, %s422
    %p426 = pneg %p420
    %p427 = scmp.eq.s32.totalorder %s18, 3
    %p428 = por %p426, %p427
    %p429 = scmp.ne.s32.totalorder %s421, %s424
    %p430 = scmp.eq.s32.totalorder %s18, 0
    %p431 = por %p429, %p430
    %p432 = scmp.ne.s32.totalorder %s421, %s424
    %p433 = scmp.eq.s32.totalorder %s23, 3
    %p434 = por %p432, %p433
    %p435 = scmp.ne.s32.totalorder %s424, %s425
    %p436 = scmp.eq.s32.totalorder %s23, 0
    %p437 = por %p435, %p436
    %p438 = scmp.ne.s32.totalorder %s424, %s425
    %p439 = scmp.eq.s32.totalorder %s24, 3
    %p440 = por %p438, %p439
    %p442 = scmp.ne.s32.totalorder %s425, %s441
    %p443 = scmp.eq.s32.totalorder %s24, 0
    %p444 = por %p442, %p443
    %p445 = scmp.le.s32.totalorder 1, %s18
    %p446 = scmp.lt.s32.totalorder %s18, 5
    %p447 = pnand %p445, %p446
    %p448 = pneg %p447
    // Predicated region
    $region9: #{conv_module_forward.1} parent=5 // pred_check
      _
    $region10: #{conv_module_forward.1} parent=5 // pred_check_branch
      %450 = sbr.rel (%p447) target = $region12
    $region11: #{conv_module_forward.1} parent=5 // pred_region
      %s451 = ssub.s32 %s18, 1
      // Predicated region
      $region13: #{conv_module_forward.1} parent=11 // pred_check
        %p452 = pneg %p381
      $region14: #{conv_module_forward.1} parent=11 // pred_check_branch
        %454 = sbr.rel (%p452) target = $region16
      $region15: #{conv_module_forward.1} parent=11 // pred_region
        %p455 = scmp.lt.s32.totalorder %s29, 0
        %s456 = scalar_select %p455, %s29, 0
        %s457 = smul.addr %s456, 2
        %s458 = scalar_lea.vmem %s10, %s457
      $region16: #{conv_module_forward.1} parent=11 // pred_fallthru
        _
      // Predicated region
      $region17: #{conv_module_forward.1} parent=11 // pred_check
        %p459 = pneg %p407
      $region18: #{conv_module_forward.1} parent=11 // pred_check_branch
        %461 = sbr.rel (%p459) target = $region20
      $region19: #{conv_module_forward.1} parent=11 // pred_region
        %p462 = scmp.lt.s32.totalorder %s29, 0
        %s463 = scalar_select %p462, %s29, 0
        %s464 = scalar_lea.vmem %s11, %s463
      $region20: #{conv_module_forward.1} parent=11 // pred_fallthru
        _
    $region12: #{conv_module_forward.1} parent=5 // pred_fallthru
      _
    %p465 = scmp.lt.s32.totalorder %s18, 4
    // Predicated region
    $region21: #{conv_module_forward.1} parent=5 // pred_check
      %p466 = pneg %p465
    $region22: #{conv_module_forward.1} parent=5 // pred_check_branch
      %468 = sbr.rel (%p466) target = $region24
    $region23: #{conv_module_forward.1} parent=5 // pred_region
      // Predicated region
      $region25: #{conv_module_forward.1} parent=23 // pred_check
        %p469 = pneg %p61
      $region26: #{conv_module_forward.1} parent=23 // pred_check_branch
        %471 = sbr.rel (%p469) target = $region28
      $region27: #{conv_module_forward.1} parent=23 // pred_region
        %s472 = smul.u32 %s27, 8
        %p473 = scmp.lt.s32.totalorder %s25, 1
        %s474 = scalar_select %p473, %s25, 1
        %p475 = scmp.lt.s32.totalorder %s472, 17
        %s476 = scalar_select %p475, %s472, 17
        %s477 = smul.addr %s476, 3
        %s478 = smul.addr %s474, 54
        %s479 = sadd.s32 %s477, %s478
        %s480 = smul.addr %s479, 4
        %s481 = scalar_lea.vmem %s0, %s480
        %s482 = smul.u32 %s27, 8
      $region28: #{conv_module_forward.1} parent=23 // pred_fallthru
        _
      // Predicated region
      $region29: #{conv_module_forward.1} parent=23 // pred_check
        %p483 = pneg %p93
      $region30: #{conv_module_forward.1} parent=23 // pred_check_branch
        %485 = sbr.rel (%p483) target = $region32
      $region31: #{conv_module_forward.1} parent=23 // pred_region
        %s486 = smul.u32 %s27, 8
        %s487 = sadd.s32 %s486, 1
        %p488 = scmp.lt.s32.totalorder %s25, 1
        %s489 = scalar_select %p488, %s25, 1
        %p490 = scmp.lt.s32.totalorder %s487, 17
        %s491 = scalar_select %p490, %s487, 17
        %s492 = smul.addr %s491, 3
        %s493 = smul.addr %s489, 54
        %s494 = sadd.s32 %s492, %s493
        %s495 = smul.addr %s494, 4
        %s496 = scalar_lea.vmem %s1, %s495
        %s497 = smul.u32 %s27, 8
        %s498 = sadd.s32 %s497, 1
      $region32: #{conv_module_forward.1} parent=23 // pred_fallthru
        _
      // Predicated region
      $region33: #{conv_module_forward.1} parent=23 // pred_check
        %p499 = pneg %p125
      $region34: #{conv_module_forward.1} parent=23 // pred_check_branch
        %501 = sbr.rel (%p499) target = $region36
      $region35: #{conv_module_forward.1} parent=23 // pred_region
        %s502 = smul.u32 %s27, 8
        %s503 = sadd.s32 %s502, 2
        %p504 = scmp.lt.s32.totalorder %s25, 1
        %s505 = scalar_select %p504, %s25, 1
        %p506 = scmp.lt.s32.totalorder %s503, 17
        %s507 = scalar_select %p506, %s503, 17
        %s508 = smul.addr %s507, 3
        %s509 = smul.addr %s505, 54
        %s510 = sadd.s32 %s508, %s509
        %s511 = smul.addr %s510, 4
        %s512 = scalar_lea.vmem %s2, %s511
        %s513 = smul.u32 %s27, 8
        %s514 = sadd.s32 %s513, 2
      $region36: #{conv_module_forward.1} parent=23 // pred_fallthru
        _
      // Predicated region
      $region37: #{conv_module_forward.1} parent=23 // pred_check
        %p515 = pneg %p157
      $region38: #{conv_module_forward.1} parent=23 // pred_check_branch
        %517 = sbr.rel (%p515) target = $region40
      $region39: #{conv_module_forward.1} parent=23 // pred_region
        %s518 = smul.u32 %s27, 8
        %s519 = sadd.s32 %s518, 3
        %p520 = scmp.lt.s32.totalorder %s25, 1
        %s521 = scalar_select %p520, %s25, 1
        %p522 = scmp.lt.s32.totalorder %s519, 17
        %s523 = scalar_select %p522, %s519, 17
        %s524 = smul.addr %s523, 3
        %s525 = smul.addr %s521, 54
        %s526 = sadd.s32 %s524, %s525
        %s527 = smul.addr %s526, 4
        %s528 = scalar_lea.vmem %s3, %s527
        %s529 = smul.u32 %s27, 8
        %s530 = sadd.s32 %s529, 3
      $region40: #{conv_module_forward.1} parent=23 // pred_fallthru
        _
      // Predicated region
      $region41: #{conv_module_forward.1} parent=23 // pred_check
        %p531 = pneg %p189
      $region42: #{conv_module_forward.1} parent=23 // pred_check_branch
        %533 = sbr.rel (%p531) target = $region44
      $region43: #{conv_module_forward.1} parent=23 // pred_region
        %s534 = smul.u32 %s27, 8
        %s535 = sadd.s32 %s534, 4
        %p536 = scmp.lt.s32.totalorder %s25, 1
        %s537 = scalar_select %p536, %s25, 1
        %p538 = scmp.lt.s32.totalorder %s535, 17
        %s539 = scalar_select %p538, %s535, 17
        %s540 = smul.addr %s539, 3
        %s541 = smul.addr %s537, 54
        %s542 = sadd.s32 %s540, %s541
        %s543 = smul.addr %s542, 4
        %s544 = scalar_lea.vmem %s4, %s543
        %s545 = smul.u32 %s27, 8
        %s546 = sadd.s32 %s545, 4
      $region44: #{conv_module_forward.1} parent=23 // pred_fallthru
        _
      // Predicated region
      $region45: #{conv_module_forward.1} parent=23 // pred_check
        %p547 = pneg %p221
      $region46: #{conv_module_forward.1} parent=23 // pred_check_branch
        %549 = sbr.rel (%p547) target = $region48
      $region47: #{conv_module_forward.1} parent=23 // pred_region
        %s550 = smul.u32 %s27, 8
        %s551 = sadd.s32 %s550, 5
        %p552 = scmp.lt.s32.totalorder %s25, 1
        %s553 = scalar_select %p552, %s25, 1
        %p554 = scmp.lt.s32.totalorder %s551, 17
        %s555 = scalar_select %p554, %s551, 17
        %s556 = smul.addr %s555, 3
        %s557 = smul.addr %s553, 54
        %s558 = sadd.s32 %s556, %s557
        %s559 = smul.addr %s558, 4
        %s560 = scalar_lea.vmem %s5, %s559
        %s561 = smul.u32 %s27, 8
        %s562 = sadd.s32 %s561, 5
      $region48: #{conv_module_forward.1} parent=23 // pred_fallthru
        _
      // Predicated region
      $region49: #{conv_module_forward.1} parent=23 // pred_check
        %p563 = pneg %p253
      $region50: #{conv_module_forward.1} parent=23 // pred_check_branch
        %565 = sbr.rel (%p563) target = $region52
      $region51: #{conv_module_forward.1} parent=23 // pred_region
        %s566 = smul.u32 %s27, 8
        %s567 = sadd.s32 %s566, 6
        %p568 = scmp.lt.s32.totalorder %s25, 1
        %s569 = scalar_select %p568, %s25, 1
        %p570 = scmp.lt.s32.totalorder %s567, 17
        %s571 = scalar_select %p570, %s567, 17
        %s572 = smul.addr %s571, 3
        %s573 = smul.addr %s569, 54
        %s574 = sadd.s32 %s572, %s573
        %s575 = smul.addr %s574, 4
        %s576 = scalar_lea.vmem %s6, %s575
        %s577 = smul.u32 %s27, 8
        %s578 = sadd.s32 %s577, 6
      $region52: #{conv_module_forward.1} parent=23 // pred_fallthru
        _
      // Predicated region
      $region53: #{conv_module_forward.1} parent=23 // pred_check
        %p579 = pneg %p285
      $region54: #{conv_module_forward.1} parent=23 // pred_check_branch
        %581 = sbr.rel (%p579) target = $region56
      $region55: #{conv_module_forward.1} parent=23 // pred_region
        %s582 = smul.u32 %s27, 8
        %s583 = sadd.s32 %s582, 7
        %p584 = scmp.lt.s32.totalorder %s25, 1
        %s585 = scalar_select %p584, %s25, 1
        %p586 = scmp.lt.s32.totalorder %s583, 17
        %s587 = scalar_select %p586, %s583, 17
        %s588 = smul.addr %s587, 3
        %s589 = smul.addr %s585, 54
        %s590 = sadd.s32 %s588, %s589
        %s591 = smul.addr %s590, 4
        %s592 = scalar_lea.vmem %s7, %s591
        %s593 = smul.u32 %s27, 8
        %s594 = sadd.s32 %s593, 7
      $region56: #{conv_module_forward.1} parent=23 // pred_fallthru
        _
      // Predicated region
      $region57: #{conv_module_forward.1} parent=23 // pred_check
        %p595 = pneg %p317
      $region58: #{conv_module_forward.1} parent=23 // pred_check_branch
        %597 = sbr.rel (%p595) target = $region60
      $region59: #{conv_module_forward.1} parent=23 // pred_region
        %s598 = smul.u32 %s27, 8
        %s599 = sadd.s32 %s598, 8
        %p600 = scmp.lt.s32.totalorder %s25, 1
        %s601 = scalar_select %p600, %s25, 1
        %p602 = scmp.lt.s32.totalorder %s599, 17
        %s603 = scalar_select %p602, %s599, 17
        %s604 = smul.addr %s603, 3
        %s605 = smul.addr %s601, 54
        %s606 = sadd.s32 %s604, %s605
        %s607 = smul.addr %s606, 4
        %s608 = scalar_lea.vmem %s8, %s607
        %s609 = smul.u32 %s27, 8
        %s610 = sadd.s32 %s609, 8
      $region60: #{conv_module_forward.1} parent=23 // pred_fallthru
        _
      // Predicated region
      $region61: #{conv_module_forward.1} parent=23 // pred_check
        %p611 = pneg %p349
      $region62: #{conv_module_forward.1} parent=23 // pred_check_branch
        %613 = sbr.rel (%p611) target = $region64
      $region63: #{conv_module_forward.1} parent=23 // pred_region
        %s614 = smul.u32 %s27, 8
        %s615 = sadd.s32 %s614, 9
        %p616 = scmp.lt.s32.totalorder %s25, 1
        %s617 = scalar_select %p616, %s25, 1
        %p618 = scmp.lt.s32.totalorder %s615, 17
        %s619 = scalar_select %p618, %s615, 17
        %s620 = smul.addr %s619, 3
        %s621 = smul.addr %s617, 54
        %s622 = sadd.s32 %s620, %s621
        %s623 = smul.addr %s622, 4
        %s624 = scalar_lea.vmem %s9, %s623
        %s625 = smul.u32 %s27, 8
        %s626 = sadd.s32 %s625, 9
      $region64: #{conv_module_forward.1} parent=23 // pred_fallthru
        _
    $region24: #{conv_module_forward.1} parent=5 // pred_fallthru
      _
    %p627 = scmp.le.s32.totalorder 1, %s18
    %p628 = scmp.lt.s32.totalorder %s18, 5
    %p629 = pnand %p627, %p628
    %p630 = pneg %p629
    // Predicated region
    $region65: #{conv_module_forward.1} parent=5 // pred_check
      _
    $region66: #{conv_module_forward.1} parent=5 // pred_check_branch
      %632 = sbr.rel (%p629) target = $region68
    $region67: #{conv_module_forward.1} parent=5 // pred_region
      %s633 = ssub.s32 %s18, 1
      %s634 = smul.u32 %s30, 8
      %p635 = scmp.lt.s32.totalorder %s28, 1
      %s636 = scalar_select %p635, %s28, 1
      %p637 = scmp.lt.s32.totalorder %s634, 17
      %s638 = scalar_select %p637, %s634, 17
      %s639 = smul.addr %s638, 3
      %s640 = smul.addr %s636, 54
      %s641 = sadd.s32 %s639, %s640
      %s642 = smul.addr %s641, 4
      %s643 = scalar_lea.vmem %s0, %s642
      %p644 = pneg %p67
      %p645 = pneg %p64
      %s646 = smul.u32 %s30, 8
      %s647 = sadd.s32 %s646, 1
      %p648 = scmp.lt.s32.totalorder %s28, 1
      %s649 = scalar_select %p648, %s28, 1
      %p650 = scmp.lt.s32.totalorder %s647, 17
      %s651 = scalar_select %p650, %s647, 17
      %s652 = smul.addr %s651, 3
      %s653 = smul.addr %s649, 54
      %s654 = sadd.s32 %s652, %s653
      %s655 = smul.addr %s654, 4
      %s656 = scalar_lea.vmem %s1, %s655
      %p657 = pneg %p99
      %p658 = pneg %p96
      %s659 = smul.u32 %s30, 8
      %s660 = sadd.s32 %s659, 2
      %p661 = scmp.lt.s32.totalorder %s28, 1
      %s662 = scalar_select %p661, %s28, 1
      %p663 = scmp.lt.s32.totalorder %s660, 17
      %s664 = scalar_select %p663, %s660, 17
      %s665 = smul.addr %s664, 3
      %s666 = smul.addr %s662, 54
      %s667 = sadd.s32 %s665, %s666
      %s668 = smul.addr %s667, 4
      %s669 = scalar_lea.vmem %s2, %s668
      %p670 = pneg %p131
      %p671 = pneg %p128
      %s672 = smul.u32 %s30, 8
      %s673 = sadd.s32 %s672, 3
      %p674 = scmp.lt.s32.totalorder %s28, 1
      %s675 = scalar_select %p674, %s28, 1
      %p676 = scmp.lt.s32.totalorder %s673, 17
      %s677 = scalar_select %p676, %s673, 17
      %s678 = smul.addr %s677, 3
      %s679 = smul.addr %s675, 54
      %s680 = sadd.s32 %s678, %s679
      %s681 = smul.addr %s680, 4
      %s682 = scalar_lea.vmem %s3, %s681
      %p683 = pneg %p163
      %p684 = pneg %p160
      %s685 = smul.u32 %s30, 8
      %s686 = sadd.s32 %s685, 4
      %p687 = scmp.lt.s32.totalorder %s28, 1
      %s688 = scalar_select %p687, %s28, 1
      %p689 = scmp.lt.s32.totalorder %s686, 17
      %s690 = scalar_select %p689, %s686, 17
      %s691 = smul.addr %s690, 3
      %s692 = smul.addr %s688, 54
      %s693 = sadd.s32 %s691, %s692
      %s694 = smul.addr %s693, 4
      %s695 = scalar_lea.vmem %s4, %s694
      %p696 = pneg %p195
      %p697 = pneg %p192
      %s698 = smul.u32 %s30, 8
      %s699 = sadd.s32 %s698, 5
      %p700 = scmp.lt.s32.totalorder %s28, 1
      %s701 = scalar_select %p700, %s28, 1
      %p702 = scmp.lt.s32.totalorder %s699, 17
      %s703 = scalar_select %p702, %s699, 17
      %s704 = smul.addr %s703, 3
      %s705 = smul.addr %s701, 54
      %s706 = sadd.s32 %s704, %s705
      %s707 = smul.addr %s706, 4
      %s708 = scalar_lea.vmem %s5, %s707
      %p709 = pneg %p227
      %p710 = pneg %p224
      %s711 = smul.u32 %s30, 8
      %s712 = sadd.s32 %s711, 6
      %p713 = scmp.lt.s32.totalorder %s28, 1
      %s714 = scalar_select %p713, %s28, 1
      %p715 = scmp.lt.s32.totalorder %s712, 17
      %s716 = scalar_select %p715, %s712, 17
      %s717 = smul.addr %s716, 3
      %s718 = smul.addr %s714, 54
      %s719 = sadd.s32 %s717, %s718
      %s720 = smul.addr %s719, 4
      %s721 = scalar_lea.vmem %s6, %s720
      %p722 = pneg %p259
      %p723 = pneg %p256
      %s724 = smul.u32 %s30, 8
      %s725 = sadd.s32 %s724, 7
      %p726 = scmp.lt.s32.totalorder %s28, 1
      %s727 = scalar_select %p726, %s28, 1
      %p728 = scmp.lt.s32.totalorder %s725, 17
      %s729 = scalar_select %p728, %s725, 17
      %s730 = smul.addr %s729, 3
      %s731 = smul.addr %s727, 54
      %s732 = sadd.s32 %s730, %s731
      %s733 = smul.addr %s732, 4
      %s734 = scalar_lea.vmem %s7, %s733
      %p735 = pneg %p291
      %p736 = pneg %p288
      %s737 = smul.u32 %s30, 8
      %s738 = sadd.s32 %s737, 8
      %p739 = scmp.lt.s32.totalorder %s28, 1
      %s740 = scalar_select %p739, %s28, 1
      %p741 = scmp.lt.s32.totalorder %s738, 17
      %s742 = scalar_select %p741, %s738, 17
      %s743 = smul.addr %s742, 3
      %s744 = smul.addr %s740, 54
      %s745 = sadd.s32 %s743, %s744
      %s746 = smul.addr %s745, 4
      %s747 = scalar_lea.vmem %s8, %s746
      %p748 = pneg %p323
      %p749 = pneg %p320
      %s750 = smul.u32 %s30, 8
      %s751 = sadd.s32 %s750, 9
      %p752 = scmp.lt.s32.totalorder %s28, 1
      %s753 = scalar_select %p752, %s28, 1
      %p754 = scmp.lt.s32.totalorder %s751, 17
      %s755 = scalar_select %p754, %s751, 17
      %s756 = smul.addr %s755, 3
      %s757 = smul.addr %s753, 54
      %s758 = sadd.s32 %s756, %s757
      %s759 = smul.addr %s758, 4
      %s760 = scalar_lea.vmem %s9, %s759
      %p761 = pneg %p355
      %p762 = pneg %p352
      %p763 = scmp.lt.s32.totalorder %s29, 0
      %s764 = scalar_select %p763, %s29, 0
      %s765 = smul.addr %s764, 2
      %s766 = scalar_lea.vmem %s10, %s765
      %p767 = pneg %p381
      %p768 = pneg %p378
      %p769 = scmp.lt.s32.totalorder %s29, 0
      %s770 = scalar_select %p769, %s29, 0
      %s771 = scalar_lea.vmem %s11, %s770
      %p772 = pneg %p407
      %p773 = pneg %p404
      %p774 = pneg %p437
      %p775 = pneg %p434
      %s776 = smul.u32 8, %s30
      %p777 = scmp.lt.s32.totalorder %s28, 1
      %s778 = scalar_select %p777, %s28, 1
      %p779 = scmp.lt.s32.totalorder %s776, 15
      %s780 = scalar_select %p779, %s776, 15
      %p781 = scmp.lt.s32.totalorder %s29, 0
      %s782 = scalar_select %p781, %s29, 0
      %s783 = smul.addr %s780, 2
      %s784 = sadd.s32 %s782, %s783
      %s785 = smul.addr %s778, 32
      %s786 = sadd.s32 %s784, %s785
      %s787 = smul.addr %s786, 8
      %s788 = scalar_lea.vmem %s12, %s787
      %s789 = smul.u32 %s30, 8
      %p790 = scmp.lt.s32.totalorder %s28, 1
      %s791 = scalar_select %p790, %s28, 1
      %p792 = scmp.lt.s32.totalorder %s789, 17
      %s793 = scalar_select %p792, %s789, 17
      %s794 = smul.addr %s793, 3
      %s795 = smul.addr %s791, 54
      %s796 = sadd.s32 %s794, %s795
      %s797 = smul.addr %s796, 4
      %s798 = scalar_lea.vmem %s0, %s797
      %s799 = smul.u32 %s30, 8
      %s800 = smul.u32 %s30, 8
      %s801 = sadd.s32 %s800, 1
      %p802 = scmp.lt.s32.totalorder %s28, 1
      %s803 = scalar_select %p802, %s28, 1
      %p804 = scmp.lt.s32.totalorder %s801, 17
      %s805 = scalar_select %p804, %s801, 17
      %s806 = smul.addr %s805, 3
      %s807 = smul.addr %s803, 54
      %s808 = sadd.s32 %s806, %s807
      %s809 = smul.addr %s808, 4
      %s810 = scalar_lea.vmem %s1, %s809
      %s811 = smul.u32 %s30, 8
      %s812 = sadd.s32 %s811, 1
      %s813 = smul.u32 %s30, 8
      %s814 = sadd.s32 %s813, 2
      %p815 = scmp.lt.s32.totalorder %s28, 1
      %s816 = scalar_select %p815, %s28, 1
      %p817 = scmp.lt.s32.totalorder %s814, 17
      %s818 = scalar_select %p817, %s814, 17
      %s819 = smul.addr %s818, 3
      %s820 = smul.addr %s816, 54
      %s821 = sadd.s32 %s819, %s820
      %s822 = smul.addr %s821, 4
      %s823 = scalar_lea.vmem %s2, %s822
      %s824 = smul.u32 %s30, 8
      %s825 = sadd.s32 %s824, 2
      %s826 = smul.u32 %s30, 8
      %s827 = sadd.s32 %s826, 3
      %p828 = scmp.lt.s32.totalorder %s28, 1
      %s829 = scalar_select %p828, %s28, 1
      %p830 = scmp.lt.s32.totalorder %s827, 17
      %s831 = scalar_select %p830, %s827, 17
      %s832 = smul.addr %s831, 3
      %s833 = smul.addr %s829, 54
      %s834 = sadd.s32 %s832, %s833
      %s835 = smul.addr %s834, 4
      %s836 = scalar_lea.vmem %s3, %s835
      %s837 = smul.u32 %s30, 8
      %s838 = sadd.s32 %s837, 3
      %s839 = smul.u32 %s30, 8
      %s840 = sadd.s32 %s839, 4
      %p841 = scmp.lt.s32.totalorder %s28, 1
      %s842 = scalar_select %p841, %s28, 1
      %p843 = scmp.lt.s32.totalorder %s840, 17
      %s844 = scalar_select %p843, %s840, 17
      %s845 = smul.addr %s844, 3
      %s846 = smul.addr %s842, 54
      %s847 = sadd.s32 %s845, %s846
      %s848 = smul.addr %s847, 4
      %s849 = scalar_lea.vmem %s4, %s848
      %s850 = smul.u32 %s30, 8
      %s851 = sadd.s32 %s850, 4
      %s852 = smul.u32 %s30, 8
      %s853 = sadd.s32 %s852, 5
      %p854 = scmp.lt.s32.totalorder %s28, 1
      %s855 = scalar_select %p854, %s28, 1
      %p856 = scmp.lt.s32.totalorder %s853, 17
      %s857 = scalar_select %p856, %s853, 17
      %s858 = smul.addr %s857, 3
      %s859 = smul.addr %s855, 54
      %s860 = sadd.s32 %s858, %s859
      %s861 = smul.addr %s860, 4
      %s862 = scalar_lea.vmem %s5, %s861
      %s863 = smul.u32 %s30, 8
      %s864 = sadd.s32 %s863, 5
      %s865 = smul.u32 %s30, 8
      %s866 = sadd.s32 %s865, 6
      %p867 = scmp.lt.s32.totalorder %s28, 1
      %s868 = scalar_select %p867, %s28, 1
      %p869 = scmp.lt.s32.totalorder %s866, 17
      %s870 = scalar_select %p869, %s866, 17
      %s871 = smul.addr %s870, 3
      %s872 = smul.addr %s868, 54
      %s873 = sadd.s32 %s871, %s872
      %s874 = smul.addr %s873, 4
      %s875 = scalar_lea.vmem %s6, %s874
      %s876 = smul.u32 %s30, 8
      %s877 = sadd.s32 %s876, 6
      %s878 = smul.u32 %s30, 8
      %s879 = sadd.s32 %s878, 7
      %p880 = scmp.lt.s32.totalorder %s28, 1
      %s881 = scalar_select %p880, %s28, 1
      %p882 = scmp.lt.s32.totalorder %s879, 17
      %s883 = scalar_select %p882, %s879, 17
      %s884 = smul.addr %s883, 3
      %s885 = smul.addr %s881, 54
      %s886 = sadd.s32 %s884, %s885
      %s887 = smul.addr %s886, 4
      %s888 = scalar_lea.vmem %s7, %s887
      %s889 = smul.u32 %s30, 8
      %s890 = sadd.s32 %s889, 7
      %s891 = smul.u32 %s30, 8
      %s892 = sadd.s32 %s891, 8
      %p893 = scmp.lt.s32.totalorder %s28, 1
      %s894 = scalar_select %p893, %s28, 1
      %p895 = scmp.lt.s32.totalorder %s892, 17
      %s896 = scalar_select %p895, %s892, 17
      %s897 = smul.addr %s896, 3
      %s898 = smul.addr %s894, 54
      %s899 = sadd.s32 %s897, %s898
      %s900 = smul.addr %s899, 4
      %s901 = scalar_lea.vmem %s8, %s900
      %s902 = smul.u32 %s30, 8
      %s903 = sadd.s32 %s902, 8
      %s904 = smul.u32 %s30, 8
      %s905 = sadd.s32 %s904, 9
      %p906 = scmp.lt.s32.totalorder %s28, 1
      %s907 = scalar_select %p906, %s28, 1
      %p908 = scmp.lt.s32.totalorder %s905, 17
      %s909 = scalar_select %p908, %s905, 17
      %s910 = smul.addr %s909, 3
      %s911 = smul.addr %s907, 54
      %s912 = sadd.s32 %s910, %s911
      %s913 = smul.addr %s912, 4
      %s914 = scalar_lea.vmem %s9, %s913
      %s915 = smul.u32 %s30, 8
      %s916 = sadd.s32 %s915, 9
      %p917 = scmp.lt.s32.totalorder %s29, 0
      %s918 = scalar_select %p917, %s29, 0
      %s919 = smul.addr %s918, 2
      %s920 = scalar_lea.vmem %s10, %s919
      %p921 = scmp.lt.s32.totalorder %s29, 0
      %s922 = scalar_select %p921, %s29, 0
      %s923 = scalar_lea.vmem %s11, %s922
      %s924 = smul.u32 8, %s30
      %p925 = scmp.lt.s32.totalorder %s28, 1
      %s926 = scalar_select %p925, %s28, 1
      %p927 = scmp.lt.s32.totalorder %s924, 15
      %s928 = scalar_select %p927, %s924, 15
      %p929 = scmp.lt.s32.totalorder %s29, 0
      %s930 = scalar_select %p929, %s29, 0
      %s931 = smul.addr %s928, 2
      %s932 = sadd.s32 %s930, %s931
      %s933 = smul.addr %s926, 32
      %s934 = sadd.s32 %s932, %s933
      %s935 = smul.addr %s934, 8
      %s936 = scalar_lea.vmem %s12, %s935
      %s937 = smul.u32 8, %s30
      %v939 = vld [vmem:[%s923] sm:$0x1]
      %v940 = vld [vmem:[%s798] sm:$0xf]
      %v941 = vld [vmem:[%s798 + $0x4] sm:$0xf]
      %v942 = vld [vmem:[%s920] sm:$0x3]
      %v943 = vld [vmem:[%s798 + $0x8] sm:$0x1]
      %s944 = scalar_lea.vmem %s920, 2
      %v945 = vld [vmem:[%s944] sm:$0x3]
      %v949 = vunpack.c.l.b16 %v940
      %v950 = vunpack.c.l.b16 %v941
      %v951 = vunpack.c.l.b16 %v943
      %v952 = vpack.c.b16 %v950, %v949
      %v953 = vpack.c.b16 %v951, %v951
      %vm954 = vsmask.f32 7424
      %v956 = vshrl.u32 %v952, 16
      %v958 = vshll.u32 %v952, 16
      %v960 = vrot.slane %v958, 1
      %v961 = vor.u32 %v956, %v960
      %v963 = vshll.u32 %v953, 16
      %v965 = vrot.slane %v963, 1
      %v966 = vsel %vm954, %v961, %v965
      %vm967 = vcmask 31744
      %v969 = vsel %vm967, %v966, 0
      %vm971 = vcmask 1041408
      %v973 = vsel %vm971, %v945, 0
      %975 = vmatpush.bf16.msra.mxu0 0
      %976 = vmatpush.bf16.msra.mxu0 0
      %977 = vmatpush.bf16.msra.mxu0 0
      %978 = vmatpush.bf16.msra.mxu0 0
      %979 = vmatpush.bf16.msra.mxu0 0
      %980 = vmatpush.bf16.msra.mxu0 0
      %981 = vmatpush.bf16.msra.mxu0 0
      %982 = vmatpush.bf16.msra.mxu0 %v973
      %983 = vmatmul.bf16.gmra.mxu0 %v969
      %v984 = vpop.f32.mrf.mxu0
      %v985 = vadd.f32 0.0, %v984
      %v986 = vpop.f32.mrf.mxu0
      %v987 = vadd.f32 0.0, %v986
      %988 = vdwg.mxu0
      %v989 = vsel %vm967, %v952, 0
      %v992 = vsel %vm971, %v942, 0
      %994 = vmatpush.bf16.msra.mxu0 0
      %995 = vmatpush.bf16.msra.mxu0 0
      %996 = vmatpush.bf16.msra.mxu0 0
      %997 = vmatpush.bf16.msra.mxu0 0
      %998 = vmatpush.bf16.msra.mxu0 0
      %999 = vmatpush.bf16.msra.mxu0 0
      %1000 = vmatpush.bf16.msra.mxu0 0
      %1001 = vmatpush.bf16.msra.mxu0 %v992
      %1002 = vmatmul.bf16.gmra.mxu0 %v989
      %v1003 = vpop.f32.mrf.mxu0
      %v1004 = vadd.f32 %v985, %v1003
      %v1005 = vpop.f32.mrf.mxu0
      %v1006 = vadd.f32 %v987, %v1005
      %1007 = vdwg.mxu0
      %v1008 = vld [vmem:[%s798] sm:$0xe]
      %s1009 = scalar_lea.vmem %s920, 4
      %v1010 = vld [vmem:[%s1009] sm:$0x3]
      %v1012 = vunpack.c.l.b16 %v1008
      %v1013 = vpack.c.b16 %v950, %v1012
      %vm1014 = vcmask 1046528
      %v1015 = vrot.slane %v1013, 1
      %v1016 = vrot.slane %v953, 1
      %v1017 = vsel %vm1014, %v1015, %v1016
      %v1019 = vsel %vm967, %v1017, 0
      %v1022 = vsel %vm971, %v1010, 0
      %1024 = vmatpush.bf16.msra.mxu0 0
      %1025 = vmatpush.bf16.msra.mxu0 0
      %1026 = vmatpush.bf16.msra.mxu0 0
      %1027 = vmatpush.bf16.msra.mxu0 0
      %1028 = vmatpush.bf16.msra.mxu0 0
      %1029 = vmatpush.bf16.msra.mxu0 0
      %1030 = vmatpush.bf16.msra.mxu0 0
      %1031 = vmatpush.bf16.msra.mxu0 %v1022
      %1032 = vmatmul.bf16.gmra.mxu0 %v1019
      %v1033 = vpop.f32.mrf.mxu0
      %v1034 = vadd.f32 0.0, %v1033
      %v1035 = vpop.f32.mrf.mxu0
      %v1036 = vadd.f32 0.0, %v1035
      %1037 = vdwg.mxu0
      %v1038 = vadd.f32 %v1004, %v1034
      %v1039 = vadd.f32 %v1006, %v1036
      %v1040 = vld [vmem:[%s810] sm:$0xf]
      %v1041 = vld [vmem:[%s810 + $0x4] sm:$0xf]
      %s1042 = scalar_lea.vmem %s920, 6
      %v1043 = vld [vmem:[%s1042] sm:$0x3]
      %v1046 = vunpack.c.l.b16 %v1040
      %v1047 = vunpack.c.l.b16 %v1041
      %v1048 = vpack.c.b16 %v1047, %v1046
      %v1050 = vsel %vm967, %v1048, 0
      %v1053 = vsel %vm971, %v1043, 0
      %1055 = vmatpush.bf16.msra.mxu0 0
      %1056 = vmatpush.bf16.msra.mxu0 0
      %1057 = vmatpush.bf16.msra.mxu0 0
      %1058 = vmatpush.bf16.msra.mxu0 0
      %1059 = vmatpush.bf16.msra.mxu0 0
      %1060 = vmatpush.bf16.msra.mxu0 0
      %1061 = vmatpush.bf16.msra.mxu0 0
      %1062 = vmatpush.bf16.msra.mxu0 %v1053
      %1063 = vmatmul.bf16.gmra.mxu0 %v1050
      %v1064 = vpop.f32.mrf.mxu0
      %v1065 = vadd.f32 0.0, %v1064
      %v1066 = vpop.f32.mrf.mxu0
      %v1067 = vadd.f32 0.0, %v1066
      %1068 = vdwg.mxu0
      %v1069 = vadd.f32 %v1038, %v1065
      %v1070 = vadd.f32 %v1039, %v1067
      %v1071 = vld [vmem:[%s810] sm:$0xf]
      %v1072 = vld [vmem:[%s810 + $0x4] sm:$0xf]
      %v1073 = vld [vmem:[%s810 + $0x8] sm:$0x1]
      %s1074 = scalar_lea.vmem %s920, 8
      %v1075 = vld [vmem:[%s1074] sm:$0x3]
      %v1079 = vunpack.c.l.b16 %v1071
      %v1080 = vunpack.c.l.b16 %v1072
      %v1081 = vunpack.c.l.b16 %v1073
      %v1082 = vpack.c.b16 %v1080, %v1079
      %v1083 = vpack.c.b16 %v1081, %v1081
      %v1085 = vshrl.u32 %v1082, 16
      %v1087 = vshll.u32 %v1082, 16
      %v1089 = vrot.slane %v1087, 1
      %v1090 = vor.u32 %v1085, %v1089
      %v1092 = vshll.u32 %v1083, 16
      %v1094 = vrot.slane %v1092, 1
      %v1095 = vsel %vm954, %v1090, %v1094
      %v1097 = vsel %vm967, %v1095, 0
      %v1100 = vsel %vm971, %v1075, 0
      %1102 = vmatpush.bf16.msra.mxu0 0
      %1103 = vmatpush.bf16.msra.mxu0 0
      %1104 = vmatpush.bf16.msra.mxu0 0
      %1105 = vmatpush.bf16.msra.mxu0 0
      %1106 = vmatpush.bf16.msra.mxu0 0
      %1107 = vmatpush.bf16.msra.mxu0 0
      %1108 = vmatpush.bf16.msra.mxu0 0
      %1109 = vmatpush.bf16.msra.mxu0 %v1100
      %1110 = vmatmul.bf16.gmra.mxu0 %v1097
      %v1111 = vpop.f32.mrf.mxu0
      %v1112 = vadd.f32 0.0, %v1111
      %v1113 = vpop.f32.mrf.mxu0
      %v1114 = vadd.f32 0.0, %v1113
      %1115 = vdwg.mxu0
      %v1116 = vadd.f32 %v1069, %v1112
      %v1117 = vadd.f32 %v1070, %v1114
      %v1118 = vld [vmem:[%s810] sm:$0xe]
      %s1119 = scalar_lea.vmem %s920, 10
      %v1120 = vld [vmem:[%s1119] sm:$0x3]
      %v1122 = vunpack.c.l.b16 %v1118
      %v1123 = vpack.c.b16 %v1080, %v1122
      %v1124 = vrot.slane %v1123, 1
      %v1125 = vrot.slane %v1083, 1
      %v1126 = vsel %vm1014, %v1124, %v1125
      %v1128 = vsel %vm967, %v1126, 0
      %v1131 = vsel %vm971, %v1120, 0
      %1133 = vmatpush.bf16.msra.mxu0 0
      %1134 = vmatpush.bf16.msra.mxu0 0
      %1135 = vmatpush.bf16.msra.mxu0 0
      %1136 = vmatpush.bf16.msra.mxu0 0
      %1137 = vmatpush.bf16.msra.mxu0 0
      %1138 = vmatpush.bf16.msra.mxu0 0
      %1139 = vmatpush.bf16.msra.mxu0 0
      %1140 = vmatpush.bf16.msra.mxu0 %v1131
      %1141 = vmatmul.bf16.gmra.mxu0 %v1128
      %v1142 = vpop.f32.mrf.mxu0
      %v1143 = vadd.f32 0.0, %v1142
      %v1144 = vpop.f32.mrf.mxu0
      %v1145 = vadd.f32 0.0, %v1144
      %1146 = vdwg.mxu0
      %v1147 = vadd.f32 %v1116, %v1143
      %v1148 = vadd.f32 %v1117, %v1145
      %v1149 = vld [vmem:[%s823] sm:$0xf]
      %v1150 = vld [vmem:[%s823 + $0x4] sm:$0xf]
      %s1151 = scalar_lea.vmem %s920, 12
      %v1152 = vld [vmem:[%s1151] sm:$0x3]
      %v1155 = vunpack.c.l.b16 %v1149
      %v1156 = vunpack.c.l.b16 %v1150
      %v1157 = vpack.c.b16 %v1156, %v1155
      %v1159 = vsel %vm967, %v1157, 0
      %v1162 = vsel %vm971, %v1152, 0
      %1164 = vmatpush.bf16.msra.mxu0 0
      %1165 = vmatpush.bf16.msra.mxu0 0
      %1166 = vmatpush.bf16.msra.mxu0 0
      %1167 = vmatpush.bf16.msra.mxu0 0
      %1168 = vmatpush.bf16.msra.mxu0 0
      %1169 = vmatpush.bf16.msra.mxu0 0
      %1170 = vmatpush.bf16.msra.mxu0 0
      %1171 = vmatpush.bf16.msra.mxu0 %v1162
      %1172 = vmatmul.bf16.gmra.mxu0 %v1159
      %v1173 = vpop.f32.mrf.mxu0
      %v1174 = vadd.f32 0.0, %v1173
      %v1175 = vpop.f32.mrf.mxu0
      %v1176 = vadd.f32 0.0, %v1175
      %1177 = vdwg.mxu0
      %v1178 = vadd.f32 %v1147, %v1174
      %v1179 = vadd.f32 %v1148, %v1176
      %v1180 = vld [vmem:[%s823] sm:$0xf]
      %v1181 = vld [vmem:[%s823 + $0x4] sm:$0xf]
      %v1182 = vld [vmem:[%s823 + $0x8] sm:$0x1]
      %s1183 = scalar_lea.vmem %s920, 14
      %v1184 = vld [vmem:[%s1183] sm:$0x3]
      %v1188 = vunpack.c.l.b16 %v1180
      %v1189 = vunpack.c.l.b16 %v1181
      %v1190 = vunpack.c.l.b16 %v1182
      %v1191 = vpack.c.b16 %v1189, %v1188
      %v1192 = vpack.c.b16 %v1190, %v1190
      %v1194 = vshrl.u32 %v1191, 16
      %v1196 = vshll.u32 %v1191, 16
      %v1198 = vrot.slane %v1196, 1
      %v1199 = vor.u32 %v1194, %v1198
      %v1201 = vshll.u32 %v1192, 16
      %v1203 = vrot.slane %v1201, 1
      %v1204 = vsel %vm954, %v1199, %v1203
      %v1206 = vsel %vm967, %v1204, 0
      %v1209 = vsel %vm971, %v1184, 0
      %1211 = vmatpush.bf16.msra.mxu0 0
      %1212 = vmatpush.bf16.msra.mxu0 0
      %1213 = vmatpush.bf16.msra.mxu0 0
      %1214 = vmatpush.bf16.msra.mxu0 0
      %1215 = vmatpush.bf16.msra.mxu0 0
      %1216 = vmatpush.bf16.msra.mxu0 0
      %1217 = vmatpush.bf16.msra.mxu0 0
      %1218 = vmatpush.bf16.msra.mxu0 %v1209
      %1219 = vmatmul.bf16.gmra.mxu0 %v1206
      %v1220 = vpop.f32.mrf.mxu0
      %v1221 = vadd.f32 0.0, %v1220
      %v1222 = vpop.f32.mrf.mxu0
      %v1223 = vadd.f32 0.0, %v1222
      %1224 = vdwg.mxu0
      %v1225 = vadd.f32 %v1178, %v1221
      %v1226 = vadd.f32 %v1179, %v1223
      %v1227 = vld [vmem:[%s823] sm:$0xe]
      %s1228 = scalar_lea.vmem %s920, 16
      %v1229 = vld [vmem:[%s1228] sm:$0x3]
      %v1231 = vunpack.c.l.b16 %v1227
      %v1232 = vpack.c.b16 %v1189, %v1231
      %v1233 = vrot.slane %v1232, 1
      %v1234 = vrot.slane %v1192, 1
      %v1235 = vsel %vm1014, %v1233, %v1234
      %v1237 = vsel %vm967, %v1235, 0
      %v1240 = vsel %vm971, %v1229, 0
      %1242 = vmatpush.bf16.msra.mxu0 0
      %1243 = vmatpush.bf16.msra.mxu0 0
      %1244 = vmatpush.bf16.msra.mxu0 0
      %1245 = vmatpush.bf16.msra.mxu0 0
      %1246 = vmatpush.bf16.msra.mxu0 0
      %1247 = vmatpush.bf16.msra.mxu0 0
      %1248 = vmatpush.bf16.msra.mxu0 0
      %1249 = vmatpush.bf16.msra.mxu0 %v1240
      %1250 = vmatmul.bf16.gmra.mxu0 %v1237
      %v1251 = vpop.f32.mrf.mxu0
      %v1252 = vadd.f32 0.0, %v1251
      %v1253 = vpop.f32.mrf.mxu0
      %v1254 = vadd.f32 0.0, %v1253
      %1255 = vdwg.mxu0
      %v1256 = vadd.f32 %v1225, %v1252
      %v1257 = vadd.f32 %v1226, %v1254
      %v1259 = vperm.slane %v939, 0
      %v1261 = vadd.f32 %v1256, %v1259
      %v1262 = vadd.f32 %v1257, %v1259
      %v1263 = vmax.f32 %v1261, 0.0
      %v1264 = vmax.f32 %v1262, 0.0
      %1265 = vst [vmem:[%s936] sm:$0xff] %v1263
      %1266 = vst [vmem:[%s936 + $0x8] sm:$0xff] %v1264
      %v1267 = vld [vmem:[%s810] sm:$0xf]
      %v1268 = vld [vmem:[%s810 + $0x4] sm:$0xf]
      %v1269 = vld [vmem:[%s920] sm:$0x3]
      %v1270 = vld [vmem:[%s810 + $0x8] sm:$0x1]
      %v1271 = vld [vmem:[%s944] sm:$0x3]
      %v1275 = vunpack.c.l.b16 %v1267
      %v1276 = vunpack.c.l.b16 %v1268
      %v1277 = vunpack.c.l.b16 %v1270
      %v1278 = vpack.c.b16 %v1276, %v1275
      %v1279 = vpack.c.b16 %v1277, %v1277
      %v1281 = vshrl.u32 %v1278, 16
      %v1283 = vshll.u32 %v1278, 16
      %v1285 = vrot.slane %v1283, 1
      %v1286 = vor.u32 %v1281, %v1285
      %v1288 = vshll.u32 %v1279, 16
      %v1290 = vrot.slane %v1288, 1
      %v1291 = vsel %vm954, %v1286, %v1290
      %v1293 = vsel %vm967, %v1291, 0
      %v1296 = vsel %vm971, %v1271, 0
      %1298 = vmatpush.bf16.msra.mxu0 0
      %1299 = vmatpush.bf16.msra.mxu0 0
      %1300 = vmatpush.bf16.msra.mxu0 0
      %1301 = vmatpush.bf16.msra.mxu0 0
      %1302 = vmatpush.bf16.msra.mxu0 0
      %1303 = vmatpush.bf16.msra.mxu0 0
      %1304 = vmatpush.bf16.msra.mxu0 0
      %1305 = vmatpush.bf16.msra.mxu0 %v1296
      %1306 = vmatmul.bf16.gmra.mxu0 %v1293
      %v1307 = vpop.f32.mrf.mxu0
      %v1308 = vadd.f32 0.0, %v1307
      %v1309 = vpop.f32.mrf.mxu0
      %v1310 = vadd.f32 0.0, %v1309
      %1311 = vdwg.mxu0
      %v1312 = vsel %vm967, %v1278, 0
      %v1315 = vsel %vm971, %v1269, 0
      %1317 = vmatpush.bf16.msra.mxu0 0
      %1318 = vmatpush.bf16.msra.mxu0 0
      %1319 = vmatpush.bf16.msra.mxu0 0
      %1320 = vmatpush.bf16.msra.mxu0 0
      %1321 = vmatpush.bf16.msra.mxu0 0
      %1322 = vmatpush.bf16.msra.mxu0 0
      %1323 = vmatpush.bf16.msra.mxu0 0
      %1324 = vmatpush.bf16.msra.mxu0 %v1315
      %1325 = vmatmul.bf16.gmra.mxu0 %v1312
      %v1326 = vpop.f32.mrf.mxu0
      %v1327 = vadd.f32 %v1308, %v1326
      %v1328 = vpop.f32.mrf.mxu0
      %v1329 = vadd.f32 %v1310, %v1328
      %1330 = vdwg.mxu0
      %v1331 = vld [vmem:[%s810] sm:$0xe]
      %v1332 = vld [vmem:[%s1009] sm:$0x3]
      %v1334 = vunpack.c.l.b16 %v1331
      %v1335 = vpack.c.b16 %v1276, %v1334
      %v1336 = vrot.slane %v1335, 1
      %v1337 = vrot.slane %v1279, 1
      %v1338 = vsel %vm1014, %v1336, %v1337
      %v1340 = vsel %vm967, %v1338, 0
      %v1343 = vsel %vm971, %v1332, 0
      %1345 = vmatpush.bf16.msra.mxu0 0
      %1346 = vmatpush.bf16.msra.mxu0 0
      %1347 = vmatpush.bf16.msra.mxu0 0
      %1348 = vmatpush.bf16.msra.mxu0 0
      %1349 = vmatpush.bf16.msra.mxu0 0
      %1350 = vmatpush.bf16.msra.mxu0 0
      %1351 = vmatpush.bf16.msra.mxu0 0
      %1352 = vmatpush.bf16.msra.mxu0 %v1343
      %1353 = vmatmul.bf16.gmra.mxu0 %v1340
      %v1354 = vpop.f32.mrf.mxu0
      %v1355 = vadd.f32 0.0, %v1354
      %v1356 = vpop.f32.mrf.mxu0
      %v1357 = vadd.f32 0.0, %v1356
      %1358 = vdwg.mxu0
      %v1359 = vadd.f32 %v1327, %v1355
      %v1360 = vadd.f32 %v1329, %v1357
      %v1361 = vld [vmem:[%s823] sm:$0xf]
      %v1362 = vld [vmem:[%s823 + $0x4] sm:$0xf]
      %v1363 = vld [vmem:[%s1042] sm:$0x3]
      %v1366 = vunpack.c.l.b16 %v1361
      %v1367 = vunpack.c.l.b16 %v1362
      %v1368 = vpack.c.b16 %v1367, %v1366
      %v1370 = vsel %vm967, %v1368, 0
      %v1373 = vsel %vm971, %v1363, 0
      %1375 = vmatpush.bf16.msra.mxu0 0
      %1376 = vmatpush.bf16.msra.mxu0 0
      %1377 = vmatpush.bf16.msra.mxu0 0
      %1378 = vmatpush.bf16.msra.mxu0 0
      %1379 = vmatpush.bf16.msra.mxu0 0
      %1380 = vmatpush.bf16.msra.mxu0 0
      %1381 = vmatpush.bf16.msra.mxu0 0
      %1382 = vmatpush.bf16.msra.mxu0 %v1373
      %1383 = vmatmul.bf16.gmra.mxu0 %v1370
      %v1384 = vpop.f32.mrf.mxu0
      %v1385 = vadd.f32 0.0, %v1384
      %v1386 = vpop.f32.mrf.mxu0
      %v1387 = vadd.f32 0.0, %v1386
      %1388 = vdwg.mxu0
      %v1389 = vadd.f32 %v1359, %v1385
      %v1390 = vadd.f32 %v1360, %v1387
      %v1391 = vld [vmem:[%s823] sm:$0xf]
      %v1392 = vld [vmem:[%s823 + $0x4] sm:$0xf]
      %v1393 = vld [vmem:[%s823 + $0x8] sm:$0x1]
      %v1394 = vld [vmem:[%s1074] sm:$0x3]
      %v1398 = vunpack.c.l.b16 %v1391
      %v1399 = vunpack.c.l.b16 %v1392
      %v1400 = vunpack.c.l.b16 %v1393
      %v1401 = vpack.c.b16 %v1399, %v1398
      %v1402 = vpack.c.b16 %v1400, %v1400
      %v1404 = vshrl.u32 %v1401, 16
      %v1406 = vshll.u32 %v1401, 16
      %v1408 = vrot.slane %v1406, 1
      %v1409 = vor.u32 %v1404, %v1408
      %v1411 = vshll.u32 %v1402, 16
      %v1413 = vrot.slane %v1411, 1
      %v1414 = vsel %vm954, %v1409, %v1413
      %v1416 = vsel %vm967, %v1414, 0
      %v1419 = vsel %vm971, %v1394, 0
      %1421 = vmatpush.bf16.msra.mxu0 0
      %1422 = vmatpush.bf16.msra.mxu0 0
      %1423 = vmatpush.bf16.msra.mxu0 0
      %1424 = vmatpush.bf16.msra.mxu0 0
      %1425 = vmatpush.bf16.msra.mxu0 0
      %1426 = vmatpush.bf16.msra.mxu0 0
      %1427 = vmatpush.bf16.msra.mxu0 0
      %1428 = vmatpush.bf16.msra.mxu0 %v1419
      %1429 = vmatmul.bf16.gmra.mxu0 %v1416
      %v1430 = vpop.f32.mrf.mxu0
      %v1431 = vadd.f32 0.0, %v1430
      %v1432 = vpop.f32.mrf.mxu0
      %v1433 = vadd.f32 0.0, %v1432
      %1434 = vdwg.mxu0
      %v1435 = vadd.f32 %v1389, %v1431
      %v1436 = vadd.f32 %v1390, %v1433
      %v1437 = vld [vmem:[%s823] sm:$0xe]
      %v1438 = vld [vmem:[%s1119] sm:$0x3]
      %v1440 = vunpack.c.l.b16 %v1437
      %v1441 = vpack.c.b16 %v1399, %v1440
      %v1442 = vrot.slane %v1441, 1
      %v1443 = vrot.slane %v1402, 1
      %v1444 = vsel %vm1014, %v1442, %v1443
      %v1446 = vsel %vm967, %v1444, 0
      %v1449 = vsel %vm971, %v1438, 0
      %1451 = vmatpush.bf16.msra.mxu0 0
      %1452 = vmatpush.bf16.msra.mxu0 0
      %1453 = vmatpush.bf16.msra.mxu0 0
      %1454 = vmatpush.bf16.msra.mxu0 0
      %1455 = vmatpush.bf16.msra.mxu0 0
      %1456 = vmatpush.bf16.msra.mxu0 0
      %1457 = vmatpush.bf16.msra.mxu0 0
      %1458 = vmatpush.bf16.msra.mxu0 %v1449
      %1459 = vmatmul.bf16.gmra.mxu0 %v1446
      %v1460 = vpop.f32.mrf.mxu0
      %v1461 = vadd.f32 0.0, %v1460
      %v1462 = vpop.f32.mrf.mxu0
      %v1463 = vadd.f32 0.0, %v1462
      %1464 = vdwg.mxu0
      %v1465 = vadd.f32 %v1435, %v1461
      %v1466 = vadd.f32 %v1436, %v1463
      %v1467 = vld [vmem:[%s836] sm:$0xf]
      %v1468 = vld [vmem:[%s836 + $0x4] sm:$0xf]
      %v1469 = vld [vmem:[%s1151] sm:$0x3]
      %v1472 = vunpack.c.l.b16 %v1467
      %v1473 = vunpack.c.l.b16 %v1468
      %v1474 = vpack.c.b16 %v1473, %v1472
      %v1476 = vsel %vm967, %v1474, 0
      %v1479 = vsel %vm971, %v1469, 0
      %1481 = vmatpush.bf16.msra.mxu0 0
      %1482 = vmatpush.bf16.msra.mxu0 0
      %1483 = vmatpush.bf16.msra.mxu0 0
      %1484 = vmatpush.bf16.msra.mxu0 0
      %1485 = vmatpush.bf16.msra.mxu0 0
      %1486 = vmatpush.bf16.msra.mxu0 0
      %1487 = vmatpush.bf16.msra.mxu0 0
      %1488 = vmatpush.bf16.msra.mxu0 %v1479
      %1489 = vmatmul.bf16.gmra.mxu0 %v1476
      %v1490 = vpop.f32.mrf.mxu0
      %v1491 = vadd.f32 0.0, %v1490
      %v1492 = vpop.f32.mrf.mxu0
      %v1493 = vadd.f32 0.0, %v1492
      %1494 = vdwg.mxu0
      %v1495 = vadd.f32 %v1465, %v1491
      %v1496 = vadd.f32 %v1466, %v1493
      %v1497 = vld [vmem:[%s836] sm:$0xf]
      %v1498 = vld [vmem:[%s836 + $0x4] sm:$0xf]
      %v1499 = vld [vmem:[%s836 + $0x8] sm:$0x1]
      %v1500 = vld [vmem:[%s1183] sm:$0x3]
      %v1504 = vunpack.c.l.b16 %v1497
      %v1505 = vunpack.c.l.b16 %v1498
      %v1506 = vunpack.c.l.b16 %v1499
      %v1507 = vpack.c.b16 %v1505, %v1504
      %v1508 = vpack.c.b16 %v1506, %v1506
      %v1510 = vshrl.u32 %v1507, 16
      %v1512 = vshll.u32 %v1507, 16
      %v1514 = vrot.slane %v1512, 1
      %v1515 = vor.u32 %v1510, %v1514
      %v1517 = vshll.u32 %v1508, 16
      %v1519 = vrot.slane %v1517, 1
      %v1520 = vsel %vm954, %v1515, %v1519
      %v1522 = vsel %vm967, %v1520, 0
      %v1525 = vsel %vm971, %v1500, 0
      %1527 = vmatpush.bf16.msra.mxu0 0
      %1528 = vmatpush.bf16.msra.mxu0 0
      %1529 = vmatpush.bf16.msra.mxu0 0
      %1530 = vmatpush.bf16.msra.mxu0 0
      %1531 = vmatpush.bf16.msra.mxu0 0
      %1532 = vmatpush.bf16.msra.mxu0 0
      %1533 = vmatpush.bf16.msra.mxu0 0
      %1534 = vmatpush.bf16.msra.mxu0 %v1525
      %1535 = vmatmul.bf16.gmra.mxu0 %v1522
      %v1536 = vpop.f32.mrf.mxu0
      %v1537 = vadd.f32 0.0, %v1536
      %v1538 = vpop.f32.mrf.mxu0
      %v1539 = vadd.f32 0.0, %v1538
      %1540 = vdwg.mxu0
      %v1541 = vadd.f32 %v1495, %v1537
      %v1542 = vadd.f32 %v1496, %v1539
      %v1543 = vld [vmem:[%s836] sm:$0xe]
      %v1544 = vld [vmem:[%s1228] sm:$0x3]
      %v1546 = vunpack.c.l.b16 %v1543
      %v1547 = vpack.c.b16 %v1505, %v1546
      %v1548 = vrot.slane %v1547, 1
      %v1549 = vrot.slane %v1508, 1
      %v1550 = vsel %vm1014, %v1548, %v1549
      %v1552 = vsel %vm967, %v1550, 0
      %v1555 = vsel %vm971, %v1544, 0
      %1557 = vmatpush.bf16.msra.mxu0 0
      %1558 = vmatpush.bf16.msra.mxu0 0
      %1559 = vmatpush.bf16.msra.mxu0 0
      %1560 = vmatpush.bf16.msra.mxu0 0
      %1561 = vmatpush.bf16.msra.mxu0 0
      %1562 = vmatpush.bf16.msra.mxu0 0
      %1563 = vmatpush.bf16.msra.mxu0 0
      %1564 = vmatpush.bf16.msra.mxu0 %v1555
      %1565 = vmatmul.bf16.gmra.mxu0 %v1552
      %v1566 = vpop.f32.mrf.mxu0
      %v1567 = vadd.f32 0.0, %v1566
      %v1568 = vpop.f32.mrf.mxu0
      %v1569 = vadd.f32 0.0, %v1568
      %1570 = vdwg.mxu0
      %v1571 = vadd.f32 %v1541, %v1567
      %v1572 = vadd.f32 %v1542, %v1569
      %v1573 = vadd.f32 %v1571, %v1259
      %v1574 = vadd.f32 %v1572, %v1259
      %v1575 = vmax.f32 %v1573, 0.0
      %v1576 = vmax.f32 %v1574, 0.0
      %s1577 = scalar_lea.vmem %s936, 16
      %1578 = vst [vmem:[%s1577] sm:$0xff] %v1575
      %1579 = vst [vmem:[%s1577 + $0x8] sm:$0xff] %v1576
      %v1580 = vld [vmem:[%s823] sm:$0xf]
      %v1581 = vld [vmem:[%s823 + $0x4] sm:$0xf]
      %v1582 = vld [vmem:[%s920] sm:$0x3]
      %v1583 = vld [vmem:[%s823 + $0x8] sm:$0x1]
      %v1584 = vld [vmem:[%s944] sm:$0x3]
      %v1588 = vunpack.c.l.b16 %v1580
      %v1589 = vunpack.c.l.b16 %v1581
      %v1590 = vunpack.c.l.b16 %v1583
      %v1591 = vpack.c.b16 %v1589, %v1588
      %v1592 = vpack.c.b16 %v1590, %v1590
      %v1594 = vshrl.u32 %v1591, 16
      %v1596 = vshll.u32 %v1591, 16
      %v1598 = vrot.slane %v1596, 1
      %v1599 = vor.u32 %v1594, %v1598
      %v1601 = vshll.u32 %v1592, 16
      %v1603 = vrot.slane %v1601, 1
      %v1604 = vsel %vm954, %v1599, %v1603
      %v1606 = vsel %vm967, %v1604, 0
      %v1609 = vsel %vm971, %v1584, 0
      %1611 = vmatpush.bf16.msra.mxu0 0
      %1612 = vmatpush.bf16.msra.mxu0 0
      %1613 = vmatpush.bf16.msra.mxu0 0
      %1614 = vmatpush.bf16.msra.mxu0 0
      %1615 = vmatpush.bf16.msra.mxu0 0
      %1616 = vmatpush.bf16.msra.mxu0 0
      %1617 = vmatpush.bf16.msra.mxu0 0
      %1618 = vmatpush.bf16.msra.mxu0 %v1609
      %1619 = vmatmul.bf16.gmra.mxu0 %v1606
      %v1620 = vpop.f32.mrf.mxu0
      %v1621 = vadd.f32 0.0, %v1620
      %v1622 = vpop.f32.mrf.mxu0
      %v1623 = vadd.f32 0.0, %v1622
      %1624 = vdwg.mxu0
      %v1625 = vsel %vm967, %v1591, 0
      %v1628 = vsel %vm971, %v1582, 0
      %1630 = vmatpush.bf16.msra.mxu0 0
      %1631 = vmatpush.bf16.msra.mxu0 0
      %1632 = vmatpush.bf16.msra.mxu0 0
      %1633 = vmatpush.bf16.msra.mxu0 0
      %1634 = vmatpush.bf16.msra.mxu0 0
      %1635 = vmatpush.bf16.msra.mxu0 0
      %1636 = vmatpush.bf16.msra.mxu0 0
      %1637 = vmatpush.bf16.msra.mxu0 %v1628
      %1638 = vmatmul.bf16.gmra.mxu0 %v1625
      %v1639 = vpop.f32.mrf.mxu0
      %v1640 = vadd.f32 %v1621, %v1639
      %v1641 = vpop.f32.mrf.mxu0
      %v1642 = vadd.f32 %v1623, %v1641
      %1643 = vdwg.mxu0
      %v1644 = vld [vmem:[%s823] sm:$0xe]
      %v1645 = vld [vmem:[%s1009] sm:$0x3]
      %v1647 = vunpack.c.l.b16 %v1644
      %v1648 = vpack.c.b16 %v1589, %v1647
      %v1649 = vrot.slane %v1648, 1
      %v1650 = vrot.slane %v1592, 1
      %v1651 = vsel %vm1014, %v1649, %v1650
      %v1653 = vsel %vm967, %v1651, 0
      %v1656 = vsel %vm971, %v1645, 0
      %1658 = vmatpush.bf16.msra.mxu0 0
      %1659 = vmatpush.bf16.msra.mxu0 0
      %1660 = vmatpush.bf16.msra.mxu0 0
      %1661 = vmatpush.bf16.msra.mxu0 0
      %1662 = vmatpush.bf16.msra.mxu0 0
      %1663 = vmatpush.bf16.msra.mxu0 0
      %1664 = vmatpush.bf16.msra.mxu0 0
      %1665 = vmatpush.bf16.msra.mxu0 %v1656
      %1666 = vmatmul.bf16.gmra.mxu0 %v1653
      %v1667 = vpop.f32.mrf.mxu0
      %v1668 = vadd.f32 0.0, %v1667
      %v1669 = vpop.f32.mrf.mxu0
      %v1670 = vadd.f32 0.0, %v1669
      %1671 = vdwg.mxu0
      %v1672 = vadd.f32 %v1640, %v1668
      %v1673 = vadd.f32 %v1642, %v1670
      %v1674 = vld [vmem:[%s836] sm:$0xf]
      %v1675 = vld [vmem:[%s836 + $0x4] sm:$0xf]
      %v1676 = vld [vmem:[%s1042] sm:$0x3]
      %v1679 = vunpack.c.l.b16 %v1674
      %v1680 = vunpack.c.l.b16 %v1675
      %v1681 = vpack.c.b16 %v1680, %v1679
      %v1683 = vsel %vm967, %v1681, 0
      %v1686 = vsel %vm971, %v1676, 0
      %1688 = vmatpush.bf16.msra.mxu0 0
      %1689 = vmatpush.bf16.msra.mxu0 0
      %1690 = vmatpush.bf16.msra.mxu0 0
      %1691 = vmatpush.bf16.msra.mxu0 0
      %1692 = vmatpush.bf16.msra.mxu0 0
      %1693 = vmatpush.bf16.msra.mxu0 0
      %1694 = vmatpush.bf16.msra.mxu0 0
      %1695 = vmatpush.bf16.msra.mxu0 %v1686
      %1696 = vmatmul.bf16.gmra.mxu0 %v1683
      %v1697 = vpop.f32.mrf.mxu0
      %v1698 = vadd.f32 0.0, %v1697
      %v1699 = vpop.f32.mrf.mxu0
      %v1700 = vadd.f32 0.0, %v1699
      %1701 = vdwg.mxu0
      %v1702 = vadd.f32 %v1672, %v1698
      %v1703 = vadd.f32 %v1673, %v1700
      %v1704 = vld [vmem:[%s836] sm:$0xf]
      %v1705 = vld [vmem:[%s836 + $0x4] sm:$0xf]
      %v1706 = vld [vmem:[%s836 + $0x8] sm:$0x1]
      %v1707 = vld [vmem:[%s1074] sm:$0x3]
      %v1711 = vunpack.c.l.b16 %v1704
      %v1712 = vunpack.c.l.b16 %v1705
      %v1713 = vunpack.c.l.b16 %v1706
      %v1714 = vpack.c.b16 %v1712, %v1711
      %v1715 = vpack.c.b16 %v1713, %v1713
      %v1717 = vshrl.u32 %v1714, 16
      %v1719 = vshll.u32 %v1714, 16
      %v1721 = vrot.slane %v1719, 1
      %v1722 = vor.u32 %v1717, %v1721
      %v1724 = vshll.u32 %v1715, 16
      %v1726 = vrot.slane %v1724, 1
      %v1727 = vsel %vm954, %v1722, %v1726
      %v1729 = vsel %vm967, %v1727, 0
      %v1732 = vsel %vm971, %v1707, 0
      %1734 = vmatpush.bf16.msra.mxu0 0
      %1735 = vmatpush.bf16.msra.mxu0 0
      %1736 = vmatpush.bf16.msra.mxu0 0
      %1737 = vmatpush.bf16.msra.mxu0 0
      %1738 = vmatpush.bf16.msra.mxu0 0
      %1739 = vmatpush.bf16.msra.mxu0 0
      %1740 = vmatpush.bf16.msra.mxu0 0
      %1741 = vmatpush.bf16.msra.mxu0 %v1732
      %1742 = vmatmul.bf16.gmra.mxu0 %v1729
      %v1743 = vpop.f32.mrf.mxu0
      %v1744 = vadd.f32 0.0, %v1743
      %v1745 = vpop.f32.mrf.mxu0
      %v1746 = vadd.f32 0.0, %v1745
      %1747 = vdwg.mxu0
      %v1748 = vadd.f32 %v1702, %v1744
      %v1749 = vadd.f32 %v1703, %v1746
      %v1750 = vld [vmem:[%s836] sm:$0xe]
      %v1751 = vld [vmem:[%s1119] sm:$0x3]
      %v1753 = vunpack.c.l.b16 %v1750
      %v1754 = vpack.c.b16 %v1712, %v1753
      %v1755 = vrot.slane %v1754, 1
      %v1756 = vrot.slane %v1715, 1
      %v1757 = vsel %vm1014, %v1755, %v1756
      %v1759 = vsel %vm967, %v1757, 0
      %v1762 = vsel %vm971, %v1751, 0
      %1764 = vmatpush.bf16.msra.mxu0 0
      %1765 = vmatpush.bf16.msra.mxu0 0
      %1766 = vmatpush.bf16.msra.mxu0 0
      %1767 = vmatpush.bf16.msra.mxu0 0
      %1768 = vmatpush.bf16.msra.mxu0 0
      %1769 = vmatpush.bf16.msra.mxu0 0
      %1770 = vmatpush.bf16.msra.mxu0 0
      %1771 = vmatpush.bf16.msra.mxu0 %v1762
      %1772 = vmatmul.bf16.gmra.mxu0 %v1759
      %v1773 = vpop.f32.mrf.mxu0
      %v1774 = vadd.f32 0.0, %v1773
      %v1775 = vpop.f32.mrf.mxu0
      %v1776 = vadd.f32 0.0, %v1775
      %1777 = vdwg.mxu0
      %v1778 = vadd.f32 %v1748, %v1774
      %v1779 = vadd.f32 %v1749, %v1776
      %v1780 = vld [vmem:[%s849] sm:$0xf]
      %v1781 = vld [vmem:[%s849 + $0x4] sm:$0xf]
      %v1782 = vld [vmem:[%s1151] sm:$0x3]
      %v1785 = vunpack.c.l.b16 %v1780
      %v1786 = vunpack.c.l.b16 %v1781
      %v1787 = vpack.c.b16 %v1786, %v1785
      %v1789 = vsel %vm967, %v1787, 0
      %v1792 = vsel %vm971, %v1782, 0
      %1794 = vmatpush.bf16.msra.mxu0 0
      %1795 = vmatpush.bf16.msra.mxu0 0
      %1796 = vmatpush.bf16.msra.mxu0 0
      %1797 = vmatpush.bf16.msra.mxu0 0
      %1798 = vmatpush.bf16.msra.mxu0 0
      %1799 = vmatpush.bf16.msra.mxu0 0
      %1800 = vmatpush.bf16.msra.mxu0 0
      %1801 = vmatpush.bf16.msra.mxu0 %v1792
      %1802 = vmatmul.bf16.gmra.mxu0 %v1789
      %v1803 = vpop.f32.mrf.mxu0
      %v1804 = vadd.f32 0.0, %v1803
      %v1805 = vpop.f32.mrf.mxu0
      %v1806 = vadd.f32 0.0, %v1805
      %1807 = vdwg.mxu0
      %v1808 = vadd.f32 %v1778, %v1804
      %v1809 = vadd.f32 %v1779, %v1806
      %v1810 = vld [vmem:[%s849] sm:$0xf]
      %v1811 = vld [vmem:[%s849 + $0x4] sm:$0xf]
      %v1812 = vld [vmem:[%s849 + $0x8] sm:$0x1]
      %v1813 = vld [vmem:[%s1183] sm:$0x3]
      %v1817 = vunpack.c.l.b16 %v1810
      %v1818 = vunpack.c.l.b16 %v1811
      %v1819 = vunpack.c.l.b16 %v1812
      %v1820 = vpack.c.b16 %v1818, %v1817
      %v1821 = vpack.c.b16 %v1819, %v1819
      %v1823 = vshrl.u32 %v1820, 16
      %v1825 = vshll.u32 %v1820, 16
      %v1827 = vrot.slane %v1825, 1
      %v1828 = vor.u32 %v1823, %v1827
      %v1830 = vshll.u32 %v1821, 16
      %v1832 = vrot.slane %v1830, 1
      %v1833 = vsel %vm954, %v1828, %v1832
      %v1835 = vsel %vm967, %v1833, 0
      %v1838 = vsel %vm971, %v1813, 0
      %1840 = vmatpush.bf16.msra.mxu0 0
      %1841 = vmatpush.bf16.msra.mxu0 0
      %1842 = vmatpush.bf16.msra.mxu0 0
      %1843 = vmatpush.bf16.msra.mxu0 0
      %1844 = vmatpush.bf16.msra.mxu0 0
      %1845 = vmatpush.bf16.msra.mxu0 0
      %1846 = vmatpush.bf16.msra.mxu0 0
      %1847 = vmatpush.bf16.msra.mxu0 %v1838
      %1848 = vmatmul.bf16.gmra.mxu0 %v1835
      %v1849 = vpop.f32.mrf.mxu0
      %v1850 = vadd.f32 0.0, %v1849
      %v1851 = vpop.f32.mrf.mxu0
      %v1852 = vadd.f32 0.0, %v1851
      %1853 = vdwg.mxu0
      %v1854 = vadd.f32 %v1808, %v1850
      %v1855 = vadd.f32 %v1809, %v1852
      %v1856 = vld [vmem:[%s849] sm:$0xe]
      %v1857 = vld [vmem:[%s1228] sm:$0x3]
      %v1859 = vunpack.c.l.b16 %v1856
      %v1860 = vpack.c.b16 %v1818, %v1859
      %v1861 = vrot.slane %v1860, 1
      %v1862 = vrot.slane %v1821, 1
      %v1863 = vsel %vm1014, %v1861, %v1862
      %v1865 = vsel %vm967, %v1863, 0
      %v1868 = vsel %vm971, %v1857, 0
      %1870 = vmatpush.bf16.msra.mxu0 0
      %1871 = vmatpush.bf16.msra.mxu0 0
      %1872 = vmatpush.bf16.msra.mxu0 0
      %1873 = vmatpush.bf16.msra.mxu0 0
      %1874 = vmatpush.bf16.msra.mxu0 0
      %1875 = vmatpush.bf16.msra.mxu0 0
      %1876 = vmatpush.bf16.msra.mxu0 0
      %1877 = vmatpush.bf16.msra.mxu0 %v1868
      %1878 = vmatmul.bf16.gmra.mxu0 %v1865
      %v1879 = vpop.f32.mrf.mxu0
      %v1880 = vadd.f32 0.0, %v1879
      %v1881 = vpop.f32.mrf.mxu0
      %v1882 = vadd.f32 0.0, %v1881
      %1883 = vdwg.mxu0
      %v1884 = vadd.f32 %v1854, %v1880
      %v1885 = vadd.f32 %v1855, %v1882
      %v1886 = vadd.f32 %v1884, %v1259
      %v1887 = vadd.f32 %v1885, %v1259
      %v1888 = vmax.f32 %v1886, 0.0
      %v1889 = vmax.f32 %v1887, 0.0
      %s1890 = scalar_lea.vmem %s936, 32
      %1891 = vst [vmem:[%s1890] sm:$0xff] %v1888
      %1892 = vst [vmem:[%s1890 + $0x8] sm:$0xff] %v1889
      %v1893 = vld [vmem:[%s836] sm:$0xf]
      %v1894 = vld [vmem:[%s836 + $0x4] sm:$0xf]
      %v1895 = vld [vmem:[%s920] sm:$0x3]
      %v1896 = vld [vmem:[%s836 + $0x8] sm:$0x1]
      %v1897 = vld [vmem:[%s944] sm:$0x3]
      %v1901 = vunpack.c.l.b16 %v1893
      %v1902 = vunpack.c.l.b16 %v1894
      %v1903 = vunpack.c.l.b16 %v1896
      %v1904 = vpack.c.b16 %v1902, %v1901
      %v1905 = vpack.c.b16 %v1903, %v1903
      %v1907 = vshrl.u32 %v1904, 16
      %v1909 = vshll.u32 %v1904, 16
      %v1911 = vrot.slane %v1909, 1
      %v1912 = vor.u32 %v1907, %v1911
      %v1914 = vshll.u32 %v1905, 16
      %v1916 = vrot.slane %v1914, 1
      %v1917 = vsel %vm954, %v1912, %v1916
      %v1919 = vsel %vm967, %v1917, 0
      %v1922 = vsel %vm971, %v1897, 0
      %1924 = vmatpush.bf16.msra.mxu0 0
      %1925 = vmatpush.bf16.msra.mxu0 0
      %1926 = vmatpush.bf16.msra.mxu0 0
      %1927 = vmatpush.bf16.msra.mxu0 0
      %1928 = vmatpush.bf16.msra.mxu0 0
      %1929 = vmatpush.bf16.msra.mxu0 0
      %1930 = vmatpush.bf16.msra.mxu0 0
      %1931 = vmatpush.bf16.msra.mxu0 %v1922
      %1932 = vmatmul.bf16.gmra.mxu0 %v1919
      %v1933 = vpop.f32.mrf.mxu0
      %v1934 = vadd.f32 0.0, %v1933
      %v1935 = vpop.f32.mrf.mxu0
      %v1936 = vadd.f32 0.0, %v1935
      %1937 = vdwg.mxu0
      %v1938 = vsel %vm967, %v1904, 0
      %v1941 = vsel %vm971, %v1895, 0
      %1943 = vmatpush.bf16.msra.mxu0 0
      %1944 = vmatpush.bf16.msra.mxu0 0
      %1945 = vmatpush.bf16.msra.mxu0 0
      %1946 = vmatpush.bf16.msra.mxu0 0
      %1947 = vmatpush.bf16.msra.mxu0 0
      %1948 = vmatpush.bf16.msra.mxu0 0
      %1949 = vmatpush.bf16.msra.mxu0 0
      %1950 = vmatpush.bf16.msra.mxu0 %v1941
      %1951 = vmatmul.bf16.gmra.mxu0 %v1938
      %v1952 = vpop.f32.mrf.mxu0
      %v1953 = vadd.f32 %v1934, %v1952
      %v1954 = vpop.f32.mrf.mxu0
      %v1955 = vadd.f32 %v1936, %v1954
      %1956 = vdwg.mxu0
      %v1957 = vld [vmem:[%s836] sm:$0xe]
      %v1958 = vld [vmem:[%s1009] sm:$0x3]
      %v1960 = vunpack.c.l.b16 %v1957
      %v1961 = vpack.c.b16 %v1902, %v1960
      %v1962 = vrot.slane %v1961, 1
      %v1963 = vrot.slane %v1905, 1
      %v1964 = vsel %vm1014, %v1962, %v1963
      %v1966 = vsel %vm967, %v1964, 0
      %v1969 = vsel %vm971, %v1958, 0
      %1971 = vmatpush.bf16.msra.mxu0 0
      %1972 = vmatpush.bf16.msra.mxu0 0
      %1973 = vmatpush.bf16.msra.mxu0 0
      %1974 = vmatpush.bf16.msra.mxu0 0
      %1975 = vmatpush.bf16.msra.mxu0 0
      %1976 = vmatpush.bf16.msra.mxu0 0
      %1977 = vmatpush.bf16.msra.mxu0 0
      %1978 = vmatpush.bf16.msra.mxu0 %v1969
      %1979 = vmatmul.bf16.gmra.mxu0 %v1966
      %v1980 = vpop.f32.mrf.mxu0
      %v1981 = vadd.f32 0.0, %v1980
      %v1982 = vpop.f32.mrf.mxu0
      %v1983 = vadd.f32 0.0, %v1982
      %1984 = vdwg.mxu0
      %v1985 = vadd.f32 %v1953, %v1981
      %v1986 = vadd.f32 %v1955, %v1983
      %v1987 = vld [vmem:[%s849] sm:$0xf]
      %v1988 = vld [vmem:[%s849 + $0x4] sm:$0xf]
      %v1989 = vld [vmem:[%s1042] sm:$0x3]
      %v1992 = vunpack.c.l.b16 %v1987
      %v1993 = vunpack.c.l.b16 %v1988
      %v1994 = vpack.c.b16 %v1993, %v1992
      %v1996 = vsel %vm967, %v1994, 0
      %v1999 = vsel %vm971, %v1989, 0
      %2001 = vmatpush.bf16.msra.mxu0 0
      %2002 = vmatpush.bf16.msra.mxu0 0
      %2003 = vmatpush.bf16.msra.mxu0 0
      %2004 = vmatpush.bf16.msra.mxu0 0
      %2005 = vmatpush.bf16.msra.mxu0 0
      %2006 = vmatpush.bf16.msra.mxu0 0
      %2007 = vmatpush.bf16.msra.mxu0 0
      %2008 = vmatpush.bf16.msra.mxu0 %v1999
      %2009 = vmatmul.bf16.gmra.mxu0 %v1996
      %v2010 = vpop.f32.mrf.mxu0
      %v2011 = vadd.f32 0.0, %v2010
      %v2012 = vpop.f32.mrf.mxu0
      %v2013 = vadd.f32 0.0, %v2012
      %2014 = vdwg.mxu0
      %v2015 = vadd.f32 %v1985, %v2011
      %v2016 = vadd.f32 %v1986, %v2013
      %v2017 = vld [vmem:[%s849] sm:$0xf]
      %v2018 = vld [vmem:[%s849 + $0x4] sm:$0xf]
      %v2019 = vld [vmem:[%s849 + $0x8] sm:$0x1]
      %v2020 = vld [vmem:[%s1074] sm:$0x3]
      %v2024 = vunpack.c.l.b16 %v2017
      %v2025 = vunpack.c.l.b16 %v2018
      %v2026 = vunpack.c.l.b16 %v2019
      %v2027 = vpack.c.b16 %v2025, %v2024
      %v2028 = vpack.c.b16 %v2026, %v2026
      %v2030 = vshrl.u32 %v2027, 16
      %v2032 = vshll.u32 %v2027, 16
      %v2034 = vrot.slane %v2032, 1
      %v2035 = vor.u32 %v2030, %v2034
      %v2037 = vshll.u32 %v2028, 16
      %v2039 = vrot.slane %v2037, 1
      %v2040 = vsel %vm954, %v2035, %v2039
      %v2042 = vsel %vm967, %v2040, 0
      %v2045 = vsel %vm971, %v2020, 0
      %2047 = vmatpush.bf16.msra.mxu0 0
      %2048 = vmatpush.bf16.msra.mxu0 0
      %2049 = vmatpush.bf16.msra.mxu0 0
      %2050 = vmatpush.bf16.msra.mxu0 0
      %2051 = vmatpush.bf16.msra.mxu0 0
      %2052 = vmatpush.bf16.msra.mxu0 0
      %2053 = vmatpush.bf16.msra.mxu0 0
      %2054 = vmatpush.bf16.msra.mxu0 %v2045
      %2055 = vmatmul.bf16.gmra.mxu0 %v2042
      %v2056 = vpop.f32.mrf.mxu0
      %v2057 = vadd.f32 0.0, %v2056
      %v2058 = vpop.f32.mrf.mxu0
      %v2059 = vadd.f32 0.0, %v2058
      %2060 = vdwg.mxu0
      %v2061 = vadd.f32 %v2015, %v2057
      %v2062 = vadd.f32 %v2016, %v2059
      %v2063 = vld [vmem:[%s849] sm:$0xe]
      %v2064 = vld [vmem:[%s1119] sm:$0x3]
      %v2066 = vunpack.c.l.b16 %v2063
      %v2067 = vpack.c.b16 %v2025, %v2066
      %v2068 = vrot.slane %v2067, 1
      %v2069 = vrot.slane %v2028, 1
      %v2070 = vsel %vm1014, %v2068, %v2069
      %v2072 = vsel %vm967, %v2070, 0
      %v2075 = vsel %vm971, %v2064, 0
      %2077 = vmatpush.bf16.msra.mxu0 0
      %2078 = vmatpush.bf16.msra.mxu0 0
      %2079 = vmatpush.bf16.msra.mxu0 0
      %2080 = vmatpush.bf16.msra.mxu0 0
      %2081 = vmatpush.bf16.msra.mxu0 0
      %2082 = vmatpush.bf16.msra.mxu0 0
      %2083 = vmatpush.bf16.msra.mxu0 0
      %2084 = vmatpush.bf16.msra.mxu0 %v2075
      %2085 = vmatmul.bf16.gmra.mxu0 %v2072
      %v2086 = vpop.f32.mrf.mxu0
      %v2087 = vadd.f32 0.0, %v2086
      %v2088 = vpop.f32.mrf.mxu0
      %v2089 = vadd.f32 0.0, %v2088
      %2090 = vdwg.mxu0
      %v2091 = vadd.f32 %v2061, %v2087
      %v2092 = vadd.f32 %v2062, %v2089
      %v2093 = vld [vmem:[%s862] sm:$0xf]
      %v2094 = vld [vmem:[%s862 + $0x4] sm:$0xf]
      %v2095 = vld [vmem:[%s1151] sm:$0x3]
      %v2098 = vunpack.c.l.b16 %v2093
      %v2099 = vunpack.c.l.b16 %v2094
      %v2100 = vpack.c.b16 %v2099, %v2098
      %v2102 = vsel %vm967, %v2100, 0
      %v2105 = vsel %vm971, %v2095, 0
      %2107 = vmatpush.bf16.msra.mxu0 0
      %2108 = vmatpush.bf16.msra.mxu0 0
      %2109 = vmatpush.bf16.msra.mxu0 0
      %2110 = vmatpush.bf16.msra.mxu0 0
      %2111 = vmatpush.bf16.msra.mxu0 0
      %2112 = vmatpush.bf16.msra.mxu0 0
      %2113 = vmatpush.bf16.msra.mxu0 0
      %2114 = vmatpush.bf16.msra.mxu0 %v2105
      %2115 = vmatmul.bf16.gmra.mxu0 %v2102
      %v2116 = vpop.f32.mrf.mxu0
      %v2117 = vadd.f32 0.0, %v2116
      %v2118 = vpop.f32.mrf.mxu0
      %v2119 = vadd.f32 0.0, %v2118
      %2120 = vdwg.mxu0
      %v2121 = vadd.f32 %v2091, %v2117
      %v2122 = vadd.f32 %v2092, %v2119
      %v2123 = vld [vmem:[%s862] sm:$0xf]
      %v2124 = vld [vmem:[%s862 + $0x4] sm:$0xf]
      %v2125 = vld [vmem:[%s862 + $0x8] sm:$0x1]
      %v2126 = vld [vmem:[%s1183] sm:$0x3]
      %v2130 = vunpack.c.l.b16 %v2123
      %v2131 = vunpack.c.l.b16 %v2124
      %v2132 = vunpack.c.l.b16 %v2125
      %v2133 = vpack.c.b16 %v2131, %v2130
      %v2134 = vpack.c.b16 %v2132, %v2132
      %v2136 = vshrl.u32 %v2133, 16
      %v2138 = vshll.u32 %v2133, 16
      %v2140 = vrot.slane %v2138, 1
      %v2141 = vor.u32 %v2136, %v2140
      %v2143 = vshll.u32 %v2134, 16
      %v2145 = vrot.slane %v2143, 1
      %v2146 = vsel %vm954, %v2141, %v2145
      %v2148 = vsel %vm967, %v2146, 0
      %v2151 = vsel %vm971, %v2126, 0
      %2153 = vmatpush.bf16.msra.mxu0 0
      %2154 = vmatpush.bf16.msra.mxu0 0
      %2155 = vmatpush.bf16.msra.mxu0 0
      %2156 = vmatpush.bf16.msra.mxu0 0
      %2157 = vmatpush.bf16.msra.mxu0 0
      %2158 = vmatpush.bf16.msra.mxu0 0
      %2159 = vmatpush.bf16.msra.mxu0 0
      %2160 = vmatpush.bf16.msra.mxu0 %v2151
      %2161 = vmatmul.bf16.gmra.mxu0 %v2148
      %v2162 = vpop.f32.mrf.mxu0
      %v2163 = vadd.f32 0.0, %v2162
      %v2164 = vpop.f32.mrf.mxu0
      %v2165 = vadd.f32 0.0, %v2164
      %2166 = vdwg.mxu0
      %v2167 = vadd.f32 %v2121, %v2163
      %v2168 = vadd.f32 %v2122, %v2165
      %v2169 = vld [vmem:[%s862] sm:$0xe]
      %v2170 = vld [vmem:[%s1228] sm:$0x3]
      %v2172 = vunpack.c.l.b16 %v2169
      %v2173 = vpack.c.b16 %v2131, %v2172
      %v2174 = vrot.slane %v2173, 1
      %v2175 = vrot.slane %v2134, 1
      %v2176 = vsel %vm1014, %v2174, %v2175
      %v2178 = vsel %vm967, %v2176, 0
      %v2181 = vsel %vm971, %v2170, 0
      %2183 = vmatpush.bf16.msra.mxu0 0
      %2184 = vmatpush.bf16.msra.mxu0 0
      %2185 = vmatpush.bf16.msra.mxu0 0
      %2186 = vmatpush.bf16.msra.mxu0 0
      %2187 = vmatpush.bf16.msra.mxu0 0
      %2188 = vmatpush.bf16.msra.mxu0 0
      %2189 = vmatpush.bf16.msra.mxu0 0
      %2190 = vmatpush.bf16.msra.mxu0 %v2181
      %2191 = vmatmul.bf16.gmra.mxu0 %v2178
      %v2192 = vpop.f32.mrf.mxu0
      %v2193 = vadd.f32 0.0, %v2192
      %v2194 = vpop.f32.mrf.mxu0
      %v2195 = vadd.f32 0.0, %v2194
      %2196 = vdwg.mxu0
      %v2197 = vadd.f32 %v2167, %v2193
      %v2198 = vadd.f32 %v2168, %v2195
      %v2199 = vadd.f32 %v2197, %v1259
      %v2200 = vadd.f32 %v2198, %v1259
      %v2201 = vmax.f32 %v2199, 0.0
      %v2202 = vmax.f32 %v2200, 0.0
      %s2203 = scalar_lea.vmem %s936, 48
      %2204 = vst [vmem:[%s2203] sm:$0xff] %v2201
      %2205 = vst [vmem:[%s2203 + $0x8] sm:$0xff] %v2202
      %v2206 = vld [vmem:[%s849] sm:$0xf]
      %v2207 = vld [vmem:[%s849 + $0x4] sm:$0xf]
      %v2208 = vld [vmem:[%s920] sm:$0x3]
      %v2209 = vld [vmem:[%s849 + $0x8] sm:$0x1]
      %v2210 = vld [vmem:[%s944] sm:$0x3]
      %v2214 = vunpack.c.l.b16 %v2206
      %v2215 = vunpack.c.l.b16 %v2207
      %v2216 = vunpack.c.l.b16 %v2209
      %v2217 = vpack.c.b16 %v2215, %v2214
      %v2218 = vpack.c.b16 %v2216, %v2216
      %v2220 = vshrl.u32 %v2217, 16
      %v2222 = vshll.u32 %v2217, 16
      %v2224 = vrot.slane %v2222, 1
      %v2225 = vor.u32 %v2220, %v2224
      %v2227 = vshll.u32 %v2218, 16
      %v2229 = vrot.slane %v2227, 1
      %v2230 = vsel %vm954, %v2225, %v2229
      %v2232 = vsel %vm967, %v2230, 0
      %v2235 = vsel %vm971, %v2210, 0
      %2237 = vmatpush.bf16.msra.mxu0 0
      %2238 = vmatpush.bf16.msra.mxu0 0
      %2239 = vmatpush.bf16.msra.mxu0 0
      %2240 = vmatpush.bf16.msra.mxu0 0
      %2241 = vmatpush.bf16.msra.mxu0 0
      %2242 = vmatpush.bf16.msra.mxu0 0
      %2243 = vmatpush.bf16.msra.mxu0 0
      %2244 = vmatpush.bf16.msra.mxu0 %v2235
      %2245 = vmatmul.bf16.gmra.mxu0 %v2232
      %v2246 = vpop.f32.mrf.mxu0
      %v2247 = vadd.f32 0.0, %v2246
      %v2248 = vpop.f32.mrf.mxu0
      %v2249 = vadd.f32 0.0, %v2248
      %2250 = vdwg.mxu0
      %v2251 = vsel %vm967, %v2217, 0
      %v2254 = vsel %vm971, %v2208, 0
      %2256 = vmatpush.bf16.msra.mxu0 0
      %2257 = vmatpush.bf16.msra.mxu0 0
      %2258 = vmatpush.bf16.msra.mxu0 0
      %2259 = vmatpush.bf16.msra.mxu0 0
      %2260 = vmatpush.bf16.msra.mxu0 0
      %2261 = vmatpush.bf16.msra.mxu0 0
      %2262 = vmatpush.bf16.msra.mxu0 0
      %2263 = vmatpush.bf16.msra.mxu0 %v2254
      %2264 = vmatmul.bf16.gmra.mxu0 %v2251
      %v2265 = vpop.f32.mrf.mxu0
      %v2266 = vadd.f32 %v2247, %v2265
      %v2267 = vpop.f32.mrf.mxu0
      %v2268 = vadd.f32 %v2249, %v2267
      %2269 = vdwg.mxu0
      %v2270 = vld [vmem:[%s849] sm:$0xe]
      %v2271 = vld [vmem:[%s1009] sm:$0x3]
      %v2273 = vunpack.c.l.b16 %v2270
      %v2274 = vpack.c.b16 %v2215, %v2273
      %v2275 = vrot.slane %v2274, 1
      %v2276 = vrot.slane %v2218, 1
      %v2277 = vsel %vm1014, %v2275, %v2276
      %v2279 = vsel %vm967, %v2277, 0
      %v2282 = vsel %vm971, %v2271, 0
      %2284 = vmatpush.bf16.msra.mxu0 0
      %2285 = vmatpush.bf16.msra.mxu0 0
      %2286 = vmatpush.bf16.msra.mxu0 0
      %2287 = vmatpush.bf16.msra.mxu0 0
      %2288 = vmatpush.bf16.msra.mxu0 0
      %2289 = vmatpush.bf16.msra.mxu0 0
      %2290 = vmatpush.bf16.msra.mxu0 0
      %2291 = vmatpush.bf16.msra.mxu0 %v2282
      %2292 = vmatmul.bf16.gmra.mxu0 %v2279
      %v2293 = vpop.f32.mrf.mxu0
      %v2294 = vadd.f32 0.0, %v2293
      %v2295 = vpop.f32.mrf.mxu0
      %v2296 = vadd.f32 0.0, %v2295
      %2297 = vdwg.mxu0
      %v2298 = vadd.f32 %v2266, %v2294
      %v2299 = vadd.f32 %v2268, %v2296
      %v2300 = vld [vmem:[%s862] sm:$0xf]
      %v2301 = vld [vmem:[%s862 + $0x4] sm:$0xf]
      %v2302 = vld [vmem:[%s1042] sm:$0x3]
      %v2305 = vunpack.c.l.b16 %v2300
      %v2306 = vunpack.c.l.b16 %v2301
      %v2307 = vpack.c.b16 %v2306, %v2305
      %v2309 = vsel %vm967, %v2307, 0
      %v2312 = vsel %vm971, %v2302, 0
      %2314 = vmatpush.bf16.msra.mxu0 0
      %2315 = vmatpush.bf16.msra.mxu0 0
      %2316 = vmatpush.bf16.msra.mxu0 0
      %2317 = vmatpush.bf16.msra.mxu0 0
      %2318 = vmatpush.bf16.msra.mxu0 0
      %2319 = vmatpush.bf16.msra.mxu0 0
      %2320 = vmatpush.bf16.msra.mxu0 0
      %2321 = vmatpush.bf16.msra.mxu0 %v2312
      %2322 = vmatmul.bf16.gmra.mxu0 %v2309
      %v2323 = vpop.f32.mrf.mxu0
      %v2324 = vadd.f32 0.0, %v2323
      %v2325 = vpop.f32.mrf.mxu0
      %v2326 = vadd.f32 0.0, %v2325
      %2327 = vdwg.mxu0
      %v2328 = vadd.f32 %v2298, %v2324
      %v2329 = vadd.f32 %v2299, %v2326
      %v2330 = vld [vmem:[%s862] sm:$0xf]
      %v2331 = vld [vmem:[%s862 + $0x4] sm:$0xf]
      %v2332 = vld [vmem:[%s862 + $0x8] sm:$0x1]
      %v2333 = vld [vmem:[%s1074] sm:$0x3]
      %v2337 = vunpack.c.l.b16 %v2330
      %v2338 = vunpack.c.l.b16 %v2331
      %v2339 = vunpack.c.l.b16 %v2332
      %v2340 = vpack.c.b16 %v2338, %v2337
      %v2341 = vpack.c.b16 %v2339, %v2339
      %v2343 = vshrl.u32 %v2340, 16
      %v2345 = vshll.u32 %v2340, 16
      %v2347 = vrot.slane %v2345, 1
      %v2348 = vor.u32 %v2343, %v2347
      %v2350 = vshll.u32 %v2341, 16
      %v2352 = vrot.slane %v2350, 1
      %v2353 = vsel %vm954, %v2348, %v2352
      %v2355 = vsel %vm967, %v2353, 0
      %v2358 = vsel %vm971, %v2333, 0
      %2360 = vmatpush.bf16.msra.mxu0 0
      %2361 = vmatpush.bf16.msra.mxu0 0
      %2362 = vmatpush.bf16.msra.mxu0 0
      %2363 = vmatpush.bf16.msra.mxu0 0
      %2364 = vmatpush.bf16.msra.mxu0 0
      %2365 = vmatpush.bf16.msra.mxu0 0
      %2366 = vmatpush.bf16.msra.mxu0 0
      %2367 = vmatpush.bf16.msra.mxu0 %v2358
      %2368 = vmatmul.bf16.gmra.mxu0 %v2355
      %v2369 = vpop.f32.mrf.mxu0
      %v2370 = vadd.f32 0.0, %v2369
      %v2371 = vpop.f32.mrf.mxu0
      %v2372 = vadd.f32 0.0, %v2371
      %2373 = vdwg.mxu0
      %v2374 = vadd.f32 %v2328, %v2370
      %v2375 = vadd.f32 %v2329, %v2372
      %v2376 = vld [vmem:[%s862] sm:$0xe]
      %v2377 = vld [vmem:[%s1119] sm:$0x3]
      %v2379 = vunpack.c.l.b16 %v2376
      %v2380 = vpack.c.b16 %v2338, %v2379
      %v2381 = vrot.slane %v2380, 1
      %v2382 = vrot.slane %v2341, 1
      %v2383 = vsel %vm1014, %v2381, %v2382
      %v2385 = vsel %vm967, %v2383, 0
      %v2388 = vsel %vm971, %v2377, 0
      %2390 = vmatpush.bf16.msra.mxu0 0
      %2391 = vmatpush.bf16.msra.mxu0 0
      %2392 = vmatpush.bf16.msra.mxu0 0
      %2393 = vmatpush.bf16.msra.mxu0 0
      %2394 = vmatpush.bf16.msra.mxu0 0
      %2395 = vmatpush.bf16.msra.mxu0 0
      %2396 = vmatpush.bf16.msra.mxu0 0
      %2397 = vmatpush.bf16.msra.mxu0 %v2388
      %2398 = vmatmul.bf16.gmra.mxu0 %v2385
      %v2399 = vpop.f32.mrf.mxu0
      %v2400 = vadd.f32 0.0, %v2399
      %v2401 = vpop.f32.mrf.mxu0
      %v2402 = vadd.f32 0.0, %v2401
      %2403 = vdwg.mxu0
      %v2404 = vadd.f32 %v2374, %v2400
      %v2405 = vadd.f32 %v2375, %v2402
      %v2406 = vld [vmem:[%s875] sm:$0xf]
      %v2407 = vld [vmem:[%s875 + $0x4] sm:$0xf]
      %v2408 = vld [vmem:[%s1151] sm:$0x3]
      %v2411 = vunpack.c.l.b16 %v2406
      %v2412 = vunpack.c.l.b16 %v2407
      %v2413 = vpack.c.b16 %v2412, %v2411
      %v2415 = vsel %vm967, %v2413, 0
      %v2418 = vsel %vm971, %v2408, 0
      %2420 = vmatpush.bf16.msra.mxu0 0
      %2421 = vmatpush.bf16.msra.mxu0 0
      %2422 = vmatpush.bf16.msra.mxu0 0
      %2423 = vmatpush.bf16.msra.mxu0 0
      %2424 = vmatpush.bf16.msra.mxu0 0
      %2425 = vmatpush.bf16.msra.mxu0 0
      %2426 = vmatpush.bf16.msra.mxu0 0
      %2427 = vmatpush.bf16.msra.mxu0 %v2418
      %2428 = vmatmul.bf16.gmra.mxu0 %v2415
      %v2429 = vpop.f32.mrf.mxu0
      %v2430 = vadd.f32 0.0, %v2429
      %v2431 = vpop.f32.mrf.mxu0
      %v2432 = vadd.f32 0.0, %v2431
      %2433 = vdwg.mxu0
      %v2434 = vadd.f32 %v2404, %v2430
      %v2435 = vadd.f32 %v2405, %v2432
      %v2436 = vld [vmem:[%s875] sm:$0xf]
      %v2437 = vld [vmem:[%s875 + $0x4] sm:$0xf]
      %v2438 = vld [vmem:[%s875 + $0x8] sm:$0x1]
      %v2439 = vld [vmem:[%s1183] sm:$0x3]
      %v2443 = vunpack.c.l.b16 %v2436
      %v2444 = vunpack.c.l.b16 %v2437
      %v2445 = vunpack.c.l.b16 %v2438
      %v2446 = vpack.c.b16 %v2444, %v2443
      %v2447 = vpack.c.b16 %v2445, %v2445
      %v2449 = vshrl.u32 %v2446, 16
      %v2451 = vshll.u32 %v2446, 16
      %v2453 = vrot.slane %v2451, 1
      %v2454 = vor.u32 %v2449, %v2453
      %v2456 = vshll.u32 %v2447, 16
      %v2458 = vrot.slane %v2456, 1
      %v2459 = vsel %vm954, %v2454, %v2458
      %v2461 = vsel %vm967, %v2459, 0
      %v2464 = vsel %vm971, %v2439, 0
      %2466 = vmatpush.bf16.msra.mxu0 0
      %2467 = vmatpush.bf16.msra.mxu0 0
      %2468 = vmatpush.bf16.msra.mxu0 0
      %2469 = vmatpush.bf16.msra.mxu0 0
      %2470 = vmatpush.bf16.msra.mxu0 0
      %2471 = vmatpush.bf16.msra.mxu0 0
      %2472 = vmatpush.bf16.msra.mxu0 0
      %2473 = vmatpush.bf16.msra.mxu0 %v2464
      %2474 = vmatmul.bf16.gmra.mxu0 %v2461
      %v2475 = vpop.f32.mrf.mxu0
      %v2476 = vadd.f32 0.0, %v2475
      %v2477 = vpop.f32.mrf.mxu0
      %v2478 = vadd.f32 0.0, %v2477
      %2479 = vdwg.mxu0
      %v2480 = vadd.f32 %v2434, %v2476
      %v2481 = vadd.f32 %v2435, %v2478
      %v2482 = vld [vmem:[%s875] sm:$0xe]
      %v2483 = vld [vmem:[%s1228] sm:$0x3]
      %v2485 = vunpack.c.l.b16 %v2482
      %v2486 = vpack.c.b16 %v2444, %v2485
      %v2487 = vrot.slane %v2486, 1
      %v2488 = vrot.slane %v2447, 1
      %v2489 = vsel %vm1014, %v2487, %v2488
      %v2491 = vsel %vm967, %v2489, 0
      %v2494 = vsel %vm971, %v2483, 0
      %2496 = vmatpush.bf16.msra.mxu0 0
      %2497 = vmatpush.bf16.msra.mxu0 0
      %2498 = vmatpush.bf16.msra.mxu0 0
      %2499 = vmatpush.bf16.msra.mxu0 0
      %2500 = vmatpush.bf16.msra.mxu0 0
      %2501 = vmatpush.bf16.msra.mxu0 0
      %2502 = vmatpush.bf16.msra.mxu0 0
      %2503 = vmatpush.bf16.msra.mxu0 %v2494
      %2504 = vmatmul.bf16.gmra.mxu0 %v2491
      %v2505 = vpop.f32.mrf.mxu0
      %v2506 = vadd.f32 0.0, %v2505
      %v2507 = vpop.f32.mrf.mxu0
      %v2508 = vadd.f32 0.0, %v2507
      %2509 = vdwg.mxu0
      %v2510 = vadd.f32 %v2480, %v2506
      %v2511 = vadd.f32 %v2481, %v2508
      %v2512 = vadd.f32 %v2510, %v1259
      %v2513 = vadd.f32 %v2511, %v1259
      %v2514 = vmax.f32 %v2512, 0.0
      %v2515 = vmax.f32 %v2513, 0.0
      %s2516 = scalar_lea.vmem %s936, 64
      %2517 = vst [vmem:[%s2516] sm:$0xff] %v2514
      %2518 = vst [vmem:[%s2516 + $0x8] sm:$0xff] %v2515
      %v2519 = vld [vmem:[%s862] sm:$0xf]
      %v2520 = vld [vmem:[%s862 + $0x4] sm:$0xf]
      %v2521 = vld [vmem:[%s920] sm:$0x3]
      %v2522 = vld [vmem:[%s862 + $0x8] sm:$0x1]
      %v2523 = vld [vmem:[%s944] sm:$0x3]
      %v2527 = vunpack.c.l.b16 %v2519
      %v2528 = vunpack.c.l.b16 %v2520
      %v2529 = vunpack.c.l.b16 %v2522
      %v2530 = vpack.c.b16 %v2528, %v2527
      %v2531 = vpack.c.b16 %v2529, %v2529
      %v2533 = vshrl.u32 %v2530, 16
      %v2535 = vshll.u32 %v2530, 16
      %v2537 = vrot.slane %v2535, 1
      %v2538 = vor.u32 %v2533, %v2537
      %v2540 = vshll.u32 %v2531, 16
      %v2542 = vrot.slane %v2540, 1
      %v2543 = vsel %vm954, %v2538, %v2542
      %v2545 = vsel %vm967, %v2543, 0
      %v2548 = vsel %vm971, %v2523, 0
      %2550 = vmatpush.bf16.msra.mxu0 0
      %2551 = vmatpush.bf16.msra.mxu0 0
      %2552 = vmatpush.bf16.msra.mxu0 0
      %2553 = vmatpush.bf16.msra.mxu0 0
      %2554 = vmatpush.bf16.msra.mxu0 0
      %2555 = vmatpush.bf16.msra.mxu0 0
      %2556 = vmatpush.bf16.msra.mxu0 0
      %2557 = vmatpush.bf16.msra.mxu0 %v2548
      %2558 = vmatmul.bf16.gmra.mxu0 %v2545
      %v2559 = vpop.f32.mrf.mxu0
      %v2560 = vadd.f32 0.0, %v2559
      %v2561 = vpop.f32.mrf.mxu0
      %v2562 = vadd.f32 0.0, %v2561
      %2563 = vdwg.mxu0
      %v2564 = vsel %vm967, %v2530, 0
      %v2567 = vsel %vm971, %v2521, 0
      %2569 = vmatpush.bf16.msra.mxu0 0
      %2570 = vmatpush.bf16.msra.mxu0 0
      %2571 = vmatpush.bf16.msra.mxu0 0
      %2572 = vmatpush.bf16.msra.mxu0 0
      %2573 = vmatpush.bf16.msra.mxu0 0
      %2574 = vmatpush.bf16.msra.mxu0 0
      %2575 = vmatpush.bf16.msra.mxu0 0
      %2576 = vmatpush.bf16.msra.mxu0 %v2567
      %2577 = vmatmul.bf16.gmra.mxu0 %v2564
      %v2578 = vpop.f32.mrf.mxu0
      %v2579 = vadd.f32 %v2560, %v2578
      %v2580 = vpop.f32.mrf.mxu0
      %v2581 = vadd.f32 %v2562, %v2580
      %2582 = vdwg.mxu0
      %v2583 = vld [vmem:[%s862] sm:$0xe]
      %v2584 = vld [vmem:[%s1009] sm:$0x3]
      %v2586 = vunpack.c.l.b16 %v2583
      %v2587 = vpack.c.b16 %v2528, %v2586
      %v2588 = vrot.slane %v2587, 1
      %v2589 = vrot.slane %v2531, 1
      %v2590 = vsel %vm1014, %v2588, %v2589
      %v2592 = vsel %vm967, %v2590, 0
      %v2595 = vsel %vm971, %v2584, 0
      %2597 = vmatpush.bf16.msra.mxu0 0
      %2598 = vmatpush.bf16.msra.mxu0 0
      %2599 = vmatpush.bf16.msra.mxu0 0
      %2600 = vmatpush.bf16.msra.mxu0 0
      %2601 = vmatpush.bf16.msra.mxu0 0
      %2602 = vmatpush.bf16.msra.mxu0 0
      %2603 = vmatpush.bf16.msra.mxu0 0
      %2604 = vmatpush.bf16.msra.mxu0 %v2595
      %2605 = vmatmul.bf16.gmra.mxu0 %v2592
      %v2606 = vpop.f32.mrf.mxu0
      %v2607 = vadd.f32 0.0, %v2606
      %v2608 = vpop.f32.mrf.mxu0
      %v2609 = vadd.f32 0.0, %v2608
      %2610 = vdwg.mxu0
      %v2611 = vadd.f32 %v2579, %v2607
      %v2612 = vadd.f32 %v2581, %v2609
      %v2613 = vld [vmem:[%s875] sm:$0xf]
      %v2614 = vld [vmem:[%s875 + $0x4] sm:$0xf]
      %v2615 = vld [vmem:[%s1042] sm:$0x3]
      %v2618 = vunpack.c.l.b16 %v2613
      %v2619 = vunpack.c.l.b16 %v2614
      %v2620 = vpack.c.b16 %v2619, %v2618
      %v2622 = vsel %vm967, %v2620, 0
      %v2625 = vsel %vm971, %v2615, 0
      %2627 = vmatpush.bf16.msra.mxu0 0
      %2628 = vmatpush.bf16.msra.mxu0 0
      %2629 = vmatpush.bf16.msra.mxu0 0
      %2630 = vmatpush.bf16.msra.mxu0 0
      %2631 = vmatpush.bf16.msra.mxu0 0
      %2632 = vmatpush.bf16.msra.mxu0 0
      %2633 = vmatpush.bf16.msra.mxu0 0
      %2634 = vmatpush.bf16.msra.mxu0 %v2625
      %2635 = vmatmul.bf16.gmra.mxu0 %v2622
      %v2636 = vpop.f32.mrf.mxu0
      %v2637 = vadd.f32 0.0, %v2636
      %v2638 = vpop.f32.mrf.mxu0
      %v2639 = vadd.f32 0.0, %v2638
      %2640 = vdwg.mxu0
      %v2641 = vadd.f32 %v2611, %v2637
      %v2642 = vadd.f32 %v2612, %v2639
      %v2643 = vld [vmem:[%s875] sm:$0xf]
      %v2644 = vld [vmem:[%s875 + $0x4] sm:$0xf]
      %v2645 = vld [vmem:[%s875 + $0x8] sm:$0x1]
      %v2646 = vld [vmem:[%s1074] sm:$0x3]
      %v2650 = vunpack.c.l.b16 %v2643
      %v2651 = vunpack.c.l.b16 %v2644
      %v2652 = vunpack.c.l.b16 %v2645
      %v2653 = vpack.c.b16 %v2651, %v2650
      %v2654 = vpack.c.b16 %v2652, %v2652
      %v2656 = vshrl.u32 %v2653, 16
      %v2658 = vshll.u32 %v2653, 16
      %v2660 = vrot.slane %v2658, 1
      %v2661 = vor.u32 %v2656, %v2660
      %v2663 = vshll.u32 %v2654, 16
      %v2665 = vrot.slane %v2663, 1
      %v2666 = vsel %vm954, %v2661, %v2665
      %v2668 = vsel %vm967, %v2666, 0
      %v2671 = vsel %vm971, %v2646, 0
      %2673 = vmatpush.bf16.msra.mxu0 0
      %2674 = vmatpush.bf16.msra.mxu0 0
      %2675 = vmatpush.bf16.msra.mxu0 0
      %2676 = vmatpush.bf16.msra.mxu0 0
      %2677 = vmatpush.bf16.msra.mxu0 0
      %2678 = vmatpush.bf16.msra.mxu0 0
      %2679 = vmatpush.bf16.msra.mxu0 0
      %2680 = vmatpush.bf16.msra.mxu0 %v2671
      %2681 = vmatmul.bf16.gmra.mxu0 %v2668
      %v2682 = vpop.f32.mrf.mxu0
      %v2683 = vadd.f32 0.0, %v2682
      %v2684 = vpop.f32.mrf.mxu0
      %v2685 = vadd.f32 0.0, %v2684
      %2686 = vdwg.mxu0
      %v2687 = vadd.f32 %v2641, %v2683
      %v2688 = vadd.f32 %v2642, %v2685
      %v2689 = vld [vmem:[%s875] sm:$0xe]
      %v2690 = vld [vmem:[%s1119] sm:$0x3]
      %v2692 = vunpack.c.l.b16 %v2689
      %v2693 = vpack.c.b16 %v2651, %v2692
      %v2694 = vrot.slane %v2693, 1
      %v2695 = vrot.slane %v2654, 1
      %v2696 = vsel %vm1014, %v2694, %v2695
      %v2698 = vsel %vm967, %v2696, 0
      %v2701 = vsel %vm971, %v2690, 0
      %2703 = vmatpush.bf16.msra.mxu0 0
      %2704 = vmatpush.bf16.msra.mxu0 0
      %2705 = vmatpush.bf16.msra.mxu0 0
      %2706 = vmatpush.bf16.msra.mxu0 0
      %2707 = vmatpush.bf16.msra.mxu0 0
      %2708 = vmatpush.bf16.msra.mxu0 0
      %2709 = vmatpush.bf16.msra.mxu0 0
      %2710 = vmatpush.bf16.msra.mxu0 %v2701
      %2711 = vmatmul.bf16.gmra.mxu0 %v2698
      %v2712 = vpop.f32.mrf.mxu0
      %v2713 = vadd.f32 0.0, %v2712
      %v2714 = vpop.f32.mrf.mxu0
      %v2715 = vadd.f32 0.0, %v2714
      %2716 = vdwg.mxu0
      %v2717 = vadd.f32 %v2687, %v2713
      %v2718 = vadd.f32 %v2688, %v2715
      %v2719 = vld [vmem:[%s888] sm:$0xf]
      %v2720 = vld [vmem:[%s888 + $0x4] sm:$0xf]
      %v2721 = vld [vmem:[%s1151] sm:$0x3]
      %v2724 = vunpack.c.l.b16 %v2719
      %v2725 = vunpack.c.l.b16 %v2720
      %v2726 = vpack.c.b16 %v2725, %v2724
      %v2728 = vsel %vm967, %v2726, 0
      %v2731 = vsel %vm971, %v2721, 0
      %2733 = vmatpush.bf16.msra.mxu0 0
      %2734 = vmatpush.bf16.msra.mxu0 0
      %2735 = vmatpush.bf16.msra.mxu0 0
      %2736 = vmatpush.bf16.msra.mxu0 0
      %2737 = vmatpush.bf16.msra.mxu0 0
      %2738 = vmatpush.bf16.msra.mxu0 0
      %2739 = vmatpush.bf16.msra.mxu0 0
      %2740 = vmatpush.bf16.msra.mxu0 %v2731
      %2741 = vmatmul.bf16.gmra.mxu0 %v2728
      %v2742 = vpop.f32.mrf.mxu0
      %v2743 = vadd.f32 0.0, %v2742
      %v2744 = vpop.f32.mrf.mxu0
      %v2745 = vadd.f32 0.0, %v2744
      %2746 = vdwg.mxu0
      %v2747 = vadd.f32 %v2717, %v2743
      %v2748 = vadd.f32 %v2718, %v2745
      %v2749 = vld [vmem:[%s888] sm:$0xf]
      %v2750 = vld [vmem:[%s888 + $0x4] sm:$0xf]
      %v2751 = vld [vmem:[%s888 + $0x8] sm:$0x1]
      %v2752 = vld [vmem:[%s1183] sm:$0x3]
      %v2756 = vunpack.c.l.b16 %v2749
      %v2757 = vunpack.c.l.b16 %v2750
      %v2758 = vunpack.c.l.b16 %v2751
      %v2759 = vpack.c.b16 %v2757, %v2756
      %v2760 = vpack.c.b16 %v2758, %v2758
      %v2762 = vshrl.u32 %v2759, 16
      %v2764 = vshll.u32 %v2759, 16
      %v2766 = vrot.slane %v2764, 1
      %v2767 = vor.u32 %v2762, %v2766
      %v2769 = vshll.u32 %v2760, 16
      %v2771 = vrot.slane %v2769, 1
      %v2772 = vsel %vm954, %v2767, %v2771
      %v2774 = vsel %vm967, %v2772, 0
      %v2777 = vsel %vm971, %v2752, 0
      %2779 = vmatpush.bf16.msra.mxu0 0
      %2780 = vmatpush.bf16.msra.mxu0 0
      %2781 = vmatpush.bf16.msra.mxu0 0
      %2782 = vmatpush.bf16.msra.mxu0 0
      %2783 = vmatpush.bf16.msra.mxu0 0
      %2784 = vmatpush.bf16.msra.mxu0 0
      %2785 = vmatpush.bf16.msra.mxu0 0
      %2786 = vmatpush.bf16.msra.mxu0 %v2777
      %2787 = vmatmul.bf16.gmra.mxu0 %v2774
      %v2788 = vpop.f32.mrf.mxu0
      %v2789 = vadd.f32 0.0, %v2788
      %v2790 = vpop.f32.mrf.mxu0
      %v2791 = vadd.f32 0.0, %v2790
      %2792 = vdwg.mxu0
      %v2793 = vadd.f32 %v2747, %v2789
      %v2794 = vadd.f32 %v2748, %v2791
      %v2795 = vld [vmem:[%s888] sm:$0xe]
      %v2796 = vld [vmem:[%s1228] sm:$0x3]
      %v2798 = vunpack.c.l.b16 %v2795
      %v2799 = vpack.c.b16 %v2757, %v2798
      %v2800 = vrot.slane %v2799, 1
      %v2801 = vrot.slane %v2760, 1
      %v2802 = vsel %vm1014, %v2800, %v2801
      %v2804 = vsel %vm967, %v2802, 0
      %v2807 = vsel %vm971, %v2796, 0
      %2809 = vmatpush.bf16.msra.mxu0 0
      %2810 = vmatpush.bf16.msra.mxu0 0
      %2811 = vmatpush.bf16.msra.mxu0 0
      %2812 = vmatpush.bf16.msra.mxu0 0
      %2813 = vmatpush.bf16.msra.mxu0 0
      %2814 = vmatpush.bf16.msra.mxu0 0
      %2815 = vmatpush.bf16.msra.mxu0 0
      %2816 = vmatpush.bf16.msra.mxu0 %v2807
      %2817 = vmatmul.bf16.gmra.mxu0 %v2804
      %v2818 = vpop.f32.mrf.mxu0
      %v2819 = vadd.f32 0.0, %v2818
      %v2820 = vpop.f32.mrf.mxu0
      %v2821 = vadd.f32 0.0, %v2820
      %2822 = vdwg.mxu0
      %v2823 = vadd.f32 %v2793, %v2819
      %v2824 = vadd.f32 %v2794, %v2821
      %v2825 = vadd.f32 %v2823, %v1259
      %v2826 = vadd.f32 %v2824, %v1259
      %v2827 = vmax.f32 %v2825, 0.0
      %v2828 = vmax.f32 %v2826, 0.0
      %s2829 = scalar_lea.vmem %s936, 80
      %2830 = vst [vmem:[%s2829] sm:$0xff] %v2827
      %2831 = vst [vmem:[%s2829 + $0x8] sm:$0xff] %v2828
      %v2832 = vld [vmem:[%s875] sm:$0xf]
      %v2833 = vld [vmem:[%s875 + $0x4] sm:$0xf]
      %v2834 = vld [vmem:[%s920] sm:$0x3]
      %v2835 = vld [vmem:[%s875 + $0x8] sm:$0x1]
      %v2836 = vld [vmem:[%s944] sm:$0x3]
      %v2840 = vunpack.c.l.b16 %v2832
      %v2841 = vunpack.c.l.b16 %v2833
      %v2842 = vunpack.c.l.b16 %v2835
      %v2843 = vpack.c.b16 %v2841, %v2840
      %v2844 = vpack.c.b16 %v2842, %v2842
      %v2846 = vshrl.u32 %v2843, 16
      %v2848 = vshll.u32 %v2843, 16
      %v2850 = vrot.slane %v2848, 1
      %v2851 = vor.u32 %v2846, %v2850
      %v2853 = vshll.u32 %v2844, 16
      %v2855 = vrot.slane %v2853, 1
      %v2856 = vsel %vm954, %v2851, %v2855
      %v2858 = vsel %vm967, %v2856, 0
      %v2861 = vsel %vm971, %v2836, 0
      %2863 = vmatpush.bf16.msra.mxu0 0
      %2864 = vmatpush.bf16.msra.mxu0 0
      %2865 = vmatpush.bf16.msra.mxu0 0
      %2866 = vmatpush.bf16.msra.mxu0 0
      %2867 = vmatpush.bf16.msra.mxu0 0
      %2868 = vmatpush.bf16.msra.mxu0 0
      %2869 = vmatpush.bf16.msra.mxu0 0
      %2870 = vmatpush.bf16.msra.mxu0 %v2861
      %2871 = vmatmul.bf16.gmra.mxu0 %v2858
      %v2872 = vpop.f32.mrf.mxu0
      %v2873 = vadd.f32 0.0, %v2872
      %v2874 = vpop.f32.mrf.mxu0
      %v2875 = vadd.f32 0.0, %v2874
      %2876 = vdwg.mxu0
      %v2877 = vsel %vm967, %v2843, 0
      %v2880 = vsel %vm971, %v2834, 0
      %2882 = vmatpush.bf16.msra.mxu0 0
      %2883 = vmatpush.bf16.msra.mxu0 0
      %2884 = vmatpush.bf16.msra.mxu0 0
      %2885 = vmatpush.bf16.msra.mxu0 0
      %2886 = vmatpush.bf16.msra.mxu0 0
      %2887 = vmatpush.bf16.msra.mxu0 0
      %2888 = vmatpush.bf16.msra.mxu0 0
      %2889 = vmatpush.bf16.msra.mxu0 %v2880
      %2890 = vmatmul.bf16.gmra.mxu0 %v2877
      %v2891 = vpop.f32.mrf.mxu0
      %v2892 = vadd.f32 %v2873, %v2891
      %v2893 = vpop.f32.mrf.mxu0
      %v2894 = vadd.f32 %v2875, %v2893
      %2895 = vdwg.mxu0
      %v2896 = vld [vmem:[%s875] sm:$0xe]
      %v2897 = vld [vmem:[%s1009] sm:$0x3]
      %v2899 = vunpack.c.l.b16 %v2896
      %v2900 = vpack.c.b16 %v2841, %v2899
      %v2901 = vrot.slane %v2900, 1
      %v2902 = vrot.slane %v2844, 1
      %v2903 = vsel %vm1014, %v2901, %v2902
      %v2905 = vsel %vm967, %v2903, 0
      %v2908 = vsel %vm971, %v2897, 0
      %2910 = vmatpush.bf16.msra.mxu0 0
      %2911 = vmatpush.bf16.msra.mxu0 0
      %2912 = vmatpush.bf16.msra.mxu0 0
      %2913 = vmatpush.bf16.msra.mxu0 0
      %2914 = vmatpush.bf16.msra.mxu0 0
      %2915 = vmatpush.bf16.msra.mxu0 0
      %2916 = vmatpush.bf16.msra.mxu0 0
      %2917 = vmatpush.bf16.msra.mxu0 %v2908
      %2918 = vmatmul.bf16.gmra.mxu0 %v2905
      %v2919 = vpop.f32.mrf.mxu0
      %v2920 = vadd.f32 0.0, %v2919
      %v2921 = vpop.f32.mrf.mxu0
      %v2922 = vadd.f32 0.0, %v2921
      %2923 = vdwg.mxu0
      %v2924 = vadd.f32 %v2892, %v2920
      %v2925 = vadd.f32 %v2894, %v2922
      %v2926 = vld [vmem:[%s888] sm:$0xf]
      %v2927 = vld [vmem:[%s888 + $0x4] sm:$0xf]
      %v2928 = vld [vmem:[%s1042] sm:$0x3]
      %v2931 = vunpack.c.l.b16 %v2926
      %v2932 = vunpack.c.l.b16 %v2927
      %v2933 = vpack.c.b16 %v2932, %v2931
      %v2935 = vsel %vm967, %v2933, 0
      %v2938 = vsel %vm971, %v2928, 0
      %2940 = vmatpush.bf16.msra.mxu0 0
      %2941 = vmatpush.bf16.msra.mxu0 0
      %2942 = vmatpush.bf16.msra.mxu0 0
      %2943 = vmatpush.bf16.msra.mxu0 0
      %2944 = vmatpush.bf16.msra.mxu0 0
      %2945 = vmatpush.bf16.msra.mxu0 0
      %2946 = vmatpush.bf16.msra.mxu0 0
      %2947 = vmatpush.bf16.msra.mxu0 %v2938
      %2948 = vmatmul.bf16.gmra.mxu0 %v2935
      %v2949 = vpop.f32.mrf.mxu0
      %v2950 = vadd.f32 0.0, %v2949
      %v2951 = vpop.f32.mrf.mxu0
      %v2952 = vadd.f32 0.0, %v2951
      %2953 = vdwg.mxu0
      %v2954 = vadd.f32 %v2924, %v2950
      %v2955 = vadd.f32 %v2925, %v2952
      %v2956 = vld [vmem:[%s888] sm:$0xf]
      %v2957 = vld [vmem:[%s888 + $0x4] sm:$0xf]
      %v2958 = vld [vmem:[%s888 + $0x8] sm:$0x1]
      %v2959 = vld [vmem:[%s1074] sm:$0x3]
      %v2963 = vunpack.c.l.b16 %v2956
      %v2964 = vunpack.c.l.b16 %v2957
      %v2965 = vunpack.c.l.b16 %v2958
      %v2966 = vpack.c.b16 %v2964, %v2963
      %v2967 = vpack.c.b16 %v2965, %v2965
      %v2969 = vshrl.u32 %v2966, 16
      %v2971 = vshll.u32 %v2966, 16
      %v2973 = vrot.slane %v2971, 1
      %v2974 = vor.u32 %v2969, %v2973
      %v2976 = vshll.u32 %v2967, 16
      %v2978 = vrot.slane %v2976, 1
      %v2979 = vsel %vm954, %v2974, %v2978
      %v2981 = vsel %vm967, %v2979, 0
      %v2984 = vsel %vm971, %v2959, 0
      %2986 = vmatpush.bf16.msra.mxu0 0
      %2987 = vmatpush.bf16.msra.mxu0 0
      %2988 = vmatpush.bf16.msra.mxu0 0
      %2989 = vmatpush.bf16.msra.mxu0 0
      %2990 = vmatpush.bf16.msra.mxu0 0
      %2991 = vmatpush.bf16.msra.mxu0 0
      %2992 = vmatpush.bf16.msra.mxu0 0
      %2993 = vmatpush.bf16.msra.mxu0 %v2984
      %2994 = vmatmul.bf16.gmra.mxu0 %v2981
      %v2995 = vpop.f32.mrf.mxu0
      %v2996 = vadd.f32 0.0, %v2995
      %v2997 = vpop.f32.mrf.mxu0
      %v2998 = vadd.f32 0.0, %v2997
      %2999 = vdwg.mxu0
      %v3000 = vadd.f32 %v2954, %v2996
      %v3001 = vadd.f32 %v2955, %v2998
      %v3002 = vld [vmem:[%s888] sm:$0xe]
      %v3003 = vld [vmem:[%s1119] sm:$0x3]
      %v3005 = vunpack.c.l.b16 %v3002
      %v3006 = vpack.c.b16 %v2964, %v3005
      %v3007 = vrot.slane %v3006, 1
      %v3008 = vrot.slane %v2967, 1
      %v3009 = vsel %vm1014, %v3007, %v3008
      %v3011 = vsel %vm967, %v3009, 0
      %v3014 = vsel %vm971, %v3003, 0
      %3016 = vmatpush.bf16.msra.mxu0 0
      %3017 = vmatpush.bf16.msra.mxu0 0
      %3018 = vmatpush.bf16.msra.mxu0 0
      %3019 = vmatpush.bf16.msra.mxu0 0
      %3020 = vmatpush.bf16.msra.mxu0 0
      %3021 = vmatpush.bf16.msra.mxu0 0
      %3022 = vmatpush.bf16.msra.mxu0 0
      %3023 = vmatpush.bf16.msra.mxu0 %v3014
      %3024 = vmatmul.bf16.gmra.mxu0 %v3011
      %v3025 = vpop.f32.mrf.mxu0
      %v3026 = vadd.f32 0.0, %v3025
      %v3027 = vpop.f32.mrf.mxu0
      %v3028 = vadd.f32 0.0, %v3027
      %3029 = vdwg.mxu0
      %v3030 = vadd.f32 %v3000, %v3026
      %v3031 = vadd.f32 %v3001, %v3028
      %v3032 = vld [vmem:[%s901] sm:$0xf]
      %v3033 = vld [vmem:[%s901 + $0x4] sm:$0xf]
      %v3034 = vld [vmem:[%s1151] sm:$0x3]
      %v3037 = vunpack.c.l.b16 %v3032
      %v3038 = vunpack.c.l.b16 %v3033
      %v3039 = vpack.c.b16 %v3038, %v3037
      %v3041 = vsel %vm967, %v3039, 0
      %v3044 = vsel %vm971, %v3034, 0
      %3046 = vmatpush.bf16.msra.mxu0 0
      %3047 = vmatpush.bf16.msra.mxu0 0
      %3048 = vmatpush.bf16.msra.mxu0 0
      %3049 = vmatpush.bf16.msra.mxu0 0
      %3050 = vmatpush.bf16.msra.mxu0 0
      %3051 = vmatpush.bf16.msra.mxu0 0
      %3052 = vmatpush.bf16.msra.mxu0 0
      %3053 = vmatpush.bf16.msra.mxu0 %v3044
      %3054 = vmatmul.bf16.gmra.mxu0 %v3041
      %v3055 = vpop.f32.mrf.mxu0
      %v3056 = vadd.f32 0.0, %v3055
      %v3057 = vpop.f32.mrf.mxu0
      %v3058 = vadd.f32 0.0, %v3057
      %3059 = vdwg.mxu0
      %v3060 = vadd.f32 %v3030, %v3056
      %v3061 = vadd.f32 %v3031, %v3058
      %v3062 = vld [vmem:[%s901] sm:$0xf]
      %v3063 = vld [vmem:[%s901 + $0x4] sm:$0xf]
      %v3064 = vld [vmem:[%s901 + $0x8] sm:$0x1]
      %v3065 = vld [vmem:[%s1183] sm:$0x3]
      %v3069 = vunpack.c.l.b16 %v3062
      %v3070 = vunpack.c.l.b16 %v3063
      %v3071 = vunpack.c.l.b16 %v3064
      %v3072 = vpack.c.b16 %v3070, %v3069
      %v3073 = vpack.c.b16 %v3071, %v3071
      %v3075 = vshrl.u32 %v3072, 16
      %v3077 = vshll.u32 %v3072, 16
      %v3079 = vrot.slane %v3077, 1
      %v3080 = vor.u32 %v3075, %v3079
      %v3082 = vshll.u32 %v3073, 16
      %v3084 = vrot.slane %v3082, 1
      %v3085 = vsel %vm954, %v3080, %v3084
      %v3087 = vsel %vm967, %v3085, 0
      %v3090 = vsel %vm971, %v3065, 0
      %3092 = vmatpush.bf16.msra.mxu0 0
      %3093 = vmatpush.bf16.msra.mxu0 0
      %3094 = vmatpush.bf16.msra.mxu0 0
      %3095 = vmatpush.bf16.msra.mxu0 0
      %3096 = vmatpush.bf16.msra.mxu0 0
      %3097 = vmatpush.bf16.msra.mxu0 0
      %3098 = vmatpush.bf16.msra.mxu0 0
      %3099 = vmatpush.bf16.msra.mxu0 %v3090
      %3100 = vmatmul.bf16.gmra.mxu0 %v3087
      %v3101 = vpop.f32.mrf.mxu0
      %v3102 = vadd.f32 0.0, %v3101
      %v3103 = vpop.f32.mrf.mxu0
      %v3104 = vadd.f32 0.0, %v3103
      %3105 = vdwg.mxu0
      %v3106 = vadd.f32 %v3060, %v3102
      %v3107 = vadd.f32 %v3061, %v3104
      %v3108 = vld [vmem:[%s901] sm:$0xe]
      %v3109 = vld [vmem:[%s1228] sm:$0x3]
      %v3111 = vunpack.c.l.b16 %v3108
      %v3112 = vpack.c.b16 %v3070, %v3111
      %v3113 = vrot.slane %v3112, 1
      %v3114 = vrot.slane %v3073, 1
      %v3115 = vsel %vm1014, %v3113, %v3114
      %v3117 = vsel %vm967, %v3115, 0
      %v3120 = vsel %vm971, %v3109, 0
      %3122 = vmatpush.bf16.msra.mxu0 0
      %3123 = vmatpush.bf16.msra.mxu0 0
      %3124 = vmatpush.bf16.msra.mxu0 0
      %3125 = vmatpush.bf16.msra.mxu0 0
      %3126 = vmatpush.bf16.msra.mxu0 0
      %3127 = vmatpush.bf16.msra.mxu0 0
      %3128 = vmatpush.bf16.msra.mxu0 0
      %3129 = vmatpush.bf16.msra.mxu0 %v3120
      %3130 = vmatmul.bf16.gmra.mxu0 %v3117
      %v3131 = vpop.f32.mrf.mxu0
      %v3132 = vadd.f32 0.0, %v3131
      %v3133 = vpop.f32.mrf.mxu0
      %v3134 = vadd.f32 0.0, %v3133
      %3135 = vdwg.mxu0
      %v3136 = vadd.f32 %v3106, %v3132
      %v3137 = vadd.f32 %v3107, %v3134
      %v3138 = vadd.f32 %v3136, %v1259
      %v3139 = vadd.f32 %v3137, %v1259
      %v3140 = vmax.f32 %v3138, 0.0
      %v3141 = vmax.f32 %v3139, 0.0
      %s3142 = scalar_lea.vmem %s936, 96
      %3143 = vst [vmem:[%s3142] sm:$0xff] %v3140
      %3144 = vst [vmem:[%s3142 + $0x8] sm:$0xff] %v3141
      %v3145 = vld [vmem:[%s888] sm:$0xf]
      %v3146 = vld [vmem:[%s888 + $0x4] sm:$0xf]
      %v3147 = vld [vmem:[%s920] sm:$0x3]
      %v3148 = vld [vmem:[%s888 + $0x8] sm:$0x1]
      %v3149 = vld [vmem:[%s944] sm:$0x3]
      %v3153 = vunpack.c.l.b16 %v3145
      %v3154 = vunpack.c.l.b16 %v3146
      %v3155 = vunpack.c.l.b16 %v3148
      %v3156 = vpack.c.b16 %v3154, %v3153
      %v3157 = vpack.c.b16 %v3155, %v3155
      %v3159 = vshrl.u32 %v3156, 16
      %v3161 = vshll.u32 %v3156, 16
      %v3163 = vrot.slane %v3161, 1
      %v3164 = vor.u32 %v3159, %v3163
      %v3166 = vshll.u32 %v3157, 16
      %v3168 = vrot.slane %v3166, 1
      %v3169 = vsel %vm954, %v3164, %v3168
      %v3171 = vsel %vm967, %v3169, 0
      %v3174 = vsel %vm971, %v3149, 0
      %3176 = vmatpush.bf16.msra.mxu0 0
      %3177 = vmatpush.bf16.msra.mxu0 0
      %3178 = vmatpush.bf16.msra.mxu0 0
      %3179 = vmatpush.bf16.msra.mxu0 0
      %3180 = vmatpush.bf16.msra.mxu0 0
      %3181 = vmatpush.bf16.msra.mxu0 0
      %3182 = vmatpush.bf16.msra.mxu0 0
      %3183 = vmatpush.bf16.msra.mxu0 %v3174
      %3184 = vmatmul.bf16.gmra.mxu0 %v3171
      %v3185 = vpop.f32.mrf.mxu0
      %v3186 = vadd.f32 0.0, %v3185
      %v3187 = vpop.f32.mrf.mxu0
      %v3188 = vadd.f32 0.0, %v3187
      %3189 = vdwg.mxu0
      %v3190 = vsel %vm967, %v3156, 0
      %v3193 = vsel %vm971, %v3147, 0
      %3195 = vmatpush.bf16.msra.mxu0 0
      %3196 = vmatpush.bf16.msra.mxu0 0
      %3197 = vmatpush.bf16.msra.mxu0 0
      %3198 = vmatpush.bf16.msra.mxu0 0
      %3199 = vmatpush.bf16.msra.mxu0 0
      %3200 = vmatpush.bf16.msra.mxu0 0
      %3201 = vmatpush.bf16.msra.mxu0 0
      %3202 = vmatpush.bf16.msra.mxu0 %v3193
      %3203 = vmatmul.bf16.gmra.mxu0 %v3190
      %v3204 = vpop.f32.mrf.mxu0
      %v3205 = vadd.f32 %v3186, %v3204
      %v3206 = vpop.f32.mrf.mxu0
      %v3207 = vadd.f32 %v3188, %v3206
      %3208 = vdwg.mxu0
      %v3209 = vld [vmem:[%s888] sm:$0xe]
      %v3210 = vld [vmem:[%s1009] sm:$0x3]
      %v3212 = vunpack.c.l.b16 %v3209
      %v3213 = vpack.c.b16 %v3154, %v3212
      %v3214 = vrot.slane %v3213, 1
      %v3215 = vrot.slane %v3157, 1
      %v3216 = vsel %vm1014, %v3214, %v3215
      %v3218 = vsel %vm967, %v3216, 0
      %v3221 = vsel %vm971, %v3210, 0
      %3223 = vmatpush.bf16.msra.mxu0 0
      %3224 = vmatpush.bf16.msra.mxu0 0
      %3225 = vmatpush.bf16.msra.mxu0 0
      %3226 = vmatpush.bf16.msra.mxu0 0
      %3227 = vmatpush.bf16.msra.mxu0 0
      %3228 = vmatpush.bf16.msra.mxu0 0
      %3229 = vmatpush.bf16.msra.mxu0 0
      %3230 = vmatpush.bf16.msra.mxu0 %v3221
      %3231 = vmatmul.bf16.gmra.mxu0 %v3218
      %v3232 = vpop.f32.mrf.mxu0
      %v3233 = vadd.f32 0.0, %v3232
      %v3234 = vpop.f32.mrf.mxu0
      %v3235 = vadd.f32 0.0, %v3234
      %3236 = vdwg.mxu0
      %v3237 = vadd.f32 %v3205, %v3233
      %v3238 = vadd.f32 %v3207, %v3235
      %v3239 = vld [vmem:[%s901] sm:$0xf]
      %v3240 = vld [vmem:[%s901 + $0x4] sm:$0xf]
      %v3241 = vld [vmem:[%s1042] sm:$0x3]
      %v3244 = vunpack.c.l.b16 %v3239
      %v3245 = vunpack.c.l.b16 %v3240
      %v3246 = vpack.c.b16 %v3245, %v3244
      %v3248 = vsel %vm967, %v3246, 0
      %v3251 = vsel %vm971, %v3241, 0
      %3253 = vmatpush.bf16.msra.mxu0 0
      %3254 = vmatpush.bf16.msra.mxu0 0
      %3255 = vmatpush.bf16.msra.mxu0 0
      %3256 = vmatpush.bf16.msra.mxu0 0
      %3257 = vmatpush.bf16.msra.mxu0 0
      %3258 = vmatpush.bf16.msra.mxu0 0
      %3259 = vmatpush.bf16.msra.mxu0 0
      %3260 = vmatpush.bf16.msra.mxu0 %v3251
      %3261 = vmatmul.bf16.gmra.mxu0 %v3248
      %v3262 = vpop.f32.mrf.mxu0
      %v3263 = vadd.f32 0.0, %v3262
      %v3264 = vpop.f32.mrf.mxu0
      %v3265 = vadd.f32 0.0, %v3264
      %3266 = vdwg.mxu0
      %v3267 = vadd.f32 %v3237, %v3263
      %v3268 = vadd.f32 %v3238, %v3265
      %v3269 = vld [vmem:[%s901] sm:$0xf]
      %v3270 = vld [vmem:[%s901 + $0x4] sm:$0xf]
      %v3271 = vld [vmem:[%s901 + $0x8] sm:$0x1]
      %v3272 = vld [vmem:[%s1074] sm:$0x3]
      %v3276 = vunpack.c.l.b16 %v3269
      %v3277 = vunpack.c.l.b16 %v3270
      %v3278 = vunpack.c.l.b16 %v3271
      %v3279 = vpack.c.b16 %v3277, %v3276
      %v3280 = vpack.c.b16 %v3278, %v3278
      %v3282 = vshrl.u32 %v3279, 16
      %v3284 = vshll.u32 %v3279, 16
      %v3286 = vrot.slane %v3284, 1
      %v3287 = vor.u32 %v3282, %v3286
      %v3289 = vshll.u32 %v3280, 16
      %v3291 = vrot.slane %v3289, 1
      %v3292 = vsel %vm954, %v3287, %v3291
      %v3294 = vsel %vm967, %v3292, 0
      %v3297 = vsel %vm971, %v3272, 0
      %3299 = vmatpush.bf16.msra.mxu0 0
      %3300 = vmatpush.bf16.msra.mxu0 0
      %3301 = vmatpush.bf16.msra.mxu0 0
      %3302 = vmatpush.bf16.msra.mxu0 0
      %3303 = vmatpush.bf16.msra.mxu0 0
      %3304 = vmatpush.bf16.msra.mxu0 0
      %3305 = vmatpush.bf16.msra.mxu0 0
      %3306 = vmatpush.bf16.msra.mxu0 %v3297
      %3307 = vmatmul.bf16.gmra.mxu0 %v3294
      %v3308 = vpop.f32.mrf.mxu0
      %v3309 = vadd.f32 0.0, %v3308
      %v3310 = vpop.f32.mrf.mxu0
      %v3311 = vadd.f32 0.0, %v3310
      %3312 = vdwg.mxu0
      %v3313 = vadd.f32 %v3267, %v3309
      %v3314 = vadd.f32 %v3268, %v3311
      %v3315 = vld [vmem:[%s901] sm:$0xe]
      %v3316 = vld [vmem:[%s1119] sm:$0x3]
      %v3318 = vunpack.c.l.b16 %v3315
      %v3319 = vpack.c.b16 %v3277, %v3318
      %v3320 = vrot.slane %v3319, 1
      %v3321 = vrot.slane %v3280, 1
      %v3322 = vsel %vm1014, %v3320, %v3321
      %v3324 = vsel %vm967, %v3322, 0
      %v3327 = vsel %vm971, %v3316, 0
      %3329 = vmatpush.bf16.msra.mxu0 0
      %3330 = vmatpush.bf16.msra.mxu0 0
      %3331 = vmatpush.bf16.msra.mxu0 0
      %3332 = vmatpush.bf16.msra.mxu0 0
      %3333 = vmatpush.bf16.msra.mxu0 0
      %3334 = vmatpush.bf16.msra.mxu0 0
      %3335 = vmatpush.bf16.msra.mxu0 0
      %3336 = vmatpush.bf16.msra.mxu0 %v3327
      %3337 = vmatmul.bf16.gmra.mxu0 %v3324
      %v3338 = vpop.f32.mrf.mxu0
      %v3339 = vadd.f32 0.0, %v3338
      %v3340 = vpop.f32.mrf.mxu0
      %v3341 = vadd.f32 0.0, %v3340
      %3342 = vdwg.mxu0
      %v3343 = vadd.f32 %v3313, %v3339
      %v3344 = vadd.f32 %v3314, %v3341
      %v3345 = vld [vmem:[%s914] sm:$0xf]
      %v3346 = vld [vmem:[%s914 + $0x4] sm:$0xf]
      %v3347 = vld [vmem:[%s1151] sm:$0x3]
      %v3350 = vunpack.c.l.b16 %v3345
      %v3351 = vunpack.c.l.b16 %v3346
      %v3352 = vpack.c.b16 %v3351, %v3350
      %v3354 = vsel %vm967, %v3352, 0
      %v3357 = vsel %vm971, %v3347, 0
      %3359 = vmatpush.bf16.msra.mxu0 0
      %3360 = vmatpush.bf16.msra.mxu0 0
      %3361 = vmatpush.bf16.msra.mxu0 0
      %3362 = vmatpush.bf16.msra.mxu0 0
      %3363 = vmatpush.bf16.msra.mxu0 0
      %3364 = vmatpush.bf16.msra.mxu0 0
      %3365 = vmatpush.bf16.msra.mxu0 0
      %3366 = vmatpush.bf16.msra.mxu0 %v3357
      %3367 = vmatmul.bf16.gmra.mxu0 %v3354
      %v3368 = vpop.f32.mrf.mxu0
      %v3369 = vadd.f32 0.0, %v3368
      %v3370 = vpop.f32.mrf.mxu0
      %v3371 = vadd.f32 0.0, %v3370
      %3372 = vdwg.mxu0
      %v3373 = vadd.f32 %v3343, %v3369
      %v3374 = vadd.f32 %v3344, %v3371
      %v3375 = vld [vmem:[%s914] sm:$0xf]
      %v3376 = vld [vmem:[%s914 + $0x4] sm:$0xf]
      %v3377 = vld [vmem:[%s914 + $0x8] sm:$0x1]
      %v3378 = vld [vmem:[%s1183] sm:$0x3]
      %v3382 = vunpack.c.l.b16 %v3375
      %v3383 = vunpack.c.l.b16 %v3376
      %v3384 = vunpack.c.l.b16 %v3377
      %v3385 = vpack.c.b16 %v3383, %v3382
      %v3386 = vpack.c.b16 %v3384, %v3384
      %v3388 = vshrl.u32 %v3385, 16
      %v3390 = vshll.u32 %v3385, 16
      %v3392 = vrot.slane %v3390, 1
      %v3393 = vor.u32 %v3388, %v3392
      %v3395 = vshll.u32 %v3386, 16
      %v3397 = vrot.slane %v3395, 1
      %v3398 = vsel %vm954, %v3393, %v3397
      %v3400 = vsel %vm967, %v3398, 0
      %v3403 = vsel %vm971, %v3378, 0
      %3405 = vmatpush.bf16.msra.mxu0 0
      %3406 = vmatpush.bf16.msra.mxu0 0
      %3407 = vmatpush.bf16.msra.mxu0 0
      %3408 = vmatpush.bf16.msra.mxu0 0
      %3409 = vmatpush.bf16.msra.mxu0 0
      %3410 = vmatpush.bf16.msra.mxu0 0
      %3411 = vmatpush.bf16.msra.mxu0 0
      %3412 = vmatpush.bf16.msra.mxu0 %v3403
      %3413 = vmatmul.bf16.gmra.mxu0 %v3400
      %v3414 = vpop.f32.mrf.mxu0
      %v3415 = vadd.f32 0.0, %v3414
      %v3416 = vpop.f32.mrf.mxu0
      %v3417 = vadd.f32 0.0, %v3416
      %3418 = vdwg.mxu0
      %v3419 = vadd.f32 %v3373, %v3415
      %v3420 = vadd.f32 %v3374, %v3417
      %v3421 = vld [vmem:[%s914] sm:$0xe]
      %v3422 = vld [vmem:[%s1228] sm:$0x3]
      %v3424 = vunpack.c.l.b16 %v3421
      %v3425 = vpack.c.b16 %v3383, %v3424
      %v3426 = vrot.slane %v3425, 1
      %v3427 = vrot.slane %v3386, 1
      %v3428 = vsel %vm1014, %v3426, %v3427
      %v3430 = vsel %vm967, %v3428, 0
      %v3433 = vsel %vm971, %v3422, 0
      %3435 = vmatpush.bf16.msra.mxu0 0
      %3436 = vmatpush.bf16.msra.mxu0 0
      %3437 = vmatpush.bf16.msra.mxu0 0
      %3438 = vmatpush.bf16.msra.mxu0 0
      %3439 = vmatpush.bf16.msra.mxu0 0
      %3440 = vmatpush.bf16.msra.mxu0 0
      %3441 = vmatpush.bf16.msra.mxu0 0
      %3442 = vmatpush.bf16.msra.mxu0 %v3433
      %3443 = vmatmul.bf16.gmra.mxu0 %v3430
      %v3444 = vpop.f32.mrf.mxu0
      %v3445 = vadd.f32 0.0, %v3444
      %v3446 = vpop.f32.mrf.mxu0
      %v3447 = vadd.f32 0.0, %v3446
      %3448 = vdwg.mxu0
      %v3449 = vadd.f32 %v3419, %v3445
      %v3450 = vadd.f32 %v3420, %v3447
      %v3451 = vadd.f32 %v3449, %v1259
      %v3452 = vadd.f32 %v3450, %v1259
      %v3453 = vmax.f32 %v3451, 0.0
      %v3454 = vmax.f32 %v3452, 0.0
      %s3455 = scalar_lea.vmem %s936, 112
      %3456 = vst [vmem:[%s3455] sm:$0xff] %v3453
      %3457 = vst [vmem:[%s3455 + $0x8] sm:$0xff] %v3454
      %s3458 = smul.u32 8, %s30
      %p3459 = scmp.lt.s32.totalorder %s28, 1
      %s3460 = scalar_select %p3459, %s28, 1
      %p3461 = scmp.lt.s32.totalorder %s3458, 15
      %s3462 = scalar_select %p3461, %s3458, 15
      %p3463 = scmp.lt.s32.totalorder %s29, 0
      %s3464 = scalar_select %p3463, %s29, 0
      %s3465 = smul.addr %s3462, 2
      %s3466 = sadd.s32 %s3464, %s3465
      %s3467 = smul.addr %s3460, 32
      %s3468 = sadd.s32 %s3466, %s3467
      %s3469 = smul.addr %s3468, 8
      %s3470 = scalar_lea.vmem %s12, %s3469
      // Predicated region
      $region69: #{conv_module_forward.1} parent=67 // pred_check
        %p3471 = pneg %p434
      $region70: #{conv_module_forward.1} parent=67 // pred_check_branch
        %3473 = sbr.rel (%p3471) target = $region72
      $region71: #{conv_module_forward.1} parent=67 // pred_region
        %s3474 = smul.u32 8, %s30
      $region72: #{conv_module_forward.1} parent=67 // pred_fallthru
        _
    $region68: #{conv_module_forward.1} parent=5 // pred_fallthru
      _
    %p3475 = scmp.le.s32.totalorder 2, %s18
    // Predicated region
    $region73: #{conv_module_forward.1} parent=5 // pred_check
      %p3476 = pneg %p3475
    $region74: #{conv_module_forward.1} parent=5 // pred_check_branch
      %3478 = sbr.rel (%p3476) target = $region76
    $region75: #{conv_module_forward.1} parent=5 // pred_region
      %s3479 = ssub.s32 %s18, 2
      // Predicated region
      $region77: #{conv_module_forward.1} parent=75 // pred_check
        %p3480 = pneg %p440
      $region78: #{conv_module_forward.1} parent=75 // pred_check_branch
        %3482 = sbr.rel (%p3480) target = $region80
      $region79: #{conv_module_forward.1} parent=75 // pred_region
        %s3483 = smul.u32 8, %s33
        %p3484 = scmp.lt.s32.totalorder %s31, 1
        %s3485 = scalar_select %p3484, %s31, 1
        %p3486 = scmp.lt.s32.totalorder %s3483, 15
        %s3487 = scalar_select %p3486, %s3483, 15
        %p3488 = scmp.lt.s32.totalorder %s32, 0
        %s3489 = scalar_select %p3488, %s32, 0
        %s3490 = smul.addr %s3487, 2
        %s3491 = sadd.s32 %s3489, %s3490
        %s3492 = smul.addr %s3485, 32
        %s3493 = sadd.s32 %s3491, %s3492
        %s3494 = smul.addr %s3493, 8
        %s3495 = scalar_lea.vmem %s12, %s3494
      $region80: #{conv_module_forward.1} parent=75 // pred_fallthru
        _
    $region76: #{conv_module_forward.1} parent=5 // pred_fallthru
      _
  $region6: #{conv_module_forward.1} parent=0 // loop_footer
    %s22 = sadd.s32 1, %s18
  $region7: #{conv_module_forward.1} parent=0 // loop_footer_branch
    %17 = sbr.rel target = $region3
  $region8: #{conv_module_forward.1} parent=0 // loop_exit
    _

</llo_original>
